<compile_context>
chip_gen: v5e
topology: v5e:2x2
jax: 0.10.0
libtpu: 0.0.40
codegen_flags: <defaults>
</compile_context>

<pallas_src>
import functools
import math

import jax
import jax.numpy as jnp
from jax.experimental import pallas as pl
from jax.experimental.pallas import tpu as pltpu


# ----------------------------- config (args) ---------------------------------
class Args:
    hidden_size = 32
    max_seq_length = 16
    num_attention_heads = 2
    num_hidden_layers = 2
    hidden_dropout_prob = 0.0          # eval: dropout == identity
    attention_probs_dropout_prob = 0.0
    hidden_act = "gelu"
    initializer_range = 0.02
    distance_metric = "wasserstein"
    pvn_weight = 0.005


_NEG = -(2.0 ** 32) + 1.0


# ----------------------------- in-kernel helpers ------------------------------
def _layer_norm(x, w, b, eps=1e-12):
    u = jnp.mean(x, axis=-1, keepdims=True)
    s = jnp.mean((x - u) ** 2, axis=-1, keepdims=True)
    return (x - u) / jnp.sqrt(s + eps) * w + b


def _elu(x):
    return jnp.where(x > 0, x, jnp.exp(x) - 1.0)


def _gelu(x):
    # TODO(synk): STOSA uses exact erf-GELU; tanh approximation used here for Mosaic-safe lowering.
    c = math.sqrt(2.0 / math.pi)
    return 0.5 * x * (1.0 + jnp.tanh(c * (x + 0.044715 * x * x * x)))


def _act(name):
    if name == "gelu":
        return _gelu
    return lambda v: jnp.maximum(v, 0.0)


def _rowdot(a, b):
    """a: (Ma, H), b: (Mb, H) -> (Ma, Mb), contracting the last dim of both (A @ B^T)."""
    return jax.lax.dot_general(a, b, (((1,), (1,)), ((), ())),
                               preferred_element_type=jnp.float32)


# ------------------------ single fused forward kernel -------------------------
def _stosa_fwd_kernel(
    emb_ref,        # (4*B*L, H)  item+pos, streams stacked: [mean_seq; mean_resp; cov_seq; cov_resp]
    addmask_ref,    # (B*L, B*L)  block-diagonal additive attention mask (cross-batch = 2*NEG)
    ln_ref,         # (2, H)      embedding LayerNorm [w; b]
    wqm_ref,        # (NL, H, H)      mean query weight
    wkvm_ref,       # (NL, H, 2H)     [mean key | mean value] fused
    wqc_ref,        # (NL, H, H)      cov query weight
    wkvc_ref,       # (NL, H, 2H)     [cov key | cov value] fused
    wdm_ref,        # (NL, H, H)      mean attention-output dense
    wdc_ref,        # (NL, H, H)      cov attention-output dense
    wd1_ref,        # (NL, H, 4H)     FFN dense 1 (shared mean/cov)
    wd2_ref,        # (NL, 4H, H)     FFN dense 2 (shared mean/cov)
    bh_ref,         # (NL, 13, H)     H-wide biases / LN params (see order below)
    bd1_ref,        # (NL, 1, 4H)     FFN dense-1 bias
    outwb_ref,      # (1, 2)          [out.weight, out.bias] of Linear(1,1)
    preds_ref,      # (1, B*L)        output: sigmoid predictions, lane-dense
    *, B, L, H, num_heads, num_layers, hidden_act,
):
    BL = B * L
    dh = H // num_heads
    scale = 1.0 / math.sqrt(dh)
    act = _act(hidden_act)

    # ---- fused embedding post-processing for all 4 streams (stacked on sublanes) ----
    x = emb_ref[...]                                            # (4BL, H) = item + pos
    x = _layer_norm(x, ln_ref[0:1, :], ln_ref[1:2, :])
    x = _elu(x)
    row = jax.lax.broadcasted_iota(jnp.int32, (4 * BL, H), 0)
    x = x + jnp.where(row >= 2 * BL, 1.0, 0.0)                  # cov streams get ELU(.) + 1

    mean_seq = x[0 * BL:1 * BL]                                 # (BL, H)
    mean_resp = x[1 * BL:2 * BL]
    cov_seq = x[2 * BL:3 * BL]
    cov_resp = x[3 * BL:4 * BL]

    # Additive attention mask, built once in the wrapper (block-diagonal over batches,
    # strictly-causal + key-validity inside each block, 2*NEG off-batch so the per-row
    # softmax matches the per-batch reference exactly).
    addmask = addmask_ref[...]                                  # (BL, BL)

    # per-head lane masks: avoids 16-lane head slicing / concatenation relayouts
    lane = jax.lax.broadcasted_iota(jnp.int32, (1, H), 1)
    head_masks = [((lane >= h * dh) & (lane < (h + 1) * dh)).astype(jnp.float32)
                  for h in range(num_heads)]

    mean_h, cov_h = mean_seq, cov_seq
    for l in range(num_layers):
        bh = bh_ref[l]                                          # (13, H)
        mqb, mkb, mvb = bh[0:1], bh[1:2], bh[2:3]
        cqb, ckb, cvb = bh[3:4], bh[4:5], bh[5:6]
        mdb, cdb = bh[6:7], bh[7:8]
        aln_w, aln_b = bh[8:9], bh[9:10]
        d2b = bh[10:11]
        fln_w, fln_b = bh[11:12], bh[12:13]
        d1b = bd1_ref[l]                                        # (1, 4H)

        # ---- projections: query from evolving stream, fused key|value from response stream ----
        mq = jnp.dot(mean_h, wqm_ref[l], preferred_element_type=jnp.float32) + mqb
        mkv = jnp.dot(mean_resp, wkvm_ref[l], preferred_element_type=jnp.float32)
        mk = mkv[:, :H] + mkb
        mv = mkv[:, H:] + mvb
        cq = _elu(jnp.dot(cov_h, wqc_ref[l], preferred_element_type=jnp.float32) + cqb) + 1.0
        ckv = jnp.dot(cov_resp, wkvc_ref[l], preferred_element_type=jnp.float32)
        ck = _elu(ckv[:, :H] + ckb) + 1.0
        cv = _elu(ckv[:, H:] + cvb) + 1.0

        mq_sq = mq * mq
        mk_sq = mk * mk
        cq_s = jnp.sqrt(jnp.maximum(cq, 1e-24))
        ck_s = jnp.sqrt(jnp.maximum(ck, 1e-24))

        mean_ctx = jnp.zeros((BL, H), jnp.float32)
        cov_ctx = jnp.zeros((BL, H), jnp.float32)
        for hm in head_masks:                                   # static loop over heads
            # wasserstein_distance_matmul, per head via lane masks (no slicing/transpose),
            # all batches at once (block-diagonal mask kills cross-batch terms).
            mq2 = jnp.sum(mq_sq * hm, axis=-1, keepdims=True)             # (BL, 1)
            mk2_row = _rowdot(hm, mk_sq)                                  # (1, BL)
            qk = _rowdot(mq * hm, mk)                                     # (BL, BL)
            mean_term = -2.0 * qk + mq2 + mk2_row

            cq1 = jnp.sum(cq * hm, axis=-1, keepdims=True)                # (BL, 1)
            ck1_row = _rowdot(hm, ck)                                     # (1, BL)
            cqk = _rowdot(cq_s * hm, ck_s)                                # (BL, BL)
            cov_term = -2.0 * cqk + cq1 + ck1_row

            scores = -(mean_term + cov_term) * scale + addmask
            scores = scores - jnp.max(scores, axis=-1, keepdims=True)
            e = jnp.exp(scores)
            probs = e * pl.reciprocal(jnp.sum(e, axis=-1, keepdims=True), approx=True)

            # masked values -> each head writes only its own H-columns; sum over heads
            mean_ctx = mean_ctx + jnp.dot(probs, mv * hm,
                                          preferred_element_type=jnp.float32)
            cov_ctx = cov_ctx + jnp.dot(probs * probs, cv * hm,
                                        preferred_element_type=jnp.float32)

        # ---- attention-output dense + residual; shared LN + FFN on stacked streams ----
        m_out = jnp.dot(mean_ctx, wdm_ref[l], preferred_element_type=jnp.float32) + mdb + mean_h
        c_out = jnp.dot(cov_ctx, wdc_ref[l], preferred_element_type=jnp.float32) + cdb + cov_h
        att = _layer_norm(jnp.concatenate([m_out, c_out], axis=0), aln_w, aln_b)   # (2BL, H)

        h1 = act(jnp.dot(att, wd1_ref[l], preferred_element_type=jnp.float32) + d1b)   # (2BL, 4H)
        h2 = jnp.dot(h1, wd2_ref[l], preferred_element_type=jnp.float32) + d2b          # (2BL, H)
        out = _layer_norm(h2 + att, fln_w, fln_b)

        mean_h = out[:BL]
        cov_h = out[BL:]

    # ---- wasserstein distance to the input embeddings + Linear(1,1) + sigmoid ----
    dm = mean_h - mean_seq
    dc = jnp.sqrt(jnp.maximum(cov_h, 1e-24)) - jnp.sqrt(jnp.maximum(cov_seq, 1e-24))
    sq = dm * dm + dc * dc                                      # (BL, H)
    ones = jnp.ones((1, H), jnp.float32)
    d_row = _rowdot(ones, sq)                                   # (1, BL) lane-dense distance row
    wb = outwb_ref[...]                                         # (1, 2)
    logits = d_row * wb[:, 0:1] + wb[:, 1:2]
    preds_ref[...] = 1.0 / (1.0 + jnp.exp(-logits))


# ----------------------------- parameter init --------------------------------
def init_params(key, n_question, args):
    H = args.hidden_size
    keys = iter(jax.random.split(key, 128))

    def nrm(shape):
        return (0.01 + args.initializer_range *
                jax.random.normal(next(keys), shape, dtype=jnp.float32))

    p = {
        'item_mean': nrm((n_question, H)),
        'item_resp_mean': nrm((2 * n_question + 1, H)),
        'item_cov': nrm((n_question, H)),
        'item_resp_cov': nrm((2 * n_question + 1, H)),
        'pos_mean': nrm((args.max_seq_length, H)),
        'pos_resp_mean': nrm((args.max_seq_length, H)),
        'pos_cov': nrm((args.max_seq_length, H)),
        'pos_resp_cov': nrm((args.max_seq_length, H)),
        'ln_w': jnp.ones((1, H), jnp.float32),
        'ln_b': jnp.zeros((1, H), jnp.float32),
        'out_w': nrm((1, 1)),
        'out_b': jnp.zeros((1, 1), jnp.float32),
    }
    layers = []
    I = 4 * H
    for _ in range(args.num_hidden_layers):
        lp = {
            'mqw': nrm((H, H)), 'mqb': jnp.zeros((1, H), jnp.float32),
            'mkw': nrm((H, H)), 'mkb': jnp.zeros((1, H), jnp.float32),
            'mvw': nrm((H, H)), 'mvb': jnp.zeros((1, H), jnp.float32),
            'cqw': nrm((H, H)), 'cqb': jnp.zeros((1, H), jnp.float32),
            'ckw': nrm((H, H)), 'ckb': jnp.zeros((1, H), jnp.float32),
            'cvw': nrm((H, H)), 'cvb': jnp.zeros((1, H), jnp.float32),
            'mdw': nrm((H, H)), 'mdb': jnp.zeros((1, H), jnp.float32),
            'cdw': nrm((H, H)), 'cdb': jnp.zeros((1, H), jnp.float32),
            'aln_w': jnp.ones((1, H), jnp.float32), 'aln_b': jnp.zeros((1, H), jnp.float32),
            'd1w': nrm((H, I)), 'd1b': jnp.zeros((1, I), jnp.float32),
            'd2w': nrm((I, H)), 'd2b': jnp.zeros((1, H), jnp.float32),
            'fln_w': jnp.ones((1, H), jnp.float32), 'fln_b': jnp.zeros((1, H), jnp.float32),
        }
        layers.append(lp)
    p['layers'] = layers
    return p


# ------------------------ parameter packing (slabs) ---------------------------
_BIAS_ORDER = ('mqb', 'mkb', 'mvb', 'cqb', 'ckb', 'cvb', 'mdb', 'cdb',
               'aln_w', 'aln_b', 'd2b', 'fln_w', 'fln_b')


def pack_params(params):
    layers = params['layers']

    def st(name):
        return jnp.stack([lp[name] for lp in layers], axis=0)

    return {
        'ln_emb': jnp.concatenate([params['ln_w'], params['ln_b']], axis=0),      # (2, H)
        'w_qm': st('mqw'),                                                        # (NL, H, H)
        'w_kvm': jnp.stack([jnp.concatenate([lp['mkw'], lp['mvw']], axis=1)
                            for lp in layers], axis=0),                           # (NL, H, 2H)
        'w_qc': st('cqw'),                                                        # (NL, H, H)
        'w_kvc': jnp.stack([jnp.concatenate([lp['ckw'], lp['cvw']], axis=1)
                            for lp in layers], axis=0),                           # (NL, H, 2H)
        'w_dm': st('mdw'),                                                        # (NL, H, H)
        'w_dc': st('cdw'),                                                        # (NL, H, H)
        'w_d1': st('d1w'),                                                        # (NL, H, 4H)
        'w_d2': st('d2w'),                                                        # (NL, 4H, H)
        'b_h': jnp.stack([jnp.concatenate([lp[k] for k in _BIAS_ORDER], axis=0)
                          for lp in layers], axis=0),                             # (NL, 13, H)
        'b_d1': st('d1b'),                                                        # (NL, 1, 4H)
        'out_wb': jnp.concatenate([params['out_w'].reshape(1, 1),
                                   params['out_b'].reshape(1, 1)], axis=1),       # (1, 2)
    }


# ----------------------------- forward (glue + kernel) ------------------------
def stosakt_forward(params, dcur, n_question, args):
    c, r = dcur['cseqs'], dcur['rseqs']
    cshft, rshft = dcur['shft_cseqs'], dcur['shft_rseqs']

    input_ids = jnp.concatenate([c[:, 0:1], cshft], axis=1)            # (B, L)
    target = jnp.concatenate([r[:, 0:1], rshft], axis=1)               # (B, L)
    B, L = input_ids.shape
    BL = B * L
    H = args.hidden_size

    valid = (input_ids >= 0).astype(jnp.float32)                       # (B, L)
    pos_ids = jnp.arange(L)
    qa = input_ids + n_question * target

    def gathered(item_tbl, ids, pos_tbl):
        return item_tbl[ids] + pos_tbl[pos_ids][None, :, :]            # (B, L, H)

    # Stack the four streams along rows: [mean_seq; mean_resp; cov_seq; cov_resp]
    # NB: original code indexes item_response_cov_embeddings with `sequence`, not qa_data.
    emb_in = jnp.concatenate([
        gathered(params['item_mean'], input_ids, params['pos_mean']),
        gathered(params['item_resp_mean'], qa, params['pos_resp_mean']),
        gathered(params['item_cov'], input_ids, params['pos_cov']),
        gathered(params['item_resp_cov'], input_ids, params['pos_resp_cov']),
    ], axis=0).reshape(4 * BL, H)

    # Block-diagonal additive attention mask over the flattened batch (tiny 4 KiB slab).
    # In-batch: (1 - validity*strictly_lower) * NEG  (matches reference verbatim).
    # Cross-batch: extra NEG (total 2*NEG) so the row softmax reduces exactly to the
    # per-batch softmax of the reference even for fully-masked rows.
    ridx = jnp.arange(BL)[:, None]
    cidx = jnp.arange(BL)[None, :]
    same_batch = (ridx // L) == (cidx // L)
    lower = cidx < ridx
    allowed = jnp.where(same_batch & lower, 1.0, 0.0) * valid.reshape(-1)[None, :]
    addmask = ((1.0 - allowed) * _NEG +
               jnp.where(same_batch, 0.0, _NEG)).astype(jnp.float32)   # (BL, BL)

    packed = pack_params(params)

    kern = functools.partial(
        _stosa_fwd_kernel, B=B, L=L, H=H,
        num_heads=args.num_attention_heads,
        num_layers=args.num_hidden_layers,
        hidden_act=args.hidden_act)

    preds_row = pl.pallas_call(
        kern,
        out_shape=jax.ShapeDtypeStruct((1, BL), jnp.float32),
        compiler_params=pltpu.CompilerParams(vmem_limit_bytes=32 * 1024 * 1024),
    )(emb_in, addmask, packed['ln_emb'],
      packed['w_qm'], packed['w_kvm'], packed['w_qc'], packed['w_kvc'],
      packed['w_dm'], packed['w_dc'], packed['w_d1'], packed['w_d2'],
      packed['b_h'], packed['b_d1'], packed['out_wb'])

    return preds_row.reshape(B, L)[:, 1:]                              # (B, L-1)


# ----------------------------- main -------------------------------------------
if __name__ == "__main__":
    args = Args()
    n_question = 50
    B, S = 2, 15   # c/cshft length 15 -> input_ids length L = 16 (= max_seq_length)

    key = jax.random.PRNGKey(0)
    k1, k2, k3, k4, kp = jax.random.split(key, 5)
    c = jax.random.randint(k1, (B, S), 1, n_question, dtype=jnp.int32)
    cshft = jax.random.randint(k2, (B, S), 1, n_question, dtype=jnp.int32)
    r = jax.random.randint(k3, (B, S), 0, 2, dtype=jnp.int32)
    rshft = jax.random.randint(k4, (B, S), 0, 2, dtype=jnp.int32)

    dcur = {'qseqs': c, 'cseqs': c, 'rseqs': r,
            'shft_qseqs': cshft, 'shft_cseqs': cshft, 'shft_rseqs': rshft}

    params = init_params(kp, n_question, args)

    preds = stosakt_forward(params, dcur, n_question, args)
    preds = jax.block_until_ready(preds)

    assert preds.shape == (B, S), preds.shape
    assert bool(jnp.all(jnp.isfinite(preds)))
    print("KERNEL_OK")
</pallas_src>

<mosaic_0001>
module attributes {stable_mosaic.version = 11 : i64} {
  func.func @_stosa_fwd_kernel(%arg0: memref<128x32xf32, #tpu.memory_space<vmem>>, %arg1: memref<32x32xf32, #tpu.memory_space<vmem>>, %arg2: memref<2x32xf32, #tpu.memory_space<vmem>>, %arg3: memref<2x32x32xf32, #tpu.memory_space<vmem>>, %arg4: memref<2x32x64xf32, #tpu.memory_space<vmem>>, %arg5: memref<2x32x32xf32, #tpu.memory_space<vmem>>, %arg6: memref<2x32x64xf32, #tpu.memory_space<vmem>>, %arg7: memref<2x32x32xf32, #tpu.memory_space<vmem>>, %arg8: memref<2x32x32xf32, #tpu.memory_space<vmem>>, %arg9: memref<2x32x128xf32, #tpu.memory_space<vmem>>, %arg10: memref<2x128x32xf32, #tpu.memory_space<vmem>>, %arg11: memref<2x13x32xf32, #tpu.memory_space<vmem>>, %arg12: memref<2x1x128xf32, #tpu.memory_space<vmem>>, %arg13: memref<1x2xf32, #tpu.memory_space<vmem>>, %arg14: memref<1x32xf32, #tpu.memory_space<vmem>>) attributes {dimension_semantics = [], scalar_prefetch = 0 : i64, scratch_operands = 0 : i64, tpu.core_type = #tpu.core_type<tc>} {
    %c0 = arith.constant 0 : index
    %c0_0 = arith.constant 0 : index
    %0 = vector.load %arg0[%c0, %c0_0] : memref<128x32xf32, #tpu.memory_space<vmem>>, vector<128x32xf32>
    %c0_1 = arith.constant 0 : index
    %c0_2 = arith.constant 0 : index
    %1 = vector.load %arg2[%c0_1, %c0_2] : memref<2x32xf32, #tpu.memory_space<vmem>>, vector<1x32xf32>
    %c1 = arith.constant 1 : index
    %c0_3 = arith.constant 0 : index
    %2 = vector.load %arg2[%c1, %c0_3] : memref<2x32xf32, #tpu.memory_space<vmem>>, vector<1x32xf32>
    %cst = arith.constant dense<0.000000e+00> : vector<128xf32>
    %3 = vector.multi_reduction <add>, %0, %cst [1] : vector<128x32xf32> to vector<128xf32>
    %4 = vector.shape_cast %3 : vector<128xf32> to vector<128x1xf32>
    %cst_4 = arith.constant 3.200000e+01 : f32
    %5 = vector.broadcast %cst_4 : f32 to vector<128x1xf32>
    %6 = arith.divf %4, %5 : vector<128x1xf32>
    %7 = vector.broadcast %6 : vector<128x1xf32> to vector<128x32xf32>
    %8 = arith.subf %0, %7 : vector<128x32xf32>
    %9 = arith.mulf %8, %8 : vector<128x32xf32>
    %cst_5 = arith.constant dense<0.000000e+00> : vector<128xf32>
    %10 = vector.multi_reduction <add>, %9, %cst_5 [1] : vector<128x32xf32> to vector<128xf32>
    %11 = vector.shape_cast %10 : vector<128xf32> to vector<128x1xf32>
    %cst_6 = arith.constant 3.200000e+01 : f32
    %12 = vector.broadcast %cst_6 : f32 to vector<128x1xf32>
    %13 = arith.divf %11, %12 : vector<128x1xf32>
    %14 = vector.broadcast %6 : vector<128x1xf32> to vector<128x32xf32>
    %15 = arith.subf %0, %14 : vector<128x32xf32>
    %cst_7 = arith.constant 9.99999996E-13 : f32
    %16 = vector.broadcast %cst_7 : f32 to vector<128x1xf32>
    %17 = arith.addf %13, %16 : vector<128x1xf32>
    %18 = math.sqrt %17 : vector<128x1xf32>
    %19 = vector.broadcast %18 : vector<128x1xf32> to vector<128x32xf32>
    %20 = arith.divf %15, %19 : vector<128x32xf32>
    %21 = vector.broadcast %1 : vector<1x32xf32> to vector<128x32xf32>
    %22 = arith.mulf %20, %21 : vector<128x32xf32>
    %23 = vector.broadcast %2 : vector<1x32xf32> to vector<128x32xf32>
    %24 = arith.addf %22, %23 : vector<128x32xf32>
    %cst_8 = arith.constant 0.000000e+00 : f32
    %25 = vector.broadcast %cst_8 : f32 to vector<128x32xf32>
    %26 = arith.cmpf ogt, %24, %25 : vector<128x32xf32>
    %27 = math.exp %24 : vector<128x32xf32>
    %cst_9 = arith.constant 1.000000e+00 : f32
    %28 = vector.broadcast %cst_9 : f32 to vector<128x32xf32>
    %29 = arith.subf %27, %28 : vector<128x32xf32>
    %30 = arith.select %26, %24, %29 : vector<128x32xi1>, vector<128x32xf32>
    %31 = tpu.iota {dimensions = array<i32: 0>} : vector<128x32xi32>
    %c64_i32 = arith.constant 64 : i32
    %32 = vector.broadcast %c64_i32 : i32 to vector<128x32xi32>
    %33 = arith.cmpi sge, %31, %32 : vector<128x32xi32>
    %cst_10 = arith.constant 1.000000e+00 : f32
    %cst_11 = arith.constant 0.000000e+00 : f32
    %34 = vector.broadcast %cst_10 : f32 to vector<128x32xf32>
    %35 = vector.broadcast %cst_11 : f32 to vector<128x32xf32>
    %36 = arith.select %33, %34, %35 : vector<128x32xi1>, vector<128x32xf32>
    %37 = arith.addf %30, %36 : vector<128x32xf32>
    %38 = vector.extract_strided_slice %37 {offsets = [0, 0], sizes = [32, 32], strides = [1, 1]} : vector<128x32xf32> to vector<32x32xf32>
    %39 = vector.extract_strided_slice %37 {offsets = [32, 0], sizes = [32, 32], strides = [1, 1]} : vector<128x32xf32> to vector<32x32xf32>
    %40 = vector.extract_strided_slice %37 {offsets = [64, 0], sizes = [32, 32], strides = [1, 1]} : vector<128x32xf32> to vector<32x32xf32>
    %41 = vector.extract_strided_slice %37 {offsets = [96, 0], sizes = [32, 32], strides = [1, 1]} : vector<128x32xf32> to vector<32x32xf32>
    %c0_12 = arith.constant 0 : index
    %c0_13 = arith.constant 0 : index
    %42 = vector.load %arg1[%c0_12, %c0_13] : memref<32x32xf32, #tpu.memory_space<vmem>>, vector<32x32xf32>
    %43 = tpu.iota {dimensions = array<i32: 1>} : vector<1x32xi32>
    %c0_i32 = arith.constant 0 : i32
    %44 = vector.broadcast %c0_i32 : i32 to vector<1x32xi32>
    %45 = arith.cmpi sge, %43, %44 : vector<1x32xi32>
    %c16_i32 = arith.constant 16 : i32
    %46 = vector.broadcast %c16_i32 : i32 to vector<1x32xi32>
    %47 = arith.cmpi slt, %43, %46 : vector<1x32xi32>
    %48 = arith.andi %45, %47 : vector<1x32xi1>
    %49 = arith.extui %48 : vector<1x32xi1> to vector<1x32xi32>
    %50 = arith.sitofp %49 : vector<1x32xi32> to vector<1x32xf32>
    %c16_i32_14 = arith.constant 16 : i32
    %51 = vector.broadcast %c16_i32_14 : i32 to vector<1x32xi32>
    %52 = arith.cmpi sge, %43, %51 : vector<1x32xi32>
    %c32_i32 = arith.constant 32 : i32
    %53 = vector.broadcast %c32_i32 : i32 to vector<1x32xi32>
    %54 = arith.cmpi slt, %43, %53 : vector<1x32xi32>
    %55 = arith.andi %52, %54 : vector<1x32xi1>
    %56 = arith.extui %55 : vector<1x32xi1> to vector<1x32xi32>
    %57 = arith.sitofp %56 : vector<1x32xi32> to vector<1x32xf32>
    %c0_15 = arith.constant 0 : index
    %c0_16 = arith.constant 0 : index
    %c0_17 = arith.constant 0 : index
    %58 = vector.load %arg11[%c0_15, %c0_16, %c0_17] : memref<2x13x32xf32, #tpu.memory_space<vmem>>, vector<1x13x32xf32>
    %59 = vector.shape_cast %58 : vector<1x13x32xf32> to vector<13x32xf32>
    %60 = vector.extract_strided_slice %59 {offsets = [0, 0], sizes = [1, 32], strides = [1, 1]} : vector<13x32xf32> to vector<1x32xf32>
    %61 = vector.extract_strided_slice %59 {offsets = [1, 0], sizes = [1, 32], strides = [1, 1]} : vector<13x32xf32> to vector<1x32xf32>
    %62 = vector.extract_strided_slice %59 {offsets = [2, 0], sizes = [1, 32], strides = [1, 1]} : vector<13x32xf32> to vector<1x32xf32>
    %63 = vector.extract_strided_slice %59 {offsets = [3, 0], sizes = [1, 32], strides = [1, 1]} : vector<13x32xf32> to vector<1x32xf32>
    %64 = vector.extract_strided_slice %59 {offsets = [4, 0], sizes = [1, 32], strides = [1, 1]} : vector<13x32xf32> to vector<1x32xf32>
    %65 = vector.extract_strided_slice %59 {offsets = [5, 0], sizes = [1, 32], strides = [1, 1]} : vector<13x32xf32> to vector<1x32xf32>
    %66 = vector.extract_strided_slice %59 {offsets = [6, 0], sizes = [1, 32], strides = [1, 1]} : vector<13x32xf32> to vector<1x32xf32>
    %67 = vector.extract_strided_slice %59 {offsets = [7, 0], sizes = [1, 32], strides = [1, 1]} : vector<13x32xf32> to vector<1x32xf32>
    %68 = vector.extract_strided_slice %59 {offsets = [8, 0], sizes = [1, 32], strides = [1, 1]} : vector<13x32xf32> to vector<1x32xf32>
    %69 = vector.extract_strided_slice %59 {offsets = [9, 0], sizes = [1, 32], strides = [1, 1]} : vector<13x32xf32> to vector<1x32xf32>
    %70 = vector.extract_strided_slice %59 {offsets = [10, 0], sizes = [1, 32], strides = [1, 1]} : vector<13x32xf32> to vector<1x32xf32>
    %71 = vector.extract_strided_slice %59 {offsets = [11, 0], sizes = [1, 32], strides = [1, 1]} : vector<13x32xf32> to vector<1x32xf32>
    %72 = vector.extract_strided_slice %59 {offsets = [12, 0], sizes = [1, 32], strides = [1, 1]} : vector<13x32xf32> to vector<1x32xf32>
    %c0_18 = arith.constant 0 : index
    %c0_19 = arith.constant 0 : index
    %c0_20 = arith.constant 0 : index
    %73 = vector.load %arg12[%c0_18, %c0_19, %c0_20] : memref<2x1x128xf32, #tpu.memory_space<vmem>>, vector<1x1x128xf32>
    %74 = vector.shape_cast %73 : vector<1x1x128xf32> to vector<1x128xf32>
    %c0_21 = arith.constant 0 : index
    %c0_22 = arith.constant 0 : index
    %c0_23 = arith.constant 0 : index
    %75 = vector.load %arg3[%c0_21, %c0_22, %c0_23] : memref<2x32x32xf32, #tpu.memory_space<vmem>>, vector<1x32x32xf32>
    %76 = vector.shape_cast %75 : vector<1x32x32xf32> to vector<32x32xf32>
    %cst_24 = arith.constant dense<0.000000e+00> : vector<32x32xf32>
    %77 = tpu.matmul %38, %76, %cst_24 {dimension_numbers = #tpu.dot_dimension_numbers<[1], [0], [0], [1], [0, 0, 1, 1], [], []>} : vector<32x32xf32>, vector<32x32xf32>, vector<32x32xf32> -> vector<32x32xf32>
    %78 = vector.broadcast %60 : vector<1x32xf32> to vector<32x32xf32>
    %79 = arith.addf %77, %78 : vector<32x32xf32>
    %c0_25 = arith.constant 0 : index
    %c0_26 = arith.constant 0 : index
    %c0_27 = arith.constant 0 : index
    %80 = vector.load %arg4[%c0_25, %c0_26, %c0_27] : memref<2x32x64xf32, #tpu.memory_space<vmem>>, vector<1x32x64xf32>
    %81 = vector.shape_cast %80 : vector<1x32x64xf32> to vector<32x64xf32>
    %cst_28 = arith.constant dense<0.000000e+00> : vector<32x64xf32>
    %82 = tpu.matmul %39, %81, %cst_28 {dimension_numbers = #tpu.dot_dimension_numbers<[1], [0], [0], [1], [0, 0, 1, 1], [], []>} : vector<32x32xf32>, vector<32x64xf32>, vector<32x64xf32> -> vector<32x64xf32>
    %83 = vector.extract_strided_slice %82 {offsets = [0, 0], sizes = [32, 32], strides = [1, 1]} : vector<32x64xf32> to vector<32x32xf32>
    %84 = vector.broadcast %61 : vector<1x32xf32> to vector<32x32xf32>
    %85 = arith.addf %83, %84 : vector<32x32xf32>
    %86 = vector.extract_strided_slice %82 {offsets = [0, 32], sizes = [32, 32], strides = [1, 1]} : vector<32x64xf32> to vector<32x32xf32>
    %87 = vector.broadcast %62 : vector<1x32xf32> to vector<32x32xf32>
    %88 = arith.addf %86, %87 : vector<32x32xf32>
    %c0_29 = arith.constant 0 : index
    %c0_30 = arith.constant 0 : index
    %c0_31 = arith.constant 0 : index
    %89 = vector.load %arg5[%c0_29, %c0_30, %c0_31] : memref<2x32x32xf32, #tpu.memory_space<vmem>>, vector<1x32x32xf32>
    %90 = vector.shape_cast %89 : vector<1x32x32xf32> to vector<32x32xf32>
    %cst_32 = arith.constant dense<0.000000e+00> : vector<32x32xf32>
    %91 = tpu.matmul %40, %90, %cst_32 {dimension_numbers = #tpu.dot_dimension_numbers<[1], [0], [0], [1], [0, 0, 1, 1], [], []>} : vector<32x32xf32>, vector<32x32xf32>, vector<32x32xf32> -> vector<32x32xf32>
    %92 = vector.broadcast %63 : vector<1x32xf32> to vector<32x32xf32>
    %93 = arith.addf %91, %92 : vector<32x32xf32>
    %cst_33 = arith.constant 0.000000e+00 : f32
    %94 = vector.broadcast %cst_33 : f32 to vector<32x32xf32>
    %95 = arith.cmpf ogt, %93, %94 : vector<32x32xf32>
    %96 = math.exp %93 : vector<32x32xf32>
    %cst_34 = arith.constant 1.000000e+00 : f32
    %97 = vector.broadcast %cst_34 : f32 to vector<32x32xf32>
    %98 = arith.subf %96, %97 : vector<32x32xf32>
    %99 = arith.select %95, %93, %98 : vector<32x32xi1>, vector<32x32xf32>
    %cst_35 = arith.constant 1.000000e+00 : f32
    %100 = vector.broadcast %cst_35 : f32 to vector<32x32xf32>
    %101 = arith.addf %99, %100 : vector<32x32xf32>
    %c0_36 = arith.constant 0 : index
    %c0_37 = arith.constant 0 : index
    %c0_38 = arith.constant 0 : index
    %102 = vector.load %arg6[%c0_36, %c0_37, %c0_38] : memref<2x32x64xf32, #tpu.memory_space<vmem>>, vector<1x32x64xf32>
    %103 = vector.shape_cast %102 : vector<1x32x64xf32> to vector<32x64xf32>
    %cst_39 = arith.constant dense<0.000000e+00> : vector<32x64xf32>
    %104 = tpu.matmul %41, %103, %cst_39 {dimension_numbers = #tpu.dot_dimension_numbers<[1], [0], [0], [1], [0, 0, 1, 1], [], []>} : vector<32x32xf32>, vector<32x64xf32>, vector<32x64xf32> -> vector<32x64xf32>
    %105 = vector.extract_strided_slice %104 {offsets = [0, 0], sizes = [32, 32], strides = [1, 1]} : vector<32x64xf32> to vector<32x32xf32>
    %106 = vector.broadcast %64 : vector<1x32xf32> to vector<32x32xf32>
    %107 = arith.addf %105, %106 : vector<32x32xf32>
    %cst_40 = arith.constant 0.000000e+00 : f32
    %108 = vector.broadcast %cst_40 : f32 to vector<32x32xf32>
    %109 = arith.cmpf ogt, %107, %108 : vector<32x32xf32>
    %110 = math.exp %107 : vector<32x32xf32>
    %cst_41 = arith.constant 1.000000e+00 : f32
    %111 = vector.broadcast %cst_41 : f32 to vector<32x32xf32>
    %112 = arith.subf %110, %111 : vector<32x32xf32>
    %113 = arith.select %109, %107, %112 : vector<32x32xi1>, vector<32x32xf32>
    %cst_42 = arith.constant 1.000000e+00 : f32
    %114 = vector.broadcast %cst_42 : f32 to vector<32x32xf32>
    %115 = arith.addf %113, %114 : vector<32x32xf32>
    %116 = vector.extract_strided_slice %104 {offsets = [0, 32], sizes = [32, 32], strides = [1, 1]} : vector<32x64xf32> to vector<32x32xf32>
    %117 = vector.broadcast %65 : vector<1x32xf32> to vector<32x32xf32>
    %118 = arith.addf %116, %117 : vector<32x32xf32>
    %cst_43 = arith.constant 0.000000e+00 : f32
    %119 = vector.broadcast %cst_43 : f32 to vector<32x32xf32>
    %120 = arith.cmpf ogt, %118, %119 : vector<32x32xf32>
    %121 = math.exp %118 : vector<32x32xf32>
    %cst_44 = arith.constant 1.000000e+00 : f32
    %122 = vector.broadcast %cst_44 : f32 to vector<32x32xf32>
    %123 = arith.subf %121, %122 : vector<32x32xf32>
    %124 = arith.select %120, %118, %123 : vector<32x32xi1>, vector<32x32xf32>
    %cst_45 = arith.constant 1.000000e+00 : f32
    %125 = vector.broadcast %cst_45 : f32 to vector<32x32xf32>
    %126 = arith.addf %124, %125 : vector<32x32xf32>
    %127 = arith.mulf %79, %79 : vector<32x32xf32>
    %128 = arith.mulf %85, %85 : vector<32x32xf32>
    %cst_46 = arith.constant 1.000000e-24 : f32
    %129 = vector.broadcast %cst_46 : f32 to vector<32x32xf32>
    %130 = arith.maximumf %101, %129 : vector<32x32xf32>
    %131 = math.sqrt %130 : vector<32x32xf32>
    %cst_47 = arith.constant 1.000000e-24 : f32
    %132 = vector.broadcast %cst_47 : f32 to vector<32x32xf32>
    %133 = arith.maximumf %115, %132 : vector<32x32xf32>
    %134 = math.sqrt %133 : vector<32x32xf32>
    %cst_48 = arith.constant 0.000000e+00 : f32
    %135 = vector.broadcast %cst_48 : f32 to vector<32x32xf32>
    %cst_49 = arith.constant 0.000000e+00 : f32
    %136 = vector.broadcast %cst_49 : f32 to vector<32x32xf32>
    %137 = vector.broadcast %50 : vector<1x32xf32> to vector<32x32xf32>
    %138 = arith.mulf %127, %137 : vector<32x32xf32>
    %cst_50 = arith.constant dense<0.000000e+00> : vector<32xf32>
    %139 = vector.multi_reduction <add>, %138, %cst_50 [1] : vector<32x32xf32> to vector<32xf32>
    %140 = vector.shape_cast %139 : vector<32xf32> to vector<32x1xf32>
    %cst_51 = arith.constant dense<0.000000e+00> : vector<1x32xf32>
    %141 = tpu.matmul %50, %128, %cst_51 {dimension_numbers = #tpu.dot_dimension_numbers<[1], [1], [0], [0], [0, 0, 1, 0], [], []>} : vector<1x32xf32>, vector<32x32xf32>, vector<1x32xf32> -> vector<1x32xf32>
    %142 = vector.broadcast %50 : vector<1x32xf32> to vector<32x32xf32>
    %143 = arith.mulf %79, %142 : vector<32x32xf32>
    %cst_52 = arith.constant dense<0.000000e+00> : vector<32x32xf32>
    %144 = tpu.matmul %143, %85, %cst_52 {dimension_numbers = #tpu.dot_dimension_numbers<[1], [1], [0], [0], [0, 0, 1, 0], [], []>} : vector<32x32xf32>, vector<32x32xf32>, vector<32x32xf32> -> vector<32x32xf32>
    %cst_53 = arith.constant -2.000000e+00 : f32
    %145 = vector.broadcast %cst_53 : f32 to vector<32x32xf32>
    %146 = arith.mulf %145, %144 : vector<32x32xf32>
    %147 = vector.broadcast %140 : vector<32x1xf32> to vector<32x32xf32>
    %148 = arith.addf %146, %147 : vector<32x32xf32>
    %149 = vector.broadcast %141 : vector<1x32xf32> to vector<32x32xf32>
    %150 = arith.addf %148, %149 : vector<32x32xf32>
    %151 = vector.broadcast %50 : vector<1x32xf32> to vector<32x32xf32>
    %152 = arith.mulf %101, %151 : vector<32x32xf32>
    %cst_54 = arith.constant dense<0.000000e+00> : vector<32xf32>
    %153 = vector.multi_reduction <add>, %152, %cst_54 [1] : vector<32x32xf32> to vector<32xf32>
    %154 = vector.shape_cast %153 : vector<32xf32> to vector<32x1xf32>
    %cst_55 = arith.constant dense<0.000000e+00> : vector<1x32xf32>
    %155 = tpu.matmul %50, %115, %cst_55 {dimension_numbers = #tpu.dot_dimension_numbers<[1], [1], [0], [0], [0, 0, 1, 0], [], []>} : vector<1x32xf32>, vector<32x32xf32>, vector<1x32xf32> -> vector<1x32xf32>
    %156 = vector.broadcast %50 : vector<1x32xf32> to vector<32x32xf32>
    %157 = arith.mulf %131, %156 : vector<32x32xf32>
    %cst_56 = arith.constant dense<0.000000e+00> : vector<32x32xf32>
    %158 = tpu.matmul %157, %134, %cst_56 {dimension_numbers = #tpu.dot_dimension_numbers<[1], [1], [0], [0], [0, 0, 1, 0], [], []>} : vector<32x32xf32>, vector<32x32xf32>, vector<32x32xf32> -> vector<32x32xf32>
    %cst_57 = arith.constant -2.000000e+00 : f32
    %159 = vector.broadcast %cst_57 : f32 to vector<32x32xf32>
    %160 = arith.mulf %159, %158 : vector<32x32xf32>
    %161 = vector.broadcast %154 : vector<32x1xf32> to vector<32x32xf32>
    %162 = arith.addf %160, %161 : vector<32x32xf32>
    %163 = vector.broadcast %155 : vector<1x32xf32> to vector<32x32xf32>
    %164 = arith.addf %162, %163 : vector<32x32xf32>
    %165 = arith.addf %150, %164 : vector<32x32xf32>
    %cst_58 = arith.constant 0.000000e+00 : f32
    %166 = vector.broadcast %cst_58 : f32 to vector<32x32xf32>
    %167 = arith.subf %166, %165 : vector<32x32xf32>
    %cst_59 = arith.constant 2.500000e-01 : f32
    %168 = vector.broadcast %cst_59 : f32 to vector<32x32xf32>
    %169 = arith.mulf %167, %168 : vector<32x32xf32>
    %170 = arith.addf %169, %42 : vector<32x32xf32>
    %cst_60 = arith.constant dense<0xFF800000> : vector<32xf32>
    %171 = vector.multi_reduction <maximumf>, %170, %cst_60 [1] : vector<32x32xf32> to vector<32xf32>
    %172 = vector.shape_cast %171 : vector<32xf32> to vector<32x1xf32>
    %173 = vector.broadcast %172 : vector<32x1xf32> to vector<32x32xf32>
    %174 = arith.subf %170, %173 : vector<32x32xf32>
    %175 = math.exp %174 : vector<32x32xf32>
    %cst_61 = arith.constant dense<0.000000e+00> : vector<32xf32>
    %176 = vector.multi_reduction <add>, %175, %cst_61 [1] : vector<32x32xf32> to vector<32xf32>
    %177 = vector.shape_cast %176 : vector<32xf32> to vector<32x1xf32>
    %178 = tpu.reciprocal %177 {approx = true} : vector<32x1xf32> -> vector<32x1xf32>
    %179 = vector.broadcast %178 : vector<32x1xf32> to vector<32x32xf32>
    %180 = arith.mulf %175, %179 : vector<32x32xf32>
    %181 = vector.broadcast %50 : vector<1x32xf32> to vector<32x32xf32>
    %182 = arith.mulf %88, %181 : vector<32x32xf32>
    %cst_62 = arith.constant dense<0.000000e+00> : vector<32x32xf32>
    %183 = tpu.matmul %180, %182, %cst_62 {dimension_numbers = #tpu.dot_dimension_numbers<[1], [0], [0], [1], [0, 0, 1, 1], [], []>} : vector<32x32xf32>, vector<32x32xf32>, vector<32x32xf32> -> vector<32x32xf32>
    %184 = arith.addf %135, %183 : vector<32x32xf32>
    %185 = arith.mulf %180, %180 : vector<32x32xf32>
    %186 = vector.broadcast %50 : vector<1x32xf32> to vector<32x32xf32>
    %187 = arith.mulf %126, %186 : vector<32x32xf32>
    %cst_63 = arith.constant dense<0.000000e+00> : vector<32x32xf32>
    %188 = tpu.matmul %185, %187, %cst_63 {dimension_numbers = #tpu.dot_dimension_numbers<[1], [0], [0], [1], [0, 0, 1, 1], [], []>} : vector<32x32xf32>, vector<32x32xf32>, vector<32x32xf32> -> vector<32x32xf32>
    %189 = arith.addf %136, %188 : vector<32x32xf32>
    %190 = vector.broadcast %57 : vector<1x32xf32> to vector<32x32xf32>
    %191 = arith.mulf %127, %190 : vector<32x32xf32>
    %cst_64 = arith.constant dense<0.000000e+00> : vector<32xf32>
    %192 = vector.multi_reduction <add>, %191, %cst_64 [1] : vector<32x32xf32> to vector<32xf32>
    %193 = vector.shape_cast %192 : vector<32xf32> to vector<32x1xf32>
    %cst_65 = arith.constant dense<0.000000e+00> : vector<1x32xf32>
    %194 = tpu.matmul %57, %128, %cst_65 {dimension_numbers = #tpu.dot_dimension_numbers<[1], [1], [0], [0], [0, 0, 1, 0], [], []>} : vector<1x32xf32>, vector<32x32xf32>, vector<1x32xf32> -> vector<1x32xf32>
    %195 = vector.broadcast %57 : vector<1x32xf32> to vector<32x32xf32>
    %196 = arith.mulf %79, %195 : vector<32x32xf32>
    %cst_66 = arith.constant dense<0.000000e+00> : vector<32x32xf32>
    %197 = tpu.matmul %196, %85, %cst_66 {dimension_numbers = #tpu.dot_dimension_numbers<[1], [1], [0], [0], [0, 0, 1, 0], [], []>} : vector<32x32xf32>, vector<32x32xf32>, vector<32x32xf32> -> vector<32x32xf32>
    %cst_67 = arith.constant -2.000000e+00 : f32
    %198 = vector.broadcast %cst_67 : f32 to vector<32x32xf32>
    %199 = arith.mulf %198, %197 : vector<32x32xf32>
    %200 = vector.broadcast %193 : vector<32x1xf32> to vector<32x32xf32>
    %201 = arith.addf %199, %200 : vector<32x32xf32>
    %202 = vector.broadcast %194 : vector<1x32xf32> to vector<32x32xf32>
    %203 = arith.addf %201, %202 : vector<32x32xf32>
    %204 = vector.broadcast %57 : vector<1x32xf32> to vector<32x32xf32>
    %205 = arith.mulf %101, %204 : vector<32x32xf32>
    %cst_68 = arith.constant dense<0.000000e+00> : vector<32xf32>
    %206 = vector.multi_reduction <add>, %205, %cst_68 [1] : vector<32x32xf32> to vector<32xf32>
    %207 = vector.shape_cast %206 : vector<32xf32> to vector<32x1xf32>
    %cst_69 = arith.constant dense<0.000000e+00> : vector<1x32xf32>
    %208 = tpu.matmul %57, %115, %cst_69 {dimension_numbers = #tpu.dot_dimension_numbers<[1], [1], [0], [0], [0, 0, 1, 0], [], []>} : vector<1x32xf32>, vector<32x32xf32>, vector<1x32xf32> -> vector<1x32xf32>
    %209 = vector.broadcast %57 : vector<1x32xf32> to vector<32x32xf32>
    %210 = arith.mulf %131, %209 : vector<32x32xf32>
    %cst_70 = arith.constant dense<0.000000e+00> : vector<32x32xf32>
    %211 = tpu.matmul %210, %134, %cst_70 {dimension_numbers = #tpu.dot_dimension_numbers<[1], [1], [0], [0], [0, 0, 1, 0], [], []>} : vector<32x32xf32>, vector<32x32xf32>, vector<32x32xf32> -> vector<32x32xf32>
    %cst_71 = arith.constant -2.000000e+00 : f32
    %212 = vector.broadcast %cst_71 : f32 to vector<32x32xf32>
    %213 = arith.mulf %212, %211 : vector<32x32xf32>
    %214 = vector.broadcast %207 : vector<32x1xf32> to vector<32x32xf32>
    %215 = arith.addf %213, %214 : vector<32x32xf32>
    %216 = vector.broadcast %208 : vector<1x32xf32> to vector<32x32xf32>
    %217 = arith.addf %215, %216 : vector<32x32xf32>
    %218 = arith.addf %203, %217 : vector<32x32xf32>
    %cst_72 = arith.constant 0.000000e+00 : f32
    %219 = vector.broadcast %cst_72 : f32 to vector<32x32xf32>
    %220 = arith.subf %219, %218 : vector<32x32xf32>
    %cst_73 = arith.constant 2.500000e-01 : f32
    %221 = vector.broadcast %cst_73 : f32 to vector<32x32xf32>
    %222 = arith.mulf %220, %221 : vector<32x32xf32>
    %223 = arith.addf %222, %42 : vector<32x32xf32>
    %cst_74 = arith.constant dense<0xFF800000> : vector<32xf32>
    %224 = vector.multi_reduction <maximumf>, %223, %cst_74 [1] : vector<32x32xf32> to vector<32xf32>
    %225 = vector.shape_cast %224 : vector<32xf32> to vector<32x1xf32>
    %226 = vector.broadcast %225 : vector<32x1xf32> to vector<32x32xf32>
    %227 = arith.subf %223, %226 : vector<32x32xf32>
    %228 = math.exp %227 : vector<32x32xf32>
    %cst_75 = arith.constant dense<0.000000e+00> : vector<32xf32>
    %229 = vector.multi_reduction <add>, %228, %cst_75 [1] : vector<32x32xf32> to vector<32xf32>
    %230 = vector.shape_cast %229 : vector<32xf32> to vector<32x1xf32>
    %231 = tpu.reciprocal %230 {approx = true} : vector<32x1xf32> -> vector<32x1xf32>
    %232 = vector.broadcast %231 : vector<32x1xf32> to vector<32x32xf32>
    %233 = arith.mulf %228, %232 : vector<32x32xf32>
    %234 = vector.broadcast %57 : vector<1x32xf32> to vector<32x32xf32>
    %235 = arith.mulf %88, %234 : vector<32x32xf32>
    %cst_76 = arith.constant dense<0.000000e+00> : vector<32x32xf32>
    %236 = tpu.matmul %233, %235, %cst_76 {dimension_numbers = #tpu.dot_dimension_numbers<[1], [0], [0], [1], [0, 0, 1, 1], [], []>} : vector<32x32xf32>, vector<32x32xf32>, vector<32x32xf32> -> vector<32x32xf32>
    %237 = arith.addf %184, %236 : vector<32x32xf32>
    %238 = arith.mulf %233, %233 : vector<32x32xf32>
    %239 = vector.broadcast %57 : vector<1x32xf32> to vector<32x32xf32>
    %240 = arith.mulf %126, %239 : vector<32x32xf32>
    %cst_77 = arith.constant dense<0.000000e+00> : vector<32x32xf32>
    %241 = tpu.matmul %238, %240, %cst_77 {dimension_numbers = #tpu.dot_dimension_numbers<[1], [0], [0], [1], [0, 0, 1, 1], [], []>} : vector<32x32xf32>, vector<32x32xf32>, vector<32x32xf32> -> vector<32x32xf32>
    %242 = arith.addf %189, %241 : vector<32x32xf32>
    %c0_78 = arith.constant 0 : index
    %c0_79 = arith.constant 0 : index
    %c0_80 = arith.constant 0 : index
    %243 = vector.load %arg7[%c0_78, %c0_79, %c0_80] : memref<2x32x32xf32, #tpu.memory_space<vmem>>, vector<1x32x32xf32>
    %244 = vector.shape_cast %243 : vector<1x32x32xf32> to vector<32x32xf32>
    %cst_81 = arith.constant dense<0.000000e+00> : vector<32x32xf32>
    %245 = tpu.matmul %237, %244, %cst_81 {dimension_numbers = #tpu.dot_dimension_numbers<[1], [0], [0], [1], [0, 0, 1, 1], [], []>} : vector<32x32xf32>, vector<32x32xf32>, vector<32x32xf32> -> vector<32x32xf32>
    %246 = vector.broadcast %66 : vector<1x32xf32> to vector<32x32xf32>
    %247 = arith.addf %245, %246 : vector<32x32xf32>
    %248 = arith.addf %247, %38 : vector<32x32xf32>
    %c0_82 = arith.constant 0 : index
    %c0_83 = arith.constant 0 : index
    %c0_84 = arith.constant 0 : index
    %249 = vector.load %arg8[%c0_82, %c0_83, %c0_84] : memref<2x32x32xf32, #tpu.memory_space<vmem>>, vector<1x32x32xf32>
    %250 = vector.shape_cast %249 : vector<1x32x32xf32> to vector<32x32xf32>
    %cst_85 = arith.constant dense<0.000000e+00> : vector<32x32xf32>
    %251 = tpu.matmul %242, %250, %cst_85 {dimension_numbers = #tpu.dot_dimension_numbers<[1], [0], [0], [1], [0, 0, 1, 1], [], []>} : vector<32x32xf32>, vector<32x32xf32>, vector<32x32xf32> -> vector<32x32xf32>
    %252 = vector.broadcast %67 : vector<1x32xf32> to vector<32x32xf32>
    %253 = arith.addf %251, %252 : vector<32x32xf32>
    %254 = arith.addf %253, %40 : vector<32x32xf32>
    %255 = tpu.concatenate %248, %254 in 0 : vector<32x32xf32>, vector<32x32xf32> -> vector<64x32xf32>
    %cst_86 = arith.constant dense<0.000000e+00> : vector<64xf32>
    %256 = vector.multi_reduction <add>, %255, %cst_86 [1] : vector<64x32xf32> to vector<64xf32>
    %257 = vector.shape_cast %256 : vector<64xf32> to vector<64x1xf32>
    %cst_87 = arith.constant 3.200000e+01 : f32
    %258 = vector.broadcast %cst_87 : f32 to vector<64x1xf32>
    %259 = arith.divf %257, %258 : vector<64x1xf32>
    %260 = vector.broadcast %259 : vector<64x1xf32> to vector<64x32xf32>
    %261 = arith.subf %255, %260 : vector<64x32xf32>
    %262 = arith.mulf %261, %261 : vector<64x32xf32>
    %cst_88 = arith.constant dense<0.000000e+00> : vector<64xf32>
    %263 = vector.multi_reduction <add>, %262, %cst_88 [1] : vector<64x32xf32> to vector<64xf32>
    %264 = vector.shape_cast %263 : vector<64xf32> to vector<64x1xf32>
    %cst_89 = arith.constant 3.200000e+01 : f32
    %265 = vector.broadcast %cst_89 : f32 to vector<64x1xf32>
    %266 = arith.divf %264, %265 : vector<64x1xf32>
    %267 = vector.broadcast %259 : vector<64x1xf32> to vector<64x32xf32>
    %268 = arith.subf %255, %267 : vector<64x32xf32>
    %cst_90 = arith.constant 9.99999996E-13 : f32
    %269 = vector.broadcast %cst_90 : f32 to vector<64x1xf32>
    %270 = arith.addf %266, %269 : vector<64x1xf32>
    %271 = math.sqrt %270 : vector<64x1xf32>
    %272 = vector.broadcast %271 : vector<64x1xf32> to vector<64x32xf32>
    %273 = arith.divf %268, %272 : vector<64x32xf32>
    %274 = vector.broadcast %68 : vector<1x32xf32> to vector<64x32xf32>
    %275 = arith.mulf %273, %274 : vector<64x32xf32>
    %276 = vector.broadcast %69 : vector<1x32xf32> to vector<64x32xf32>
    %277 = arith.addf %275, %276 : vector<64x32xf32>
    %c0_91 = arith.constant 0 : index
    %c0_92 = arith.constant 0 : index
    %c0_93 = arith.constant 0 : index
    %278 = vector.load %arg9[%c0_91, %c0_92, %c0_93] : memref<2x32x128xf32, #tpu.memory_space<vmem>>, vector<1x32x128xf32>
    %279 = vector.shape_cast %278 : vector<1x32x128xf32> to vector<32x128xf32>
    %cst_94 = arith.constant dense<0.000000e+00> : vector<64x128xf32>
    %280 = tpu.matmul %277, %279, %cst_94 {dimension_numbers = #tpu.dot_dimension_numbers<[1], [0], [0], [1], [0, 0, 1, 1], [], []>} : vector<64x32xf32>, vector<32x128xf32>, vector<64x128xf32> -> vector<64x128xf32>
    %281 = vector.broadcast %74 : vector<1x128xf32> to vector<64x128xf32>
    %282 = arith.addf %280, %281 : vector<64x128xf32>
    %cst_95 = arith.constant 5.000000e-01 : f32
    %283 = vector.broadcast %cst_95 : f32 to vector<64x128xf32>
    %284 = arith.mulf %283, %282 : vector<64x128xf32>
    %cst_96 = arith.constant 4.471500e-02 : f32
    %285 = vector.broadcast %cst_96 : f32 to vector<64x128xf32>
    %286 = arith.mulf %285, %282 : vector<64x128xf32>
    %287 = arith.mulf %286, %282 : vector<64x128xf32>
    %288 = arith.mulf %287, %282 : vector<64x128xf32>
    %289 = arith.addf %282, %288 : vector<64x128xf32>
    %cst_97 = arith.constant 0.797884583 : f32
    %290 = vector.broadcast %cst_97 : f32 to vector<64x128xf32>
    %291 = arith.mulf %290, %289 : vector<64x128xf32>
    %292 = math.tanh %291 : vector<64x128xf32>
    %cst_98 = arith.constant 1.000000e+00 : f32
    %293 = vector.broadcast %cst_98 : f32 to vector<64x128xf32>
    %294 = arith.addf %293, %292 : vector<64x128xf32>
    %295 = arith.mulf %284, %294 : vector<64x128xf32>
    %c0_99 = arith.constant 0 : index
    %c0_100 = arith.constant 0 : index
    %c0_101 = arith.constant 0 : index
    %296 = vector.load %arg10[%c0_99, %c0_100, %c0_101] : memref<2x128x32xf32, #tpu.memory_space<vmem>>, vector<1x128x32xf32>
    %297 = vector.shape_cast %296 : vector<1x128x32xf32> to vector<128x32xf32>
    %cst_102 = arith.constant dense<0.000000e+00> : vector<64x32xf32>
    %298 = tpu.matmul %295, %297, %cst_102 {dimension_numbers = #tpu.dot_dimension_numbers<[1], [0], [0], [1], [0, 0, 1, 1], [], []>} : vector<64x128xf32>, vector<128x32xf32>, vector<64x32xf32> -> vector<64x32xf32>
    %299 = vector.broadcast %70 : vector<1x32xf32> to vector<64x32xf32>
    %300 = arith.addf %298, %299 : vector<64x32xf32>
    %301 = arith.addf %300, %277 : vector<64x32xf32>
    %cst_103 = arith.constant dense<0.000000e+00> : vector<64xf32>
    %302 = vector.multi_reduction <add>, %301, %cst_103 [1] : vector<64x32xf32> to vector<64xf32>
    %303 = vector.shape_cast %302 : vector<64xf32> to vector<64x1xf32>
    %cst_104 = arith.constant 3.200000e+01 : f32
    %304 = vector.broadcast %cst_104 : f32 to vector<64x1xf32>
    %305 = arith.divf %303, %304 : vector<64x1xf32>
    %306 = vector.broadcast %305 : vector<64x1xf32> to vector<64x32xf32>
    %307 = arith.subf %301, %306 : vector<64x32xf32>
    %308 = arith.mulf %307, %307 : vector<64x32xf32>
    %cst_105 = arith.constant dense<0.000000e+00> : vector<64xf32>
    %309 = vector.multi_reduction <add>, %308, %cst_105 [1] : vector<64x32xf32> to vector<64xf32>
    %310 = vector.shape_cast %309 : vector<64xf32> to vector<64x1xf32>
    %cst_106 = arith.constant 3.200000e+01 : f32
    %311 = vector.broadcast %cst_106 : f32 to vector<64x1xf32>
    %312 = arith.divf %310, %311 : vector<64x1xf32>
    %313 = vector.broadcast %305 : vector<64x1xf32> to vector<64x32xf32>
    %314 = arith.subf %301, %313 : vector<64x32xf32>
    %cst_107 = arith.constant 9.99999996E-13 : f32
    %315 = vector.broadcast %cst_107 : f32 to vector<64x1xf32>
    %316 = arith.addf %312, %315 : vector<64x1xf32>
    %317 = math.sqrt %316 : vector<64x1xf32>
    %318 = vector.broadcast %317 : vector<64x1xf32> to vector<64x32xf32>
    %319 = arith.divf %314, %318 : vector<64x32xf32>
    %320 = vector.broadcast %71 : vector<1x32xf32> to vector<64x32xf32>
    %321 = arith.mulf %319, %320 : vector<64x32xf32>
    %322 = vector.broadcast %72 : vector<1x32xf32> to vector<64x32xf32>
    %323 = arith.addf %321, %322 : vector<64x32xf32>
    %324 = vector.extract_strided_slice %323 {offsets = [0, 0], sizes = [32, 32], strides = [1, 1]} : vector<64x32xf32> to vector<32x32xf32>
    %325 = vector.extract_strided_slice %323 {offsets = [32, 0], sizes = [32, 32], strides = [1, 1]} : vector<64x32xf32> to vector<32x32xf32>
    %c1_108 = arith.constant 1 : index
    %c0_109 = arith.constant 0 : index
    %c0_110 = arith.constant 0 : index
    %326 = vector.load %arg11[%c1_108, %c0_109, %c0_110] : memref<2x13x32xf32, #tpu.memory_space<vmem>>, vector<1x13x32xf32>
    %327 = vector.shape_cast %326 : vector<1x13x32xf32> to vector<13x32xf32>
    %328 = vector.extract_strided_slice %327 {offsets = [0, 0], sizes = [1, 32], strides = [1, 1]} : vector<13x32xf32> to vector<1x32xf32>
    %329 = vector.extract_strided_slice %327 {offsets = [1, 0], sizes = [1, 32], strides = [1, 1]} : vector<13x32xf32> to vector<1x32xf32>
    %330 = vector.extract_strided_slice %327 {offsets = [2, 0], sizes = [1, 32], strides = [1, 1]} : vector<13x32xf32> to vector<1x32xf32>
    %331 = vector.extract_strided_slice %327 {offsets = [3, 0], sizes = [1, 32], strides = [1, 1]} : vector<13x32xf32> to vector<1x32xf32>
    %332 = vector.extract_strided_slice %327 {offsets = [4, 0], sizes = [1, 32], strides = [1, 1]} : vector<13x32xf32> to vector<1x32xf32>
    %333 = vector.extract_strided_slice %327 {offsets = [5, 0], sizes = [1, 32], strides = [1, 1]} : vector<13x32xf32> to vector<1x32xf32>
    %334 = vector.extract_strided_slice %327 {offsets = [6, 0], sizes = [1, 32], strides = [1, 1]} : vector<13x32xf32> to vector<1x32xf32>
    %335 = vector.extract_strided_slice %327 {offsets = [7, 0], sizes = [1, 32], strides = [1, 1]} : vector<13x32xf32> to vector<1x32xf32>
    %336 = vector.extract_strided_slice %327 {offsets = [8, 0], sizes = [1, 32], strides = [1, 1]} : vector<13x32xf32> to vector<1x32xf32>
    %337 = vector.extract_strided_slice %327 {offsets = [9, 0], sizes = [1, 32], strides = [1, 1]} : vector<13x32xf32> to vector<1x32xf32>
    %338 = vector.extract_strided_slice %327 {offsets = [10, 0], sizes = [1, 32], strides = [1, 1]} : vector<13x32xf32> to vector<1x32xf32>
    %339 = vector.extract_strided_slice %327 {offsets = [11, 0], sizes = [1, 32], strides = [1, 1]} : vector<13x32xf32> to vector<1x32xf32>
    %340 = vector.extract_strided_slice %327 {offsets = [12, 0], sizes = [1, 32], strides = [1, 1]} : vector<13x32xf32> to vector<1x32xf32>
    %c1_111 = arith.constant 1 : index
    %c0_112 = arith.constant 0 : index
    %c0_113 = arith.constant 0 : index
    %341 = vector.load %arg12[%c1_111, %c0_112, %c0_113] : memref<2x1x128xf32, #tpu.memory_space<vmem>>, vector<1x1x128xf32>
    %342 = vector.shape_cast %341 : vector<1x1x128xf32> to vector<1x128xf32>
    %c1_114 = arith.constant 1 : index
    %c0_115 = arith.constant 0 : index
    %c0_116 = arith.constant 0 : index
    %343 = vector.load %arg3[%c1_114, %c0_115, %c0_116] : memref<2x32x32xf32, #tpu.memory_space<vmem>>, vector<1x32x32xf32>
    %344 = vector.shape_cast %343 : vector<1x32x32xf32> to vector<32x32xf32>
    %cst_117 = arith.constant dense<0.000000e+00> : vector<32x32xf32>
    %345 = tpu.matmul %324, %344, %cst_117 {dimension_numbers = #tpu.dot_dimension_numbers<[1], [0], [0], [1], [0, 0, 1, 1], [], []>} : vector<32x32xf32>, vector<32x32xf32>, vector<32x32xf32> -> vector<32x32xf32>
    %346 = vector.broadcast %328 : vector<1x32xf32> to vector<32x32xf32>
    %347 = arith.addf %345, %346 : vector<32x32xf32>
    %c1_118 = arith.constant 1 : index
    %c0_119 = arith.constant 0 : index
    %c0_120 = arith.constant 0 : index
    %348 = vector.load %arg4[%c1_118, %c0_119, %c0_120] : memref<2x32x64xf32, #tpu.memory_space<vmem>>, vector<1x32x64xf32>
    %349 = vector.shape_cast %348 : vector<1x32x64xf32> to vector<32x64xf32>
    %cst_121 = arith.constant dense<0.000000e+00> : vector<32x64xf32>
    %350 = tpu.matmul %39, %349, %cst_121 {dimension_numbers = #tpu.dot_dimension_numbers<[1], [0], [0], [1], [0, 0, 1, 1], [], []>} : vector<32x32xf32>, vector<32x64xf32>, vector<32x64xf32> -> vector<32x64xf32>
    %351 = vector.extract_strided_slice %350 {offsets = [0, 0], sizes = [32, 32], strides = [1, 1]} : vector<32x64xf32> to vector<32x32xf32>
    %352 = vector.broadcast %329 : vector<1x32xf32> to vector<32x32xf32>
    %353 = arith.addf %351, %352 : vector<32x32xf32>
    %354 = vector.extract_strided_slice %350 {offsets = [0, 32], sizes = [32, 32], strides = [1, 1]} : vector<32x64xf32> to vector<32x32xf32>
    %355 = vector.broadcast %330 : vector<1x32xf32> to vector<32x32xf32>
    %356 = arith.addf %354, %355 : vector<32x32xf32>
    %c1_122 = arith.constant 1 : index
    %c0_123 = arith.constant 0 : index
    %c0_124 = arith.constant 0 : index
    %357 = vector.load %arg5[%c1_122, %c0_123, %c0_124] : memref<2x32x32xf32, #tpu.memory_space<vmem>>, vector<1x32x32xf32>
    %358 = vector.shape_cast %357 : vector<1x32x32xf32> to vector<32x32xf32>
    %cst_125 = arith.constant dense<0.000000e+00> : vector<32x32xf32>
    %359 = tpu.matmul %325, %358, %cst_125 {dimension_numbers = #tpu.dot_dimension_numbers<[1], [0], [0], [1], [0, 0, 1, 1], [], []>} : vector<32x32xf32>, vector<32x32xf32>, vector<32x32xf32> -> vector<32x32xf32>
    %360 = vector.broadcast %331 : vector<1x32xf32> to vector<32x32xf32>
    %361 = arith.addf %359, %360 : vector<32x32xf32>
    %cst_126 = arith.constant 0.000000e+00 : f32
    %362 = vector.broadcast %cst_126 : f32 to vector<32x32xf32>
    %363 = arith.cmpf ogt, %361, %362 : vector<32x32xf32>
    %364 = math.exp %361 : vector<32x32xf32>
    %cst_127 = arith.constant 1.000000e+00 : f32
    %365 = vector.broadcast %cst_127 : f32 to vector<32x32xf32>
    %366 = arith.subf %364, %365 : vector<32x32xf32>
    %367 = arith.select %363, %361, %366 : vector<32x32xi1>, vector<32x32xf32>
    %cst_128 = arith.constant 1.000000e+00 : f32
    %368 = vector.broadcast %cst_128 : f32 to vector<32x32xf32>
    %369 = arith.addf %367, %368 : vector<32x32xf32>
    %c1_129 = arith.constant 1 : index
    %c0_130 = arith.constant 0 : index
    %c0_131 = arith.constant 0 : index
    %370 = vector.load %arg6[%c1_129, %c0_130, %c0_131] : memref<2x32x64xf32, #tpu.memory_space<vmem>>, vector<1x32x64xf32>
    %371 = vector.shape_cast %370 : vector<1x32x64xf32> to vector<32x64xf32>
    %cst_132 = arith.constant dense<0.000000e+00> : vector<32x64xf32>
    %372 = tpu.matmul %41, %371, %cst_132 {dimension_numbers = #tpu.dot_dimension_numbers<[1], [0], [0], [1], [0, 0, 1, 1], [], []>} : vector<32x32xf32>, vector<32x64xf32>, vector<32x64xf32> -> vector<32x64xf32>
    %373 = vector.extract_strided_slice %372 {offsets = [0, 0], sizes = [32, 32], strides = [1, 1]} : vector<32x64xf32> to vector<32x32xf32>
    %374 = vector.broadcast %332 : vector<1x32xf32> to vector<32x32xf32>
    %375 = arith.addf %373, %374 : vector<32x32xf32>
    %cst_133 = arith.constant 0.000000e+00 : f32
    %376 = vector.broadcast %cst_133 : f32 to vector<32x32xf32>
    %377 = arith.cmpf ogt, %375, %376 : vector<32x32xf32>
    %378 = math.exp %375 : vector<32x32xf32>
    %cst_134 = arith.constant 1.000000e+00 : f32
    %379 = vector.broadcast %cst_134 : f32 to vector<32x32xf32>
    %380 = arith.subf %378, %379 : vector<32x32xf32>
    %381 = arith.select %377, %375, %380 : vector<32x32xi1>, vector<32x32xf32>
    %cst_135 = arith.constant 1.000000e+00 : f32
    %382 = vector.broadcast %cst_135 : f32 to vector<32x32xf32>
    %383 = arith.addf %381, %382 : vector<32x32xf32>
    %384 = vector.extract_strided_slice %372 {offsets = [0, 32], sizes = [32, 32], strides = [1, 1]} : vector<32x64xf32> to vector<32x32xf32>
    %385 = vector.broadcast %333 : vector<1x32xf32> to vector<32x32xf32>
    %386 = arith.addf %384, %385 : vector<32x32xf32>
    %cst_136 = arith.constant 0.000000e+00 : f32
    %387 = vector.broadcast %cst_136 : f32 to vector<32x32xf32>
    %388 = arith.cmpf ogt, %386, %387 : vector<32x32xf32>
    %389 = math.exp %386 : vector<32x32xf32>
    %cst_137 = arith.constant 1.000000e+00 : f32
    %390 = vector.broadcast %cst_137 : f32 to vector<32x32xf32>
    %391 = arith.subf %389, %390 : vector<32x32xf32>
    %392 = arith.select %388, %386, %391 : vector<32x32xi1>, vector<32x32xf32>
    %cst_138 = arith.constant 1.000000e+00 : f32
    %393 = vector.broadcast %cst_138 : f32 to vector<32x32xf32>
    %394 = arith.addf %392, %393 : vector<32x32xf32>
    %395 = arith.mulf %347, %347 : vector<32x32xf32>
    %396 = arith.mulf %353, %353 : vector<32x32xf32>
    %cst_139 = arith.constant 1.000000e-24 : f32
    %397 = vector.broadcast %cst_139 : f32 to vector<32x32xf32>
    %398 = arith.maximumf %369, %397 : vector<32x32xf32>
    %399 = math.sqrt %398 : vector<32x32xf32>
    %cst_140 = arith.constant 1.000000e-24 : f32
    %400 = vector.broadcast %cst_140 : f32 to vector<32x32xf32>
    %401 = arith.maximumf %383, %400 : vector<32x32xf32>
    %402 = math.sqrt %401 : vector<32x32xf32>
    %cst_141 = arith.constant 0.000000e+00 : f32
    %403 = vector.broadcast %cst_141 : f32 to vector<32x32xf32>
    %cst_142 = arith.constant 0.000000e+00 : f32
    %404 = vector.broadcast %cst_142 : f32 to vector<32x32xf32>
    %405 = vector.broadcast %50 : vector<1x32xf32> to vector<32x32xf32>
    %406 = arith.mulf %395, %405 : vector<32x32xf32>
    %cst_143 = arith.constant dense<0.000000e+00> : vector<32xf32>
    %407 = vector.multi_reduction <add>, %406, %cst_143 [1] : vector<32x32xf32> to vector<32xf32>
    %408 = vector.shape_cast %407 : vector<32xf32> to vector<32x1xf32>
    %cst_144 = arith.constant dense<0.000000e+00> : vector<1x32xf32>
    %409 = tpu.matmul %50, %396, %cst_144 {dimension_numbers = #tpu.dot_dimension_numbers<[1], [1], [0], [0], [0, 0, 1, 0], [], []>} : vector<1x32xf32>, vector<32x32xf32>, vector<1x32xf32> -> vector<1x32xf32>
    %410 = vector.broadcast %50 : vector<1x32xf32> to vector<32x32xf32>
    %411 = arith.mulf %347, %410 : vector<32x32xf32>
    %cst_145 = arith.constant dense<0.000000e+00> : vector<32x32xf32>
    %412 = tpu.matmul %411, %353, %cst_145 {dimension_numbers = #tpu.dot_dimension_numbers<[1], [1], [0], [0], [0, 0, 1, 0], [], []>} : vector<32x32xf32>, vector<32x32xf32>, vector<32x32xf32> -> vector<32x32xf32>
    %cst_146 = arith.constant -2.000000e+00 : f32
    %413 = vector.broadcast %cst_146 : f32 to vector<32x32xf32>
    %414 = arith.mulf %413, %412 : vector<32x32xf32>
    %415 = vector.broadcast %408 : vector<32x1xf32> to vector<32x32xf32>
    %416 = arith.addf %414, %415 : vector<32x32xf32>
    %417 = vector.broadcast %409 : vector<1x32xf32> to vector<32x32xf32>
    %418 = arith.addf %416, %417 : vector<32x32xf32>
    %419 = vector.broadcast %50 : vector<1x32xf32> to vector<32x32xf32>
    %420 = arith.mulf %369, %419 : vector<32x32xf32>
    %cst_147 = arith.constant dense<0.000000e+00> : vector<32xf32>
    %421 = vector.multi_reduction <add>, %420, %cst_147 [1] : vector<32x32xf32> to vector<32xf32>
    %422 = vector.shape_cast %421 : vector<32xf32> to vector<32x1xf32>
    %cst_148 = arith.constant dense<0.000000e+00> : vector<1x32xf32>
    %423 = tpu.matmul %50, %383, %cst_148 {dimension_numbers = #tpu.dot_dimension_numbers<[1], [1], [0], [0], [0, 0, 1, 0], [], []>} : vector<1x32xf32>, vector<32x32xf32>, vector<1x32xf32> -> vector<1x32xf32>
    %424 = vector.broadcast %50 : vector<1x32xf32> to vector<32x32xf32>
    %425 = arith.mulf %399, %424 : vector<32x32xf32>
    %cst_149 = arith.constant dense<0.000000e+00> : vector<32x32xf32>
    %426 = tpu.matmul %425, %402, %cst_149 {dimension_numbers = #tpu.dot_dimension_numbers<[1], [1], [0], [0], [0, 0, 1, 0], [], []>} : vector<32x32xf32>, vector<32x32xf32>, vector<32x32xf32> -> vector<32x32xf32>
    %cst_150 = arith.constant -2.000000e+00 : f32
    %427 = vector.broadcast %cst_150 : f32 to vector<32x32xf32>
    %428 = arith.mulf %427, %426 : vector<32x32xf32>
    %429 = vector.broadcast %422 : vector<32x1xf32> to vector<32x32xf32>
    %430 = arith.addf %428, %429 : vector<32x32xf32>
    %431 = vector.broadcast %423 : vector<1x32xf32> to vector<32x32xf32>
    %432 = arith.addf %430, %431 : vector<32x32xf32>
    %433 = arith.addf %418, %432 : vector<32x32xf32>
    %cst_151 = arith.constant 0.000000e+00 : f32
    %434 = vector.broadcast %cst_151 : f32 to vector<32x32xf32>
    %435 = arith.subf %434, %433 : vector<32x32xf32>
    %cst_152 = arith.constant 2.500000e-01 : f32
    %436 = vector.broadcast %cst_152 : f32 to vector<32x32xf32>
    %437 = arith.mulf %435, %436 : vector<32x32xf32>
    %438 = arith.addf %437, %42 : vector<32x32xf32>
    %cst_153 = arith.constant dense<0xFF800000> : vector<32xf32>
    %439 = vector.multi_reduction <maximumf>, %438, %cst_153 [1] : vector<32x32xf32> to vector<32xf32>
    %440 = vector.shape_cast %439 : vector<32xf32> to vector<32x1xf32>
    %441 = vector.broadcast %440 : vector<32x1xf32> to vector<32x32xf32>
    %442 = arith.subf %438, %441 : vector<32x32xf32>
    %443 = math.exp %442 : vector<32x32xf32>
    %cst_154 = arith.constant dense<0.000000e+00> : vector<32xf32>
    %444 = vector.multi_reduction <add>, %443, %cst_154 [1] : vector<32x32xf32> to vector<32xf32>
    %445 = vector.shape_cast %444 : vector<32xf32> to vector<32x1xf32>
    %446 = tpu.reciprocal %445 {approx = true} : vector<32x1xf32> -> vector<32x1xf32>
    %447 = vector.broadcast %446 : vector<32x1xf32> to vector<32x32xf32>
    %448 = arith.mulf %443, %447 : vector<32x32xf32>
    %449 = vector.broadcast %50 : vector<1x32xf32> to vector<32x32xf32>
    %450 = arith.mulf %356, %449 : vector<32x32xf32>
    %cst_155 = arith.constant dense<0.000000e+00> : vector<32x32xf32>
    %451 = tpu.matmul %448, %450, %cst_155 {dimension_numbers = #tpu.dot_dimension_numbers<[1], [0], [0], [1], [0, 0, 1, 1], [], []>} : vector<32x32xf32>, vector<32x32xf32>, vector<32x32xf32> -> vector<32x32xf32>
    %452 = arith.addf %403, %451 : vector<32x32xf32>
    %453 = arith.mulf %448, %448 : vector<32x32xf32>
    %454 = vector.broadcast %50 : vector<1x32xf32> to vector<32x32xf32>
    %455 = arith.mulf %394, %454 : vector<32x32xf32>
    %cst_156 = arith.constant dense<0.000000e+00> : vector<32x32xf32>
    %456 = tpu.matmul %453, %455, %cst_156 {dimension_numbers = #tpu.dot_dimension_numbers<[1], [0], [0], [1], [0, 0, 1, 1], [], []>} : vector<32x32xf32>, vector<32x32xf32>, vector<32x32xf32> -> vector<32x32xf32>
    %457 = arith.addf %404, %456 : vector<32x32xf32>
    %458 = vector.broadcast %57 : vector<1x32xf32> to vector<32x32xf32>
    %459 = arith.mulf %395, %458 : vector<32x32xf32>
    %cst_157 = arith.constant dense<0.000000e+00> : vector<32xf32>
    %460 = vector.multi_reduction <add>, %459, %cst_157 [1] : vector<32x32xf32> to vector<32xf32>
    %461 = vector.shape_cast %460 : vector<32xf32> to vector<32x1xf32>
    %cst_158 = arith.constant dense<0.000000e+00> : vector<1x32xf32>
    %462 = tpu.matmul %57, %396, %cst_158 {dimension_numbers = #tpu.dot_dimension_numbers<[1], [1], [0], [0], [0, 0, 1, 0], [], []>} : vector<1x32xf32>, vector<32x32xf32>, vector<1x32xf32> -> vector<1x32xf32>
    %463 = vector.broadcast %57 : vector<1x32xf32> to vector<32x32xf32>
    %464 = arith.mulf %347, %463 : vector<32x32xf32>
    %cst_159 = arith.constant dense<0.000000e+00> : vector<32x32xf32>
    %465 = tpu.matmul %464, %353, %cst_159 {dimension_numbers = #tpu.dot_dimension_numbers<[1], [1], [0], [0], [0, 0, 1, 0], [], []>} : vector<32x32xf32>, vector<32x32xf32>, vector<32x32xf32> -> vector<32x32xf32>
    %cst_160 = arith.constant -2.000000e+00 : f32
    %466 = vector.broadcast %cst_160 : f32 to vector<32x32xf32>
    %467 = arith.mulf %466, %465 : vector<32x32xf32>
    %468 = vector.broadcast %461 : vector<32x1xf32> to vector<32x32xf32>
    %469 = arith.addf %467, %468 : vector<32x32xf32>
    %470 = vector.broadcast %462 : vector<1x32xf32> to vector<32x32xf32>
    %471 = arith.addf %469, %470 : vector<32x32xf32>
    %472 = vector.broadcast %57 : vector<1x32xf32> to vector<32x32xf32>
    %473 = arith.mulf %369, %472 : vector<32x32xf32>
    %cst_161 = arith.constant dense<0.000000e+00> : vector<32xf32>
    %474 = vector.multi_reduction <add>, %473, %cst_161 [1] : vector<32x32xf32> to vector<32xf32>
    %475 = vector.shape_cast %474 : vector<32xf32> to vector<32x1xf32>
    %cst_162 = arith.constant dense<0.000000e+00> : vector<1x32xf32>
    %476 = tpu.matmul %57, %383, %cst_162 {dimension_numbers = #tpu.dot_dimension_numbers<[1], [1], [0], [0], [0, 0, 1, 0], [], []>} : vector<1x32xf32>, vector<32x32xf32>, vector<1x32xf32> -> vector<1x32xf32>
    %477 = vector.broadcast %57 : vector<1x32xf32> to vector<32x32xf32>
    %478 = arith.mulf %399, %477 : vector<32x32xf32>
    %cst_163 = arith.constant dense<0.000000e+00> : vector<32x32xf32>
    %479 = tpu.matmul %478, %402, %cst_163 {dimension_numbers = #tpu.dot_dimension_numbers<[1], [1], [0], [0], [0, 0, 1, 0], [], []>} : vector<32x32xf32>, vector<32x32xf32>, vector<32x32xf32> -> vector<32x32xf32>
    %cst_164 = arith.constant -2.000000e+00 : f32
    %480 = vector.broadcast %cst_164 : f32 to vector<32x32xf32>
    %481 = arith.mulf %480, %479 : vector<32x32xf32>
    %482 = vector.broadcast %475 : vector<32x1xf32> to vector<32x32xf32>
    %483 = arith.addf %481, %482 : vector<32x32xf32>
    %484 = vector.broadcast %476 : vector<1x32xf32> to vector<32x32xf32>
    %485 = arith.addf %483, %484 : vector<32x32xf32>
    %486 = arith.addf %471, %485 : vector<32x32xf32>
    %cst_165 = arith.constant 0.000000e+00 : f32
    %487 = vector.broadcast %cst_165 : f32 to vector<32x32xf32>
    %488 = arith.subf %487, %486 : vector<32x32xf32>
    %cst_166 = arith.constant 2.500000e-01 : f32
    %489 = vector.broadcast %cst_166 : f32 to vector<32x32xf32>
    %490 = arith.mulf %488, %489 : vector<32x32xf32>
    %491 = arith.addf %490, %42 : vector<32x32xf32>
    %cst_167 = arith.constant dense<0xFF800000> : vector<32xf32>
    %492 = vector.multi_reduction <maximumf>, %491, %cst_167 [1] : vector<32x32xf32> to vector<32xf32>
    %493 = vector.shape_cast %492 : vector<32xf32> to vector<32x1xf32>
    %494 = vector.broadcast %493 : vector<32x1xf32> to vector<32x32xf32>
    %495 = arith.subf %491, %494 : vector<32x32xf32>
    %496 = math.exp %495 : vector<32x32xf32>
    %cst_168 = arith.constant dense<0.000000e+00> : vector<32xf32>
    %497 = vector.multi_reduction <add>, %496, %cst_168 [1] : vector<32x32xf32> to vector<32xf32>
    %498 = vector.shape_cast %497 : vector<32xf32> to vector<32x1xf32>
    %499 = tpu.reciprocal %498 {approx = true} : vector<32x1xf32> -> vector<32x1xf32>
    %500 = vector.broadcast %499 : vector<32x1xf32> to vector<32x32xf32>
    %501 = arith.mulf %496, %500 : vector<32x32xf32>
    %502 = vector.broadcast %57 : vector<1x32xf32> to vector<32x32xf32>
    %503 = arith.mulf %356, %502 : vector<32x32xf32>
    %cst_169 = arith.constant dense<0.000000e+00> : vector<32x32xf32>
    %504 = tpu.matmul %501, %503, %cst_169 {dimension_numbers = #tpu.dot_dimension_numbers<[1], [0], [0], [1], [0, 0, 1, 1], [], []>} : vector<32x32xf32>, vector<32x32xf32>, vector<32x32xf32> -> vector<32x32xf32>
    %505 = arith.addf %452, %504 : vector<32x32xf32>
    %506 = arith.mulf %501, %501 : vector<32x32xf32>
    %507 = vector.broadcast %57 : vector<1x32xf32> to vector<32x32xf32>
    %508 = arith.mulf %394, %507 : vector<32x32xf32>
    %cst_170 = arith.constant dense<0.000000e+00> : vector<32x32xf32>
    %509 = tpu.matmul %506, %508, %cst_170 {dimension_numbers = #tpu.dot_dimension_numbers<[1], [0], [0], [1], [0, 0, 1, 1], [], []>} : vector<32x32xf32>, vector<32x32xf32>, vector<32x32xf32> -> vector<32x32xf32>
    %510 = arith.addf %457, %509 : vector<32x32xf32>
    %c1_171 = arith.constant 1 : index
    %c0_172 = arith.constant 0 : index
    %c0_173 = arith.constant 0 : index
    %511 = vector.load %arg7[%c1_171, %c0_172, %c0_173] : memref<2x32x32xf32, #tpu.memory_space<vmem>>, vector<1x32x32xf32>
    %512 = vector.shape_cast %511 : vector<1x32x32xf32> to vector<32x32xf32>
    %cst_174 = arith.constant dense<0.000000e+00> : vector<32x32xf32>
    %513 = tpu.matmul %505, %512, %cst_174 {dimension_numbers = #tpu.dot_dimension_numbers<[1], [0], [0], [1], [0, 0, 1, 1], [], []>} : vector<32x32xf32>, vector<32x32xf32>, vector<32x32xf32> -> vector<32x32xf32>
    %514 = vector.broadcast %334 : vector<1x32xf32> to vector<32x32xf32>
    %515 = arith.addf %513, %514 : vector<32x32xf32>
    %516 = arith.addf %515, %324 : vector<32x32xf32>
    %c1_175 = arith.constant 1 : index
    %c0_176 = arith.constant 0 : index
    %c0_177 = arith.constant 0 : index
    %517 = vector.load %arg8[%c1_175, %c0_176, %c0_177] : memref<2x32x32xf32, #tpu.memory_space<vmem>>, vector<1x32x32xf32>
    %518 = vector.shape_cast %517 : vector<1x32x32xf32> to vector<32x32xf32>
    %cst_178 = arith.constant dense<0.000000e+00> : vector<32x32xf32>
    %519 = tpu.matmul %510, %518, %cst_178 {dimension_numbers = #tpu.dot_dimension_numbers<[1], [0], [0], [1], [0, 0, 1, 1], [], []>} : vector<32x32xf32>, vector<32x32xf32>, vector<32x32xf32> -> vector<32x32xf32>
    %520 = vector.broadcast %335 : vector<1x32xf32> to vector<32x32xf32>
    %521 = arith.addf %519, %520 : vector<32x32xf32>
    %522 = arith.addf %521, %325 : vector<32x32xf32>
    %523 = tpu.concatenate %516, %522 in 0 : vector<32x32xf32>, vector<32x32xf32> -> vector<64x32xf32>
    %cst_179 = arith.constant dense<0.000000e+00> : vector<64xf32>
    %524 = vector.multi_reduction <add>, %523, %cst_179 [1] : vector<64x32xf32> to vector<64xf32>
    %525 = vector.shape_cast %524 : vector<64xf32> to vector<64x1xf32>
    %cst_180 = arith.constant 3.200000e+01 : f32
    %526 = vector.broadcast %cst_180 : f32 to vector<64x1xf32>
    %527 = arith.divf %525, %526 : vector<64x1xf32>
    %528 = vector.broadcast %527 : vector<64x1xf32> to vector<64x32xf32>
    %529 = arith.subf %523, %528 : vector<64x32xf32>
    %530 = arith.mulf %529, %529 : vector<64x32xf32>
    %cst_181 = arith.constant dense<0.000000e+00> : vector<64xf32>
    %531 = vector.multi_reduction <add>, %530, %cst_181 [1] : vector<64x32xf32> to vector<64xf32>
    %532 = vector.shape_cast %531 : vector<64xf32> to vector<64x1xf32>
    %cst_182 = arith.constant 3.200000e+01 : f32
    %533 = vector.broadcast %cst_182 : f32 to vector<64x1xf32>
    %534 = arith.divf %532, %533 : vector<64x1xf32>
    %535 = vector.broadcast %527 : vector<64x1xf32> to vector<64x32xf32>
    %536 = arith.subf %523, %535 : vector<64x32xf32>
    %cst_183 = arith.constant 9.99999996E-13 : f32
    %537 = vector.broadcast %cst_183 : f32 to vector<64x1xf32>
    %538 = arith.addf %534, %537 : vector<64x1xf32>
    %539 = math.sqrt %538 : vector<64x1xf32>
    %540 = vector.broadcast %539 : vector<64x1xf32> to vector<64x32xf32>
    %541 = arith.divf %536, %540 : vector<64x32xf32>
    %542 = vector.broadcast %336 : vector<1x32xf32> to vector<64x32xf32>
    %543 = arith.mulf %541, %542 : vector<64x32xf32>
    %544 = vector.broadcast %337 : vector<1x32xf32> to vector<64x32xf32>
    %545 = arith.addf %543, %544 : vector<64x32xf32>
    %c1_184 = arith.constant 1 : index
    %c0_185 = arith.constant 0 : index
    %c0_186 = arith.constant 0 : index
    %546 = vector.load %arg9[%c1_184, %c0_185, %c0_186] : memref<2x32x128xf32, #tpu.memory_space<vmem>>, vector<1x32x128xf32>
    %547 = vector.shape_cast %546 : vector<1x32x128xf32> to vector<32x128xf32>
    %cst_187 = arith.constant dense<0.000000e+00> : vector<64x128xf32>
    %548 = tpu.matmul %545, %547, %cst_187 {dimension_numbers = #tpu.dot_dimension_numbers<[1], [0], [0], [1], [0, 0, 1, 1], [], []>} : vector<64x32xf32>, vector<32x128xf32>, vector<64x128xf32> -> vector<64x128xf32>
    %549 = vector.broadcast %342 : vector<1x128xf32> to vector<64x128xf32>
    %550 = arith.addf %548, %549 : vector<64x128xf32>
    %cst_188 = arith.constant 5.000000e-01 : f32
    %551 = vector.broadcast %cst_188 : f32 to vector<64x128xf32>
    %552 = arith.mulf %551, %550 : vector<64x128xf32>
    %cst_189 = arith.constant 4.471500e-02 : f32
    %553 = vector.broadcast %cst_189 : f32 to vector<64x128xf32>
    %554 = arith.mulf %553, %550 : vector<64x128xf32>
    %555 = arith.mulf %554, %550 : vector<64x128xf32>
    %556 = arith.mulf %555, %550 : vector<64x128xf32>
    %557 = arith.addf %550, %556 : vector<64x128xf32>
    %cst_190 = arith.constant 0.797884583 : f32
    %558 = vector.broadcast %cst_190 : f32 to vector<64x128xf32>
    %559 = arith.mulf %558, %557 : vector<64x128xf32>
    %560 = math.tanh %559 : vector<64x128xf32>
    %cst_191 = arith.constant 1.000000e+00 : f32
    %561 = vector.broadcast %cst_191 : f32 to vector<64x128xf32>
    %562 = arith.addf %561, %560 : vector<64x128xf32>
    %563 = arith.mulf %552, %562 : vector<64x128xf32>
    %c1_192 = arith.constant 1 : index
    %c0_193 = arith.constant 0 : index
    %c0_194 = arith.constant 0 : index
    %564 = vector.load %arg10[%c1_192, %c0_193, %c0_194] : memref<2x128x32xf32, #tpu.memory_space<vmem>>, vector<1x128x32xf32>
    %565 = vector.shape_cast %564 : vector<1x128x32xf32> to vector<128x32xf32>
    %cst_195 = arith.constant dense<0.000000e+00> : vector<64x32xf32>
    %566 = tpu.matmul %563, %565, %cst_195 {dimension_numbers = #tpu.dot_dimension_numbers<[1], [0], [0], [1], [0, 0, 1, 1], [], []>} : vector<64x128xf32>, vector<128x32xf32>, vector<64x32xf32> -> vector<64x32xf32>
    %567 = vector.broadcast %338 : vector<1x32xf32> to vector<64x32xf32>
    %568 = arith.addf %566, %567 : vector<64x32xf32>
    %569 = arith.addf %568, %545 : vector<64x32xf32>
    %cst_196 = arith.constant dense<0.000000e+00> : vector<64xf32>
    %570 = vector.multi_reduction <add>, %569, %cst_196 [1] : vector<64x32xf32> to vector<64xf32>
    %571 = vector.shape_cast %570 : vector<64xf32> to vector<64x1xf32>
    %cst_197 = arith.constant 3.200000e+01 : f32
    %572 = vector.broadcast %cst_197 : f32 to vector<64x1xf32>
    %573 = arith.divf %571, %572 : vector<64x1xf32>
    %574 = vector.broadcast %573 : vector<64x1xf32> to vector<64x32xf32>
    %575 = arith.subf %569, %574 : vector<64x32xf32>
    %576 = arith.mulf %575, %575 : vector<64x32xf32>
    %cst_198 = arith.constant dense<0.000000e+00> : vector<64xf32>
    %577 = vector.multi_reduction <add>, %576, %cst_198 [1] : vector<64x32xf32> to vector<64xf32>
    %578 = vector.shape_cast %577 : vector<64xf32> to vector<64x1xf32>
    %cst_199 = arith.constant 3.200000e+01 : f32
    %579 = vector.broadcast %cst_199 : f32 to vector<64x1xf32>
    %580 = arith.divf %578, %579 : vector<64x1xf32>
    %581 = vector.broadcast %573 : vector<64x1xf32> to vector<64x32xf32>
    %582 = arith.subf %569, %581 : vector<64x32xf32>
    %cst_200 = arith.constant 9.99999996E-13 : f32
    %583 = vector.broadcast %cst_200 : f32 to vector<64x1xf32>
    %584 = arith.addf %580, %583 : vector<64x1xf32>
    %585 = math.sqrt %584 : vector<64x1xf32>
    %586 = vector.broadcast %585 : vector<64x1xf32> to vector<64x32xf32>
    %587 = arith.divf %582, %586 : vector<64x32xf32>
    %588 = vector.broadcast %339 : vector<1x32xf32> to vector<64x32xf32>
    %589 = arith.mulf %587, %588 : vector<64x32xf32>
    %590 = vector.broadcast %340 : vector<1x32xf32> to vector<64x32xf32>
    %591 = arith.addf %589, %590 : vector<64x32xf32>
    %592 = vector.extract_strided_slice %591 {offsets = [0, 0], sizes = [32, 32], strides = [1, 1]} : vector<64x32xf32> to vector<32x32xf32>
    %593 = vector.extract_strided_slice %591 {offsets = [32, 0], sizes = [32, 32], strides = [1, 1]} : vector<64x32xf32> to vector<32x32xf32>
    %594 = arith.subf %592, %38 : vector<32x32xf32>
    %cst_201 = arith.constant 1.000000e-24 : f32
    %595 = vector.broadcast %cst_201 : f32 to vector<32x32xf32>
    %596 = arith.maximumf %593, %595 : vector<32x32xf32>
    %597 = math.sqrt %596 : vector<32x32xf32>
    %cst_202 = arith.constant 1.000000e-24 : f32
    %598 = vector.broadcast %cst_202 : f32 to vector<32x32xf32>
    %599 = arith.maximumf %40, %598 : vector<32x32xf32>
    %600 = math.sqrt %599 : vector<32x32xf32>
    %601 = arith.subf %597, %600 : vector<32x32xf32>
    %602 = arith.mulf %594, %594 : vector<32x32xf32>
    %603 = arith.mulf %601, %601 : vector<32x32xf32>
    %604 = arith.addf %602, %603 : vector<32x32xf32>
    %cst_203 = arith.constant 1.000000e+00 : f32
    %605 = vector.broadcast %cst_203 : f32 to vector<1x32xf32>
    %cst_204 = arith.constant dense<0.000000e+00> : vector<1x32xf32>
    %606 = tpu.matmul %605, %604, %cst_204 {dimension_numbers = #tpu.dot_dimension_numbers<[1], [1], [0], [0], [0, 0, 1, 0], [], []>} : vector<1x32xf32>, vector<32x32xf32>, vector<1x32xf32> -> vector<1x32xf32>
    %c0_205 = arith.constant 0 : index
    %c0_206 = arith.constant 0 : index
    %607 = vector.load %arg13[%c0_205, %c0_206] : memref<1x2xf32, #tpu.memory_space<vmem>>, vector<1x2xf32>
    %608 = vector.extract_strided_slice %607 {offsets = [0, 0], sizes = [1, 1], strides = [1, 1]} : vector<1x2xf32> to vector<1x1xf32>
    %609 = vector.broadcast %608 : vector<1x1xf32> to vector<1x32xf32>
    %610 = arith.mulf %606, %609 : vector<1x32xf32>
    %611 = vector.extract_strided_slice %607 {offsets = [0, 1], sizes = [1, 1], strides = [1, 1]} : vector<1x2xf32> to vector<1x1xf32>
    %612 = vector.broadcast %611 : vector<1x1xf32> to vector<1x32xf32>
    %613 = arith.addf %610, %612 : vector<1x32xf32>
    %cst_207 = arith.constant 0.000000e+00 : f32
    %614 = vector.broadcast %cst_207 : f32 to vector<1x32xf32>
    %615 = arith.subf %614, %613 : vector<1x32xf32>
    %616 = math.exp %615 : vector<1x32xf32>
    %cst_208 = arith.constant 1.000000e+00 : f32
    %617 = vector.broadcast %cst_208 : f32 to vector<1x32xf32>
    %618 = arith.addf %617, %616 : vector<1x32xf32>
    %cst_209 = arith.constant 1.000000e+00 : f32
    %619 = vector.broadcast %cst_209 : f32 to vector<1x32xf32>
    %620 = arith.divf %619, %618 : vector<1x32xf32>
    %c0_210 = arith.constant 0 : index
    %c0_211 = arith.constant 0 : index
    %621 = vector.load %arg14[%c0_210, %c0_211] : memref<1x32xf32, #tpu.memory_space<vmem>>, vector<1x32xf32>
    tpu.vector_store %arg14[%c0_210, %c0_211], %620 {strides = array<i32>} : memref<1x32xf32, #tpu.memory_space<vmem>>, vector<1x32xf32>,
    return
  }
}

</mosaic_0001>

<llo_original>
// kernel: tpu_custom_call.1
$region0: #{tpu_custom_call.1}
  #allocation0 [shape = 'u32[]', space=smem, size = 0x4, offset = 0x4, fixed_abs, tag = 'smem constant byte address 0x4 - core index']
  #allocation1 [shape = 'u32[72,128]{1,0:T(1,128)}', space=vmem, size = 0x9000, scoped, tag = 'internal scratch']
  %s0 = inlined_call_operand.vmem [shape: f32[128,32], index: 0, kind: input, shape index: {}]
  %s1 = inlined_call_operand.vmem [shape: f32[32,32], index: 1, kind: input, shape index: {}]
  %s2 = inlined_call_operand.vmem [shape: f32[2,32], index: 2, kind: input, shape index: {}]
  %s3 = inlined_call_operand.vmem [shape: f32[2,32,32], index: 3, kind: input, shape index: {}]
  %s4 = inlined_call_operand.vmem [shape: f32[2,32,64], index: 4, kind: input, shape index: {}]
  %s5 = inlined_call_operand.vmem [shape: f32[2,32,32], index: 5, kind: input, shape index: {}]
  %s6 = inlined_call_operand.vmem [shape: f32[2,32,64], index: 6, kind: input, shape index: {}]
  %s7 = inlined_call_operand.vmem [shape: f32[2,32,32], index: 7, kind: input, shape index: {}]
  %s8 = inlined_call_operand.vmem [shape: f32[2,32,32], index: 8, kind: input, shape index: {}]
  %s9 = inlined_call_operand.hbm [shape: f32[2,32,128], index: 9, kind: input, shape index: {}]
  %s10 = inlined_call_operand.vmem [shape: f32[2,128,32], index: 10, kind: input, shape index: {}]
  %s11 = inlined_call_operand.vmem [shape: f32[2,13,32], index: 11, kind: input, shape index: {}]
  %s12 = inlined_call_operand.vmem [shape: f32[2,1,128], index: 12, kind: input, shape index: {}]
  %s13 = inlined_call_operand.vmem [shape: f32[1,2], index: 13, kind: input, shape index: {}]
  %s14 = inlined_call_operand.hbm [shape: f32[1,32], index: 14, kind: output, shape index: {}]
  %s15 = sld [smem:[#allocation0]]
  $region70: #{tpu_custom_call.1} parent=0
    _
  %s17 = ssub.s32 1, %s15
  %s18 = scalar_select 0, %s17, %s15
  $region1: #{tpu_custom_call.1} parent=0
    #allocation2 [shape = 'u8[32768]{0}', space=vmem, size = 0x8000, scoped, tag = 'input window, operand 9, single buffered']
    #allocation3 [shape = 's32[1]{0}', space=sflag, size = 0x4, scoped, tag = 'scoped memory for tpu_custom_call.1']
    #allocation4 [shape = 's32[1]{0}', space=sflag, size = 0x4, scoped, tag = 'scoped memory for tpu_custom_call.1']
    #allocation5 [shape = 'u8[512]{0}', space=vmem, size = 0x400, scoped, tag = 'output window, operand 0, single buffered']
    %19 = vsyncpa [#allocation3], 0
    %20 = vsyncpa [#allocation4], 0
    // Predicated region
    $region2: #{tpu_custom_call.1} parent=1 // pred_check
      _
    $region3: #{tpu_custom_call.1} parent=1 // pred_check_branch
      %22 = sbr.rel (0) target = $region5
    $region4: #{tpu_custom_call.1} parent=1 // pred_region
      _
    $region5: #{tpu_custom_call.1} parent=1 // pred_fallthru
      _
    // Predicated region
    $region6: #{tpu_custom_call.1} parent=1 // pred_check
      _
    $region7: #{tpu_custom_call.1} parent=1 // pred_check_branch
      %24 = sbr.rel (0) target = $region9
    $region8: #{tpu_custom_call.1} parent=1 // pred_region
      _
    $region9: #{tpu_custom_call.1} parent=1 // pred_fallthru
      _
    // Predicated region
    $region10: #{tpu_custom_call.1} parent=1 // pred_check
      _
    $region11: #{tpu_custom_call.1} parent=1 // pred_check_branch
      %26 = sbr.rel (0) target = $region13
    $region12: #{tpu_custom_call.1} parent=1 // pred_region
      _
    $region13: #{tpu_custom_call.1} parent=1 // pred_fallthru
      _
    // Predicated region
    $region14: #{tpu_custom_call.1} parent=1 // pred_check
      _
    $region15: #{tpu_custom_call.1} parent=1 // pred_check_branch
      %28 = sbr.rel (0) target = $region17
    $region16: #{tpu_custom_call.1} parent=1 // pred_region
      _
    $region17: #{tpu_custom_call.1} parent=1 // pred_fallthru
      _
    // Predicated region
    $region18: #{tpu_custom_call.1} parent=1 // pred_check
      _
    $region19: #{tpu_custom_call.1} parent=1 // pred_check_branch
      %30 = sbr.rel (0) target = $region21
    $region20: #{tpu_custom_call.1} parent=1 // pred_region
      _
    $region21: #{tpu_custom_call.1} parent=1 // pred_fallthru
      _
    // Predicated region
    $region22: #{tpu_custom_call.1} parent=1 // pred_check
      _
    $region23: #{tpu_custom_call.1} parent=1 // pred_check_branch
      %32 = sbr.rel (0) target = $region25
    $region24: #{tpu_custom_call.1} parent=1 // pred_region
      _
    $region25: #{tpu_custom_call.1} parent=1 // pred_fallthru
      _
    // Predicated region
    $region26: #{tpu_custom_call.1} parent=1 // pred_check
      _
    $region27: #{tpu_custom_call.1} parent=1 // pred_check_branch
      %34 = sbr.rel (0) target = $region29
    $region28: #{tpu_custom_call.1} parent=1 // pred_region
      _
    $region29: #{tpu_custom_call.1} parent=1 // pred_fallthru
      _
    // Predicated region
    $region30: #{tpu_custom_call.1} parent=1 // pred_check
      _
    $region31: #{tpu_custom_call.1} parent=1 // pred_check_branch
      %36 = sbr.rel (0) target = $region33
    $region32: #{tpu_custom_call.1} parent=1 // pred_region
      _
    $region33: #{tpu_custom_call.1} parent=1 // pred_fallthru
      _
    // Predicated region
    $region34: #{tpu_custom_call.1} parent=1 // pred_check
      _
    $region35: #{tpu_custom_call.1} parent=1 // pred_check_branch
      %38 = sbr.rel (0) target = $region37
    $region36: #{tpu_custom_call.1} parent=1 // pred_region
      _
    $region37: #{tpu_custom_call.1} parent=1 // pred_fallthru
      _
    // Predicated region
    $region38: #{tpu_custom_call.1} parent=1 // pred_check
      _
    $region39: #{tpu_custom_call.1} parent=1 // pred_check_branch
      %40 = sbr.rel (0) target = $region41
    $region40: #{tpu_custom_call.1} parent=1 // pred_region
      %42 = vsyncadd [#allocation3], 0
      %s43 = sshll.u32 %s9, 4
      %s44 = int_to_ptr.hbm [resolvable:$true] %s43
      %s45 = sshll.u32 [#allocation2], 4
      %s46 = int_to_ptr.vmem [resolvable:$true] %s45
      %51 = dma.hbm_to_vmem [thread:$0]  %s44, 1024, %s46, [#allocation3], 128, 128, 8
    $region41: #{tpu_custom_call.1} parent=1 // pred_fallthru
      _
    // Predicated region
    $region42: #{tpu_custom_call.1} parent=1 // pred_check
      _
    $region43: #{tpu_custom_call.1} parent=1 // pred_check_branch
      %53 = sbr.rel (0) target = $region45
    $region44: #{tpu_custom_call.1} parent=1 // pred_region
      _
    $region45: #{tpu_custom_call.1} parent=1 // pred_fallthru
      _
    // Predicated region
    $region46: #{tpu_custom_call.1} parent=1 // pred_check
      _
    $region47: #{tpu_custom_call.1} parent=1 // pred_check_branch
      %55 = sbr.rel (0) target = $region49
    $region48: #{tpu_custom_call.1} parent=1 // pred_region
      _
    $region49: #{tpu_custom_call.1} parent=1 // pred_fallthru
      _
    // Predicated region
    $region50: #{tpu_custom_call.1} parent=1 // pred_check
      _
    $region51: #{tpu_custom_call.1} parent=1 // pred_check_branch
      %57 = sbr.rel (0) target = $region53
    $region52: #{tpu_custom_call.1} parent=1 // pred_region
      _
    $region53: #{tpu_custom_call.1} parent=1 // pred_fallthru
      _
    // Predicated region
    $region54: #{tpu_custom_call.1} parent=1 // pred_check
      _
    $region55: #{tpu_custom_call.1} parent=1 // pred_check_branch
      %59 = sbr.rel (0) target = $region57
    $region56: #{tpu_custom_call.1} parent=1 // pred_region
      _
    $region57: #{tpu_custom_call.1} parent=1 // pred_fallthru
      _
    // Predicated region
    $region58: #{tpu_custom_call.1} parent=1 // pred_check
      _
    $region59: #{tpu_custom_call.1} parent=1 // pred_check_branch
      %61 = sbr.rel (0) target = $region61
    $region60: #{tpu_custom_call.1} parent=1 // pred_region
      %63 = dma.done [#allocation3], 1024
    $region61: #{tpu_custom_call.1} parent=1 // pred_fallthru
      _
    %v64 = vld [vmem:[%s0] sm:$0xff]
    %v65 = vld [vmem:[%s0 + $0x8] sm:$0xff]
    %v66 = vld [vmem:[%s0 + $0x10] sm:$0xff]
    %v67 = vld [vmem:[%s0 + $0x18] sm:$0xff]
    %v68 = vld [vmem:[%s0 + $0x20] sm:$0xff]
    %v69 = vld [vmem:[%s0 + $0x28] sm:$0xff]
    %v70 = vld [vmem:[%s0 + $0x30] sm:$0xff]
    %v71 = vld [vmem:[%s0 + $0x38] sm:$0xff]
    %v72 = vld [vmem:[%s0 + $0x40] sm:$0xff]
    %v73 = vld [vmem:[%s0 + $0x48] sm:$0xff]
    %v74 = vld [vmem:[%s0 + $0x50] sm:$0xff]
    %v75 = vld [vmem:[%s0 + $0x58] sm:$0xff]
    %v76 = vld [vmem:[%s0 + $0x60] sm:$0xff]
    %v77 = vld [vmem:[%s0 + $0x68] sm:$0xff]
    %v78 = vld [vmem:[%s0 + $0x70] sm:$0xff]
    %v79 = vld [vmem:[%s0 + $0x78] sm:$0xff]
    %v80 = vld [vmem:[%s2] sm:$0x1]
    %v81 = vld [vmem:[%s2 + $0x1] sm:$0x1]
    %vm82 = vcmask 261120
    %v83 = vsel %vm82, %v64, 0.0
    %84 = vadd.xlane.f32.xlu0 %v83
    %v85 = vpop.xlane.xlu0 %84
    %v86 = vsel %vm82, %v65, 0.0
    %87 = vadd.xlane.f32.xlu0 %v86
    %v88 = vpop.xlane.xlu0 %87
    %v89 = vsel %vm82, %v66, 0.0
    %90 = vadd.xlane.f32.xlu0 %v89
    %v91 = vpop.xlane.xlu0 %90
    %v92 = vsel %vm82, %v67, 0.0
    %93 = vadd.xlane.f32.xlu0 %v92
    %v94 = vpop.xlane.xlu0 %93
    %v95 = vsel %vm82, %v68, 0.0
    %96 = vadd.xlane.f32.xlu0 %v95
    %v97 = vpop.xlane.xlu0 %96
    %v98 = vsel %vm82, %v69, 0.0
    %99 = vadd.xlane.f32.xlu0 %v98
    %v100 = vpop.xlane.xlu0 %99
    %v101 = vsel %vm82, %v70, 0.0
    %102 = vadd.xlane.f32.xlu0 %v101
    %v103 = vpop.xlane.xlu0 %102
    %v104 = vsel %vm82, %v71, 0.0
    %105 = vadd.xlane.f32.xlu0 %v104
    %v106 = vpop.xlane.xlu0 %105
    %v107 = vsel %vm82, %v72, 0.0
    %108 = vadd.xlane.f32.xlu0 %v107
    %v109 = vpop.xlane.xlu0 %108
    %v110 = vsel %vm82, %v73, 0.0
    %111 = vadd.xlane.f32.xlu0 %v110
    %v112 = vpop.xlane.xlu0 %111
    %v113 = vsel %vm82, %v74, 0.0
    %114 = vadd.xlane.f32.xlu0 %v113
    %v115 = vpop.xlane.xlu0 %114
    %v116 = vsel %vm82, %v75, 0.0
    %117 = vadd.xlane.f32.xlu0 %v116
    %v118 = vpop.xlane.xlu0 %117
    %v119 = vsel %vm82, %v76, 0.0
    %120 = vadd.xlane.f32.xlu0 %v119
    %v121 = vpop.xlane.xlu0 %120
    %v122 = vsel %vm82, %v77, 0.0
    %123 = vadd.xlane.f32.xlu0 %v122
    %v124 = vpop.xlane.xlu0 %123
    %v125 = vsel %vm82, %v78, 0.0
    %126 = vadd.xlane.f32.xlu0 %v125
    %v127 = vpop.xlane.xlu0 %126
    %v128 = vsel %vm82, %v79, 0.0
    %129 = vadd.xlane.f32.xlu0 %v128
    %v130 = vpop.xlane.xlu0 %129
    %v131 = vrcp.pop 32.0
    %v132 = vmul.f32 32.0, %v131
    %v133 = vsub.f32 1.0, %v132
    %v134 = vmul.f32 %v131, %v133
    %v135 = vadd.f32 %v131, %v134
    %vm136 = vweird.f32 %v131
    %v137 = vsel %vm136, %v131, %v135
    %v138 = vmul.f32 %v85, %v137
    %v139 = vmul.f32 %v88, %v137
    %v140 = vmul.f32 %v91, %v137
    %v141 = vmul.f32 %v94, %v137
    %v142 = vmul.f32 %v97, %v137
    %v143 = vmul.f32 %v100, %v137
    %v144 = vmul.f32 %v103, %v137
    %v145 = vmul.f32 %v106, %v137
    %v146 = vmul.f32 %v109, %v137
    %v147 = vmul.f32 %v112, %v137
    %v148 = vmul.f32 %v115, %v137
    %v149 = vmul.f32 %v118, %v137
    %v150 = vmul.f32 %v121, %v137
    %v151 = vmul.f32 %v124, %v137
    %v152 = vmul.f32 %v127, %v137
    %v153 = vmul.f32 %v130, %v137
    %v154 = vsub.f32 %v64, %v138
    %v155 = vsub.f32 %v65, %v139
    %v156 = vsub.f32 %v66, %v140
    %v157 = vsub.f32 %v67, %v141
    %v158 = vsub.f32 %v68, %v142
    %v159 = vsub.f32 %v69, %v143
    %v160 = vsub.f32 %v70, %v144
    %v161 = vsub.f32 %v71, %v145
    %v162 = vsub.f32 %v72, %v146
    %v163 = vsub.f32 %v73, %v147
    %v164 = vsub.f32 %v74, %v148
    %v165 = vsub.f32 %v75, %v149
    %v166 = vsub.f32 %v76, %v150
    %v167 = vsub.f32 %v77, %v151
    %v168 = vsub.f32 %v78, %v152
    %v169 = vsub.f32 %v79, %v153
    %v170 = vmul.f32 %v154, %v154
    %v171 = vmul.f32 %v155, %v155
    %v172 = vmul.f32 %v156, %v156
    %v173 = vmul.f32 %v157, %v157
    %v174 = vmul.f32 %v158, %v158
    %v175 = vmul.f32 %v159, %v159
    %v176 = vmul.f32 %v160, %v160
    %v177 = vmul.f32 %v161, %v161
    %v178 = vmul.f32 %v162, %v162
    %v179 = vmul.f32 %v163, %v163
    %v180 = vmul.f32 %v164, %v164
    %v181 = vmul.f32 %v165, %v165
    %v182 = vmul.f32 %v166, %v166
    %v183 = vmul.f32 %v167, %v167
    %v184 = vmul.f32 %v168, %v168
    %v185 = vmul.f32 %v169, %v169
    %v186 = vsel %vm82, %v170, 0.0
    %187 = vadd.xlane.f32.xlu0 %v186
    %v188 = vpop.xlane.xlu0 %187
    %v189 = vsel %vm82, %v171, 0.0
    %190 = vadd.xlane.f32.xlu0 %v189
    %v191 = vpop.xlane.xlu0 %190
    %v192 = vsel %vm82, %v172, 0.0
    %193 = vadd.xlane.f32.xlu0 %v192
    %v194 = vpop.xlane.xlu0 %193
    %v195 = vsel %vm82, %v173, 0.0
    %196 = vadd.xlane.f32.xlu0 %v195
    %v197 = vpop.xlane.xlu0 %196
    %v198 = vsel %vm82, %v174, 0.0
    %199 = vadd.xlane.f32.xlu0 %v198
    %v200 = vpop.xlane.xlu0 %199
    %v201 = vsel %vm82, %v175, 0.0
    %202 = vadd.xlane.f32.xlu0 %v201
    %v203 = vpop.xlane.xlu0 %202
    %v204 = vsel %vm82, %v176, 0.0
    %205 = vadd.xlane.f32.xlu0 %v204
    %v206 = vpop.xlane.xlu0 %205
    %v207 = vsel %vm82, %v177, 0.0
    %208 = vadd.xlane.f32.xlu0 %v207
    %v209 = vpop.xlane.xlu0 %208
    %v210 = vsel %vm82, %v178, 0.0
    %211 = vadd.xlane.f32.xlu0 %v210
    %v212 = vpop.xlane.xlu0 %211
    %v213 = vsel %vm82, %v179, 0.0
    %214 = vadd.xlane.f32.xlu0 %v213
    %v215 = vpop.xlane.xlu0 %214
    %v216 = vsel %vm82, %v180, 0.0
    %217 = vadd.xlane.f32.xlu0 %v216
    %v218 = vpop.xlane.xlu0 %217
    %v219 = vsel %vm82, %v181, 0.0
    %220 = vadd.xlane.f32.xlu0 %v219
    %v221 = vpop.xlane.xlu0 %220
    %v222 = vsel %vm82, %v182, 0.0
    %223 = vadd.xlane.f32.xlu0 %v222
    %v224 = vpop.xlane.xlu0 %223
    %v225 = vsel %vm82, %v183, 0.0
    %226 = vadd.xlane.f32.xlu0 %v225
    %v227 = vpop.xlane.xlu0 %226
    %v228 = vsel %vm82, %v184, 0.0
    %229 = vadd.xlane.f32.xlu0 %v228
    %v230 = vpop.xlane.xlu0 %229
    %v231 = vsel %vm82, %v185, 0.0
    %232 = vadd.xlane.f32.xlu0 %v231
    %v233 = vpop.xlane.xlu0 %232
    %v234 = vmul.f32 %v188, %v137
    %v235 = vmul.f32 %v191, %v137
    %v236 = vmul.f32 %v194, %v137
    %v237 = vmul.f32 %v197, %v137
    %v238 = vmul.f32 %v200, %v137
    %v239 = vmul.f32 %v203, %v137
    %v240 = vmul.f32 %v206, %v137
    %v241 = vmul.f32 %v209, %v137
    %v242 = vmul.f32 %v212, %v137
    %v243 = vmul.f32 %v215, %v137
    %v244 = vmul.f32 %v218, %v137
    %v245 = vmul.f32 %v221, %v137
    %v246 = vmul.f32 %v224, %v137
    %v247 = vmul.f32 %v227, %v137
    %v248 = vmul.f32 %v230, %v137
    %v249 = vmul.f32 %v233, %v137
    %v250 = vadd.f32 %v234, 1e-12
    %v251 = vadd.f32 %v235, 1e-12
    %v252 = vadd.f32 %v236, 1e-12
    %v253 = vadd.f32 %v237, 1e-12
    %v254 = vadd.f32 %v238, 1e-12
    %v255 = vadd.f32 %v239, 1e-12
    %v256 = vadd.f32 %v240, 1e-12
    %v257 = vadd.f32 %v241, 1e-12
    %v258 = vadd.f32 %v242, 1e-12
    %v259 = vadd.f32 %v243, 1e-12
    %v260 = vadd.f32 %v244, 1e-12
    %v261 = vadd.f32 %v245, 1e-12
    %v262 = vadd.f32 %v246, 1e-12
    %v263 = vadd.f32 %v247, 1e-12
    %v264 = vadd.f32 %v248, 1e-12
    %v265 = vadd.f32 %v249, 1e-12
    %v266 = vrsqrt.pop %v250
    %v267 = vmul.f32 %v266, %v250
    %v268 = vmul.f32 %v267, %v266
    %v269 = vmul.f32 0.5, %v268
    %v270 = vsub.f32 1.5, %v269
    %v271 = vmul.f32 %v266, %v270
    %v272 = vmul.f32 %v250, %v271
    %vm273 = vcmp.eq.f32.partialorder %v250, inf
    %v274 = vsel %vm273, %v250, %v272
    %vm275 = vcmp.eq.f32.partialorder %v250, 0.0
    %v276 = vand.u32 %v250, 2147483648
    %v277 = vsel %vm275, %v276, %v274
    %v278 = vrsqrt.pop %v251
    %v279 = vmul.f32 %v278, %v251
    %v280 = vmul.f32 %v279, %v278
    %v281 = vmul.f32 0.5, %v280
    %v282 = vsub.f32 1.5, %v281
    %v283 = vmul.f32 %v278, %v282
    %v284 = vmul.f32 %v251, %v283
    %vm285 = vcmp.eq.f32.partialorder %v251, inf
    %v286 = vsel %vm285, %v251, %v284
    %vm287 = vcmp.eq.f32.partialorder %v251, 0.0
    %v288 = vand.u32 %v251, 2147483648
    %v289 = vsel %vm287, %v288, %v286
    %v290 = vrsqrt.pop %v252
    %v291 = vmul.f32 %v290, %v252
    %v292 = vmul.f32 %v291, %v290
    %v293 = vmul.f32 0.5, %v292
    %v294 = vsub.f32 1.5, %v293
    %v295 = vmul.f32 %v290, %v294
    %v296 = vmul.f32 %v252, %v295
    %vm297 = vcmp.eq.f32.partialorder %v252, inf
    %v298 = vsel %vm297, %v252, %v296
    %vm299 = vcmp.eq.f32.partialorder %v252, 0.0
    %v300 = vand.u32 %v252, 2147483648
    %v301 = vsel %vm299, %v300, %v298
    %v302 = vrsqrt.pop %v253
    %v303 = vmul.f32 %v302, %v253
    %v304 = vmul.f32 %v303, %v302
    %v305 = vmul.f32 0.5, %v304
    %v306 = vsub.f32 1.5, %v305
    %v307 = vmul.f32 %v302, %v306
    %v308 = vmul.f32 %v253, %v307
    %vm309 = vcmp.eq.f32.partialorder %v253, inf
    %v310 = vsel %vm309, %v253, %v308
    %vm311 = vcmp.eq.f32.partialorder %v253, 0.0
    %v312 = vand.u32 %v253, 2147483648
    %v313 = vsel %vm311, %v312, %v310
    %v314 = vrsqrt.pop %v254
    %v315 = vmul.f32 %v314, %v254
    %v316 = vmul.f32 %v315, %v314
    %v317 = vmul.f32 0.5, %v316
    %v318 = vsub.f32 1.5, %v317
    %v319 = vmul.f32 %v314, %v318
    %v320 = vmul.f32 %v254, %v319
    %vm321 = vcmp.eq.f32.partialorder %v254, inf
    %v322 = vsel %vm321, %v254, %v320
    %vm323 = vcmp.eq.f32.partialorder %v254, 0.0
    %v324 = vand.u32 %v254, 2147483648
    %v325 = vsel %vm323, %v324, %v322
    %v326 = vrsqrt.pop %v255
    %v327 = vmul.f32 %v326, %v255
    %v328 = vmul.f32 %v327, %v326
    %v329 = vmul.f32 0.5, %v328
    %v330 = vsub.f32 1.5, %v329
    %v331 = vmul.f32 %v326, %v330
    %v332 = vmul.f32 %v255, %v331
    %vm333 = vcmp.eq.f32.partialorder %v255, inf
    %v334 = vsel %vm333, %v255, %v332
    %vm335 = vcmp.eq.f32.partialorder %v255, 0.0
    %v336 = vand.u32 %v255, 2147483648
    %v337 = vsel %vm335, %v336, %v334
    %v338 = vrsqrt.pop %v256
    %v339 = vmul.f32 %v338, %v256
    %v340 = vmul.f32 %v339, %v338
    %v341 = vmul.f32 0.5, %v340
    %v342 = vsub.f32 1.5, %v341
    %v343 = vmul.f32 %v338, %v342
    %v344 = vmul.f32 %v256, %v343
    %vm345 = vcmp.eq.f32.partialorder %v256, inf
    %v346 = vsel %vm345, %v256, %v344
    %vm347 = vcmp.eq.f32.partialorder %v256, 0.0
    %v348 = vand.u32 %v256, 2147483648
    %v349 = vsel %vm347, %v348, %v346
    %v350 = vrsqrt.pop %v257
    %v351 = vmul.f32 %v350, %v257
    %v352 = vmul.f32 %v351, %v350
    %v353 = vmul.f32 0.5, %v352
    %v354 = vsub.f32 1.5, %v353
    %v355 = vmul.f32 %v350, %v354
    %v356 = vmul.f32 %v257, %v355
    %vm357 = vcmp.eq.f32.partialorder %v257, inf
    %v358 = vsel %vm357, %v257, %v356
    %vm359 = vcmp.eq.f32.partialorder %v257, 0.0
    %v360 = vand.u32 %v257, 2147483648
    %v361 = vsel %vm359, %v360, %v358
    %v362 = vrsqrt.pop %v258
    %v363 = vmul.f32 %v362, %v258
    %v364 = vmul.f32 %v363, %v362
    %v365 = vmul.f32 0.5, %v364
    %v366 = vsub.f32 1.5, %v365
    %v367 = vmul.f32 %v362, %v366
    %v368 = vmul.f32 %v258, %v367
    %vm369 = vcmp.eq.f32.partialorder %v258, inf
    %v370 = vsel %vm369, %v258, %v368
    %vm371 = vcmp.eq.f32.partialorder %v258, 0.0
    %v372 = vand.u32 %v258, 2147483648
    %v373 = vsel %vm371, %v372, %v370
    %v374 = vrsqrt.pop %v259
    %v375 = vmul.f32 %v374, %v259
    %v376 = vmul.f32 %v375, %v374
    %v377 = vmul.f32 0.5, %v376
    %v378 = vsub.f32 1.5, %v377
    %v379 = vmul.f32 %v374, %v378
    %v380 = vmul.f32 %v259, %v379
    %vm381 = vcmp.eq.f32.partialorder %v259, inf
    %v382 = vsel %vm381, %v259, %v380
    %vm383 = vcmp.eq.f32.partialorder %v259, 0.0
    %v384 = vand.u32 %v259, 2147483648
    %v385 = vsel %vm383, %v384, %v382
    %v386 = vrsqrt.pop %v260
    %v387 = vmul.f32 %v386, %v260
    %v388 = vmul.f32 %v387, %v386
    %v389 = vmul.f32 0.5, %v388
    %v390 = vsub.f32 1.5, %v389
    %v391 = vmul.f32 %v386, %v390
    %v392 = vmul.f32 %v260, %v391
    %vm393 = vcmp.eq.f32.partialorder %v260, inf
    %v394 = vsel %vm393, %v260, %v392
    %vm395 = vcmp.eq.f32.partialorder %v260, 0.0
    %v396 = vand.u32 %v260, 2147483648
    %v397 = vsel %vm395, %v396, %v394
    %v398 = vrsqrt.pop %v261
    %v399 = vmul.f32 %v398, %v261
    %v400 = vmul.f32 %v399, %v398
    %v401 = vmul.f32 0.5, %v400
    %v402 = vsub.f32 1.5, %v401
    %v403 = vmul.f32 %v398, %v402
    %v404 = vmul.f32 %v261, %v403
    %vm405 = vcmp.eq.f32.partialorder %v261, inf
    %v406 = vsel %vm405, %v261, %v404
    %vm407 = vcmp.eq.f32.partialorder %v261, 0.0
    %v408 = vand.u32 %v261, 2147483648
    %v409 = vsel %vm407, %v408, %v406
    %v410 = vrsqrt.pop %v262
    %v411 = vmul.f32 %v410, %v262
    %v412 = vmul.f32 %v411, %v410
    %v413 = vmul.f32 0.5, %v412
    %v414 = vsub.f32 1.5, %v413
    %v415 = vmul.f32 %v410, %v414
    %v416 = vmul.f32 %v262, %v415
    %vm417 = vcmp.eq.f32.partialorder %v262, inf
    %v418 = vsel %vm417, %v262, %v416
    %vm419 = vcmp.eq.f32.partialorder %v262, 0.0
    %v420 = vand.u32 %v262, 2147483648
    %v421 = vsel %vm419, %v420, %v418
    %v422 = vrsqrt.pop %v263
    %v423 = vmul.f32 %v422, %v263
    %v424 = vmul.f32 %v423, %v422
    %v425 = vmul.f32 0.5, %v424
    %v426 = vsub.f32 1.5, %v425
    %v427 = vmul.f32 %v422, %v426
    %v428 = vmul.f32 %v263, %v427
    %vm429 = vcmp.eq.f32.partialorder %v263, inf
    %v430 = vsel %vm429, %v263, %v428
    %vm431 = vcmp.eq.f32.partialorder %v263, 0.0
    %v432 = vand.u32 %v263, 2147483648
    %v433 = vsel %vm431, %v432, %v430
    %v434 = vrsqrt.pop %v264
    %v435 = vmul.f32 %v434, %v264
    %v436 = vmul.f32 %v435, %v434
    %v437 = vmul.f32 0.5, %v436
    %v438 = vsub.f32 1.5, %v437
    %v439 = vmul.f32 %v434, %v438
    %v440 = vmul.f32 %v264, %v439
    %vm441 = vcmp.eq.f32.partialorder %v264, inf
    %v442 = vsel %vm441, %v264, %v440
    %vm443 = vcmp.eq.f32.partialorder %v264, 0.0
    %v444 = vand.u32 %v264, 2147483648
    %v445 = vsel %vm443, %v444, %v442
    %v446 = vrsqrt.pop %v265
    %v447 = vmul.f32 %v446, %v265
    %v448 = vmul.f32 %v447, %v446
    %v449 = vmul.f32 0.5, %v448
    %v450 = vsub.f32 1.5, %v449
    %v451 = vmul.f32 %v446, %v450
    %v452 = vmul.f32 %v265, %v451
    %vm453 = vcmp.eq.f32.partialorder %v265, inf
    %v454 = vsel %vm453, %v265, %v452
    %vm455 = vcmp.eq.f32.partialorder %v265, 0.0
    %v456 = vand.u32 %v265, 2147483648
    %v457 = vsel %vm455, %v456, %v454
    %v458 = vrcp.pop %v277
    %v459 = vmul.f32 %v277, %v458
    %v460 = vsub.f32 1.0, %v459
    %v461 = vmul.f32 %v458, %v460
    %v462 = vadd.f32 %v458, %v461
    %vm463 = vweird.f32 %v277
    %vm464 = vweird.f32 %v458
    %vm465 = vmor %vm463, %vm464
    %v466 = vsel %vm465, %v458, %v462
    %v467 = vand.u32 2147483647, %v277
    %vm468 = vcmp.eq.f32.partialorder %v467, 8.507059e+37
    %v469 = vand.u32 %v277, 2147483648
    %v470 = vor.u32 1.1754944e-38, %v469
    %v471 = vsel %vm468, %v470, %v466
    %v472 = vmul.f32 %v154, %v471
    %v473 = vrcp.pop %v289
    %v474 = vmul.f32 %v289, %v473
    %v475 = vsub.f32 1.0, %v474
    %v476 = vmul.f32 %v473, %v475
    %v477 = vadd.f32 %v473, %v476
    %vm478 = vweird.f32 %v289
    %vm479 = vweird.f32 %v473
    %vm480 = vmor %vm478, %vm479
    %v481 = vsel %vm480, %v473, %v477
    %v482 = vand.u32 2147483647, %v289
    %vm483 = vcmp.eq.f32.partialorder %v482, 8.507059e+37
    %v484 = vand.u32 %v289, 2147483648
    %v485 = vor.u32 1.1754944e-38, %v484
    %v486 = vsel %vm483, %v485, %v481
    %v487 = vmul.f32 %v155, %v486
    %v488 = vrcp.pop %v301
    %v489 = vmul.f32 %v301, %v488
    %v490 = vsub.f32 1.0, %v489
    %v491 = vmul.f32 %v488, %v490
    %v492 = vadd.f32 %v488, %v491
    %vm493 = vweird.f32 %v301
    %vm494 = vweird.f32 %v488
    %vm495 = vmor %vm493, %vm494
    %v496 = vsel %vm495, %v488, %v492
    %v497 = vand.u32 2147483647, %v301
    %vm498 = vcmp.eq.f32.partialorder %v497, 8.507059e+37
    %v499 = vand.u32 %v301, 2147483648
    %v500 = vor.u32 1.1754944e-38, %v499
    %v501 = vsel %vm498, %v500, %v496
    %v502 = vmul.f32 %v156, %v501
    %v503 = vrcp.pop %v313
    %v504 = vmul.f32 %v313, %v503
    %v505 = vsub.f32 1.0, %v504
    %v506 = vmul.f32 %v503, %v505
    %v507 = vadd.f32 %v503, %v506
    %vm508 = vweird.f32 %v313
    %vm509 = vweird.f32 %v503
    %vm510 = vmor %vm508, %vm509
    %v511 = vsel %vm510, %v503, %v507
    %v512 = vand.u32 2147483647, %v313
    %vm513 = vcmp.eq.f32.partialorder %v512, 8.507059e+37
    %v514 = vand.u32 %v313, 2147483648
    %v515 = vor.u32 1.1754944e-38, %v514
    %v516 = vsel %vm513, %v515, %v511
    %v517 = vmul.f32 %v157, %v516
    %v518 = vrcp.pop %v325
    %v519 = vmul.f32 %v325, %v518
    %v520 = vsub.f32 1.0, %v519
    %v521 = vmul.f32 %v518, %v520
    %v522 = vadd.f32 %v518, %v521
    %vm523 = vweird.f32 %v325
    %vm524 = vweird.f32 %v518
    %vm525 = vmor %vm523, %vm524
    %v526 = vsel %vm525, %v518, %v522
    %v527 = vand.u32 2147483647, %v325
    %vm528 = vcmp.eq.f32.partialorder %v527, 8.507059e+37
    %v529 = vand.u32 %v325, 2147483648
    %v530 = vor.u32 1.1754944e-38, %v529
    %v531 = vsel %vm528, %v530, %v526
    %v532 = vmul.f32 %v158, %v531
    %v533 = vrcp.pop %v337
    %v534 = vmul.f32 %v337, %v533
    %v535 = vsub.f32 1.0, %v534
    %v536 = vmul.f32 %v533, %v535
    %v537 = vadd.f32 %v533, %v536
    %vm538 = vweird.f32 %v337
    %vm539 = vweird.f32 %v533
    %vm540 = vmor %vm538, %vm539
    %v541 = vsel %vm540, %v533, %v537
    %v542 = vand.u32 2147483647, %v337
    %vm543 = vcmp.eq.f32.partialorder %v542, 8.507059e+37
    %v544 = vand.u32 %v337, 2147483648
    %v545 = vor.u32 1.1754944e-38, %v544
    %v546 = vsel %vm543, %v545, %v541
    %v547 = vmul.f32 %v159, %v546
    %v548 = vrcp.pop %v349
    %v549 = vmul.f32 %v349, %v548
    %v550 = vsub.f32 1.0, %v549
    %v551 = vmul.f32 %v548, %v550
    %v552 = vadd.f32 %v548, %v551
    %vm553 = vweird.f32 %v349
    %vm554 = vweird.f32 %v548
    %vm555 = vmor %vm553, %vm554
    %v556 = vsel %vm555, %v548, %v552
    %v557 = vand.u32 2147483647, %v349
    %vm558 = vcmp.eq.f32.partialorder %v557, 8.507059e+37
    %v559 = vand.u32 %v349, 2147483648
    %v560 = vor.u32 1.1754944e-38, %v559
    %v561 = vsel %vm558, %v560, %v556
    %v562 = vmul.f32 %v160, %v561
    %v563 = vrcp.pop %v361
    %v564 = vmul.f32 %v361, %v563
    %v565 = vsub.f32 1.0, %v564
    %v566 = vmul.f32 %v563, %v565
    %v567 = vadd.f32 %v563, %v566
    %vm568 = vweird.f32 %v361
    %vm569 = vweird.f32 %v563
    %vm570 = vmor %vm568, %vm569
    %v571 = vsel %vm570, %v563, %v567
    %v572 = vand.u32 2147483647, %v361
    %vm573 = vcmp.eq.f32.partialorder %v572, 8.507059e+37
    %v574 = vand.u32 %v361, 2147483648
    %v575 = vor.u32 1.1754944e-38, %v574
    %v576 = vsel %vm573, %v575, %v571
    %v577 = vmul.f32 %v161, %v576
    %v578 = vrcp.pop %v373
    %v579 = vmul.f32 %v373, %v578
    %v580 = vsub.f32 1.0, %v579
    %v581 = vmul.f32 %v578, %v580
    %v582 = vadd.f32 %v578, %v581
    %vm583 = vweird.f32 %v373
    %vm584 = vweird.f32 %v578
    %vm585 = vmor %vm583, %vm584
    %v586 = vsel %vm585, %v578, %v582
    %v587 = vand.u32 2147483647, %v373
    %vm588 = vcmp.eq.f32.partialorder %v587, 8.507059e+37
    %v589 = vand.u32 %v373, 2147483648
    %v590 = vor.u32 1.1754944e-38, %v589
    %v591 = vsel %vm588, %v590, %v586
    %v592 = vmul.f32 %v162, %v591
    %v593 = vrcp.pop %v385
    %v594 = vmul.f32 %v385, %v593
    %v595 = vsub.f32 1.0, %v594
    %v596 = vmul.f32 %v593, %v595
    %v597 = vadd.f32 %v593, %v596
    %vm598 = vweird.f32 %v385
    %vm599 = vweird.f32 %v593
    %vm600 = vmor %vm598, %vm599
    %v601 = vsel %vm600, %v593, %v597
    %v602 = vand.u32 2147483647, %v385
    %vm603 = vcmp.eq.f32.partialorder %v602, 8.507059e+37
    %v604 = vand.u32 %v385, 2147483648
    %v605 = vor.u32 1.1754944e-38, %v604
    %v606 = vsel %vm603, %v605, %v601
    %v607 = vmul.f32 %v163, %v606
    %v608 = vrcp.pop %v397
    %v609 = vmul.f32 %v397, %v608
    %v610 = vsub.f32 1.0, %v609
    %v611 = vmul.f32 %v608, %v610
    %v612 = vadd.f32 %v608, %v611
    %vm613 = vweird.f32 %v397
    %vm614 = vweird.f32 %v608
    %vm615 = vmor %vm613, %vm614
    %v616 = vsel %vm615, %v608, %v612
    %v617 = vand.u32 2147483647, %v397
    %vm618 = vcmp.eq.f32.partialorder %v617, 8.507059e+37
    %v619 = vand.u32 %v397, 2147483648
    %v620 = vor.u32 1.1754944e-38, %v619
    %v621 = vsel %vm618, %v620, %v616
    %v622 = vmul.f32 %v164, %v621
    %v623 = vrcp.pop %v409
    %v624 = vmul.f32 %v409, %v623
    %v625 = vsub.f32 1.0, %v624
    %v626 = vmul.f32 %v623, %v625
    %v627 = vadd.f32 %v623, %v626
    %vm628 = vweird.f32 %v409
    %vm629 = vweird.f32 %v623
    %vm630 = vmor %vm628, %vm629
    %v631 = vsel %vm630, %v623, %v627
    %v632 = vand.u32 2147483647, %v409
    %vm633 = vcmp.eq.f32.partialorder %v632, 8.507059e+37
    %v634 = vand.u32 %v409, 2147483648
    %v635 = vor.u32 1.1754944e-38, %v634
    %v636 = vsel %vm633, %v635, %v631
    %v637 = vmul.f32 %v165, %v636
    %v638 = vrcp.pop %v421
    %v639 = vmul.f32 %v421, %v638
    %v640 = vsub.f32 1.0, %v639
    %v641 = vmul.f32 %v638, %v640
    %v642 = vadd.f32 %v638, %v641
    %vm643 = vweird.f32 %v421
    %vm644 = vweird.f32 %v638
    %vm645 = vmor %vm643, %vm644
    %v646 = vsel %vm645, %v638, %v642
    %v647 = vand.u32 2147483647, %v421
    %vm648 = vcmp.eq.f32.partialorder %v647, 8.507059e+37
    %v649 = vand.u32 %v421, 2147483648
    %v650 = vor.u32 1.1754944e-38, %v649
    %v651 = vsel %vm648, %v650, %v646
    %v652 = vmul.f32 %v166, %v651
    %v653 = vrcp.pop %v433
    %v654 = vmul.f32 %v433, %v653
    %v655 = vsub.f32 1.0, %v654
    %v656 = vmul.f32 %v653, %v655
    %v657 = vadd.f32 %v653, %v656
    %vm658 = vweird.f32 %v433
    %vm659 = vweird.f32 %v653
    %vm660 = vmor %vm658, %vm659
    %v661 = vsel %vm660, %v653, %v657
    %v662 = vand.u32 2147483647, %v433
    %vm663 = vcmp.eq.f32.partialorder %v662, 8.507059e+37
    %v664 = vand.u32 %v433, 2147483648
    %v665 = vor.u32 1.1754944e-38, %v664
    %v666 = vsel %vm663, %v665, %v661
    %v667 = vmul.f32 %v167, %v666
    %v668 = vrcp.pop %v445
    %v669 = vmul.f32 %v445, %v668
    %v670 = vsub.f32 1.0, %v669
    %v671 = vmul.f32 %v668, %v670
    %v672 = vadd.f32 %v668, %v671
    %vm673 = vweird.f32 %v445
    %vm674 = vweird.f32 %v668
    %vm675 = vmor %vm673, %vm674
    %v676 = vsel %vm675, %v668, %v672
    %v677 = vand.u32 2147483647, %v445
    %vm678 = vcmp.eq.f32.partialorder %v677, 8.507059e+37
    %v679 = vand.u32 %v445, 2147483648
    %v680 = vor.u32 1.1754944e-38, %v679
    %v681 = vsel %vm678, %v680, %v676
    %v682 = vmul.f32 %v168, %v681
    %v683 = vrcp.pop %v457
    %v684 = vmul.f32 %v457, %v683
    %v685 = vsub.f32 1.0, %v684
    %v686 = vmul.f32 %v683, %v685
    %v687 = vadd.f32 %v683, %v686
    %vm688 = vweird.f32 %v457
    %vm689 = vweird.f32 %v683
    %vm690 = vmor %vm688, %vm689
    %v691 = vsel %vm690, %v683, %v687
    %v692 = vand.u32 2147483647, %v457
    %vm693 = vcmp.eq.f32.partialorder %v692, 8.507059e+37
    %v694 = vand.u32 %v457, 2147483648
    %v695 = vor.u32 1.1754944e-38, %v694
    %v696 = vsel %vm693, %v695, %v691
    %v697 = vmul.f32 %v169, %v696
    %v698 = vperm.slane %v80, 0
    %v699 = vmul.f32 %v472, %v698
    %v700 = vmul.f32 %v487, %v698
    %v701 = vmul.f32 %v502, %v698
    %v702 = vmul.f32 %v517, %v698
    %v703 = vmul.f32 %v532, %v698
    %v704 = vmul.f32 %v547, %v698
    %v705 = vmul.f32 %v562, %v698
    %v706 = vmul.f32 %v577, %v698
    %v707 = vmul.f32 %v592, %v698
    %v708 = vmul.f32 %v607, %v698
    %v709 = vmul.f32 %v622, %v698
    %v710 = vmul.f32 %v637, %v698
    %v711 = vmul.f32 %v652, %v698
    %v712 = vmul.f32 %v667, %v698
    %v713 = vmul.f32 %v682, %v698
    %v714 = vmul.f32 %v697, %v698
    %v715 = vperm.slane %v81, 0
    %v716 = vadd.f32 %v699, %v715
    %v717 = vadd.f32 %v700, %v715
    %v718 = vadd.f32 %v701, %v715
    %v719 = vadd.f32 %v702, %v715
    %v720 = vadd.f32 %v703, %v715
    %v721 = vadd.f32 %v704, %v715
    %v722 = vadd.f32 %v705, %v715
    %v723 = vadd.f32 %v706, %v715
    %v724 = vadd.f32 %v707, %v715
    %v725 = vadd.f32 %v708, %v715
    %v726 = vadd.f32 %v709, %v715
    %v727 = vadd.f32 %v710, %v715
    %v728 = vadd.f32 %v711, %v715
    %v729 = vadd.f32 %v712, %v715
    %v730 = vadd.f32 %v713, %v715
    %v731 = vadd.f32 %v714, %v715
    %vm732 = vcmp.gt.f32.partialorder %v716, 0.0
    %vm733 = vcmp.gt.f32.partialorder %v717, 0.0
    %vm734 = vcmp.gt.f32.partialorder %v718, 0.0
    %vm735 = vcmp.gt.f32.partialorder %v719, 0.0
    %vm736 = vcmp.gt.f32.partialorder %v720, 0.0
    %vm737 = vcmp.gt.f32.partialorder %v721, 0.0
    %vm738 = vcmp.gt.f32.partialorder %v722, 0.0
    %vm739 = vcmp.gt.f32.partialorder %v723, 0.0
    %vm740 = vcmp.gt.f32.partialorder %v724, 0.0
    %vm741 = vcmp.gt.f32.partialorder %v725, 0.0
    %vm742 = vcmp.gt.f32.partialorder %v726, 0.0
    %vm743 = vcmp.gt.f32.partialorder %v727, 0.0
    %vm744 = vcmp.gt.f32.partialorder %v728, 0.0
    %vm745 = vcmp.gt.f32.partialorder %v729, 0.0
    %vm746 = vcmp.gt.f32.partialorder %v730, 0.0
    %vm747 = vcmp.gt.f32.partialorder %v731, 0.0
    %v748 = vmul.f32 %v716, 1.442695
    %v749 = vpow.pop %v748
    %v750 = vmul.f32 %v717, 1.442695
    %v751 = vpow.pop %v750
    %v752 = vmul.f32 %v718, 1.442695
    %v753 = vpow.pop %v752
    %v754 = vmul.f32 %v719, 1.442695
    %v755 = vpow.pop %v754
    %v756 = vmul.f32 %v720, 1.442695
    %v757 = vpow.pop %v756
    %v758 = vmul.f32 %v721, 1.442695
    %v759 = vpow.pop %v758
    %v760 = vmul.f32 %v722, 1.442695
    %v761 = vpow.pop %v760
    %v762 = vmul.f32 %v723, 1.442695
    %v763 = vpow.pop %v762
    %v764 = vmul.f32 %v724, 1.442695
    %v765 = vpow.pop %v764
    %v766 = vmul.f32 %v725, 1.442695
    %v767 = vpow.pop %v766
    %v768 = vmul.f32 %v726, 1.442695
    %v769 = vpow.pop %v768
    %v770 = vmul.f32 %v727, 1.442695
    %v771 = vpow.pop %v770
    %v772 = vmul.f32 %v728, 1.442695
    %v773 = vpow.pop %v772
    %v774 = vmul.f32 %v729, 1.442695
    %v775 = vpow.pop %v774
    %v776 = vmul.f32 %v730, 1.442695
    %v777 = vpow.pop %v776
    %v778 = vmul.f32 %v731, 1.442695
    %v779 = vpow.pop %v778
    %v780 = vsub.f32 %v749, 1.0
    %v781 = vsub.f32 %v751, 1.0
    %v782 = vsub.f32 %v753, 1.0
    %v783 = vsub.f32 %v755, 1.0
    %v784 = vsub.f32 %v757, 1.0
    %v785 = vsub.f32 %v759, 1.0
    %v786 = vsub.f32 %v761, 1.0
    %v787 = vsub.f32 %v763, 1.0
    %v788 = vsub.f32 %v765, 1.0
    %v789 = vsub.f32 %v767, 1.0
    %v790 = vsub.f32 %v769, 1.0
    %v791 = vsub.f32 %v771, 1.0
    %v792 = vsub.f32 %v773, 1.0
    %v793 = vsub.f32 %v775, 1.0
    %v794 = vsub.f32 %v777, 1.0
    %v795 = vsub.f32 %v779, 1.0
    %v796 = vsel %vm732, %v716, %v780
    %v797 = vsel %vm733, %v717, %v781
    %v798 = vsel %vm734, %v718, %v782
    %v799 = vsel %vm735, %v719, %v783
    %v800 = vsel %vm736, %v720, %v784
    %v801 = vsel %vm737, %v721, %v785
    %v802 = vsel %vm738, %v722, %v786
    %v803 = vsel %vm739, %v723, %v787
    %v804 = vsel %vm740, %v724, %v788
    %v805 = vsel %vm741, %v725, %v789
    %v806 = vsel %vm742, %v726, %v790
    %v807 = vsel %vm743, %v727, %v791
    %v808 = vsel %vm744, %v728, %v792
    %v809 = vsel %vm745, %v729, %v793
    %v810 = vsel %vm746, %v730, %v794
    %v811 = vsel %vm747, %v731, %v795
    %v812 = vlaneseq
    %v813 = vshrl.u32 %v812, 7
    %v814 = vadd.s32 %v813, 8
    %v815 = vadd.s32 %v813, 16
    %v816 = vadd.s32 %v813, 24
    %v817 = vadd.s32 %v813, 32
    %v818 = vadd.s32 %v813, 40
    %v819 = vadd.s32 %v813, 48
    %v820 = vadd.s32 %v813, 56
    %v821 = vadd.s32 %v813, 64
    %v822 = vadd.s32 %v813, 72
    %v823 = vadd.s32 %v813, 80
    %v824 = vadd.s32 %v813, 88
    %v825 = vadd.s32 %v813, 96
    %v826 = vadd.s32 %v813, 104
    %v827 = vadd.s32 %v813, 112
    %v828 = vadd.s32 %v813, 120
    %vm829 = vcmp.ge.s32.totalorder %v813, 64
    %vm830 = vcmp.ge.s32.totalorder %v814, 64
    %vm831 = vcmp.ge.s32.totalorder %v815, 64
    %vm832 = vcmp.ge.s32.totalorder %v816, 64
    %vm833 = vcmp.ge.s32.totalorder %v817, 64
    %vm834 = vcmp.ge.s32.totalorder %v818, 64
    %vm835 = vcmp.ge.s32.totalorder %v819, 64
    %vm836 = vcmp.ge.s32.totalorder %v820, 64
    %vm837 = vcmp.ge.s32.totalorder %v821, 64
    %vm838 = vcmp.ge.s32.totalorder %v822, 64
    %vm839 = vcmp.ge.s32.totalorder %v823, 64
    %vm840 = vcmp.ge.s32.totalorder %v824, 64
    %vm841 = vcmp.ge.s32.totalorder %v825, 64
    %vm842 = vcmp.ge.s32.totalorder %v826, 64
    %vm843 = vcmp.ge.s32.totalorder %v827, 64
    %vm844 = vcmp.ge.s32.totalorder %v828, 64
    %v845 = vsel %vm829, 1.0, 0.0
    %v846 = vsel %vm830, 1.0, 0.0
    %v847 = vsel %vm831, 1.0, 0.0
    %v848 = vsel %vm832, 1.0, 0.0
    %v849 = vsel %vm833, 1.0, 0.0
    %v850 = vsel %vm834, 1.0, 0.0
    %v851 = vsel %vm835, 1.0, 0.0
    %v852 = vsel %vm836, 1.0, 0.0
    %v853 = vsel %vm837, 1.0, 0.0
    %v854 = vsel %vm838, 1.0, 0.0
    %v855 = vsel %vm839, 1.0, 0.0
    %v856 = vsel %vm840, 1.0, 0.0
    %v857 = vsel %vm841, 1.0, 0.0
    %v858 = vsel %vm842, 1.0, 0.0
    %v859 = vsel %vm843, 1.0, 0.0
    %v860 = vsel %vm844, 1.0, 0.0
    %v861 = vadd.f32 %v796, %v845
    %v862 = vadd.f32 %v797, %v846
    %v863 = vadd.f32 %v798, %v847
    %v864 = vadd.f32 %v799, %v848
    %v865 = vadd.f32 %v800, %v849
    %v866 = vadd.f32 %v801, %v850
    %v867 = vadd.f32 %v802, %v851
    %v868 = vadd.f32 %v803, %v852
    %v869 = vadd.f32 %v804, %v853
    %v870 = vadd.f32 %v805, %v854
    %v871 = vadd.f32 %v806, %v855
    %v872 = vadd.f32 %v807, %v856
    %v873 = vadd.f32 %v808, %v857
    %v874 = vadd.f32 %v809, %v858
    %v875 = vadd.f32 %v810, %v859
    %v876 = vadd.f32 %v811, %v860
    %v877 = vld [vmem:[%s1] sm:$0xff]
    %v878 = vld [vmem:[%s1 + $0x8] sm:$0xff]
    %v879 = vld [vmem:[%s1 + $0x10] sm:$0xff]
    %v880 = vld [vmem:[%s1 + $0x18] sm:$0xff]
    %v881 = vlaneseq
    %v882 = vand.u32 %v881, 127
    %vm883 = vcmp.ge.s32.totalorder %v882, 0
    %vm884 = vcmp.lt.s32.totalorder %v882, 16
    %vm885 = vmand %vm883, %vm884
    %v886 = vsel %vm885, 1, 0
    %v887 = vcvt.s32.f32 %v886
    %vm888 = vcmp.ge.s32.totalorder %v882, 16
    %vm889 = vcmp.lt.s32.totalorder %v882, 32
    %vm890 = vmand %vm888, %vm889
    %v891 = vsel %vm890, 1, 0
    %v892 = vcvt.s32.f32 %v891
    %v893 = vld [vmem:[%s11] sm:$0xff]
    %v894 = vld [vmem:[%s11 + $0x8] sm:$0x1f]
    %v895 = vld [vmem:[%s12] sm:$0x1]
    %v896 = vld [vmem:[%s3] sm:$0xff]
    %v897 = vld [vmem:[%s3 + $0x8] sm:$0xff]
    %v898 = vld [vmem:[%s3 + $0x10] sm:$0xff]
    %v899 = vld [vmem:[%s3 + $0x18] sm:$0xff]
    %v900 = vperm.slane %v893, 0
    %v902 = vsel %vm82, %v861, 0
    %v905 = vsel %vm82, %v862, 0
    %v908 = vsel %vm82, %v863, 0
    %v911 = vsel %vm82, %v864, 0
    %913 = vmatpush.msra.mxu0 0.0
    %914 = vmatpush.msra.mxu0 0.0
    %915 = vmatpush.msra.mxu0 0.0
    %916 = vmatpush.msra.mxu0 0.0
    %917 = vmatpush.msra.mxu0 0.0
    %918 = vmatpush.msra.mxu0 0.0
    %919 = vmatpush.msra.mxu0 0.0
    %920 = vmatpush.msra.mxu0 0.0
    %921 = vmatpush.msra.mxu0 0.0
    %922 = vmatpush.msra.mxu0 0.0
    %923 = vmatpush.msra.mxu0 0.0
    %924 = vmatpush.msra.mxu0 0.0
    %925 = vmatpush.msra.mxu0 %v899
    %926 = vmatpush.msra.mxu0 %v898
    %927 = vmatpush.msra.mxu0 %v897
    %928 = vmatpush.msra.mxu0 %v896
    %929 = vmatmul.f32.gmra.mxu0 %v902
    %v930 = vpop.f32.mrf.mxu0
    %v931 = vadd.f32 %v900, %v930
    %932 = vmatmul.f32.gmra.mxu0 %v905
    %v933 = vpop.f32.mrf.mxu0
    %v934 = vadd.f32 %v900, %v933
    %935 = vmatmul.f32.gmra.mxu0 %v908
    %v936 = vpop.f32.mrf.mxu0
    %v937 = vadd.f32 %v900, %v936
    %938 = vmatmul.f32.gmra.mxu0 %v911
    %v939 = vpop.f32.mrf.mxu0
    %v940 = vadd.f32 %v900, %v939
    %941 = vdwg.mxu0
    %v942 = vld [vmem:[%s4] sm:$0xff]
    %v943 = vld [vmem:[%s4 + $0x8] sm:$0xff]
    %v944 = vld [vmem:[%s4 + $0x10] sm:$0xff]
    %v945 = vld [vmem:[%s4 + $0x18] sm:$0xff]
    %v947 = vsel %vm82, %v865, 0
    %v950 = vsel %vm82, %v866, 0
    %v953 = vsel %vm82, %v867, 0
    %v956 = vsel %vm82, %v868, 0
    %958 = vmatpush.msra.mxu0 0.0
    %959 = vmatpush.msra.mxu0 0.0
    %960 = vmatpush.msra.mxu0 0.0
    %961 = vmatpush.msra.mxu0 0.0
    %962 = vmatpush.msra.mxu0 0.0
    %963 = vmatpush.msra.mxu0 0.0
    %964 = vmatpush.msra.mxu0 0.0
    %965 = vmatpush.msra.mxu0 0.0
    %966 = vmatpush.msra.mxu0 0.0
    %967 = vmatpush.msra.mxu0 0.0
    %968 = vmatpush.msra.mxu0 0.0
    %969 = vmatpush.msra.mxu0 0.0
    %970 = vmatpush.msra.mxu0 %v945
    %971 = vmatpush.msra.mxu0 %v944
    %972 = vmatpush.msra.mxu0 %v943
    %973 = vmatpush.msra.mxu0 %v942
    %974 = vmatmul.f32.gmra.mxu0 %v947
    %v975 = vpop.f32.mrf.mxu0
    %v976 = vadd.f32 0.0, %v975
    %977 = vmatmul.f32.gmra.mxu0 %v950
    %v978 = vpop.f32.mrf.mxu0
    %v979 = vadd.f32 0.0, %v978
    %980 = vmatmul.f32.gmra.mxu0 %v953
    %v981 = vpop.f32.mrf.mxu0
    %v982 = vadd.f32 0.0, %v981
    %983 = vmatmul.f32.gmra.mxu0 %v956
    %v984 = vpop.f32.mrf.mxu0
    %v985 = vadd.f32 0.0, %v984
    %986 = vdwg.mxu0
    %v987 = vperm.slane %v893, 1
    %v988 = vadd.f32 %v976, %v987
    %v989 = vadd.f32 %v979, %v987
    %v990 = vadd.f32 %v982, %v987
    %v991 = vadd.f32 %v985, %v987
    %v992 = vperm.slane %v893, 2
    %994 = vrot.lane.b32.xlu0 %v992, 32
    %v995 = vpop.permute.xlu0 %994
    %v997 = vadd.f32 %v976, %v995
    %v998 = vadd.f32 %v979, %v995
    %v999 = vadd.f32 %v982, %v995
    %v1000 = vadd.f32 %v985, %v995
    %v1001 = vld [vmem:[%s5] sm:$0xff]
    %v1002 = vld [vmem:[%s5 + $0x8] sm:$0xff]
    %v1003 = vld [vmem:[%s5 + $0x10] sm:$0xff]
    %v1004 = vld [vmem:[%s5 + $0x18] sm:$0xff]
    %v1005 = vperm.slane %v893, 3
    %v1007 = vsel %vm82, %v869, 0
    %v1010 = vsel %vm82, %v870, 0
    %v1013 = vsel %vm82, %v871, 0
    %v1016 = vsel %vm82, %v872, 0
    %1018 = vmatpush.msra.mxu0 0.0
    %1019 = vmatpush.msra.mxu0 0.0
    %1020 = vmatpush.msra.mxu0 0.0
    %1021 = vmatpush.msra.mxu0 0.0
    %1022 = vmatpush.msra.mxu0 0.0
    %1023 = vmatpush.msra.mxu0 0.0
    %1024 = vmatpush.msra.mxu0 0.0
    %1025 = vmatpush.msra.mxu0 0.0
    %1026 = vmatpush.msra.mxu0 0.0
    %1027 = vmatpush.msra.mxu0 0.0
    %1028 = vmatpush.msra.mxu0 0.0
    %1029 = vmatpush.msra.mxu0 0.0
    %1030 = vmatpush.msra.mxu0 %v1004
    %1031 = vmatpush.msra.mxu0 %v1003
    %1032 = vmatpush.msra.mxu0 %v1002
    %1033 = vmatpush.msra.mxu0 %v1001
    %1034 = vmatmul.f32.gmra.mxu0 %v1007
    %v1035 = vpop.f32.mrf.mxu0
    %v1036 = vadd.f32 %v1005, %v1035
    %1037 = vmatmul.f32.gmra.mxu0 %v1010
    %v1038 = vpop.f32.mrf.mxu0
    %v1039 = vadd.f32 %v1005, %v1038
    %1040 = vmatmul.f32.gmra.mxu0 %v1013
    %v1041 = vpop.f32.mrf.mxu0
    %v1042 = vadd.f32 %v1005, %v1041
    %1043 = vmatmul.f32.gmra.mxu0 %v1016
    %v1044 = vpop.f32.mrf.mxu0
    %v1045 = vadd.f32 %v1005, %v1044
    %1046 = vdwg.mxu0
    %vm1047 = vcmp.gt.f32.partialorder %v1036, 0.0
    %vm1048 = vcmp.gt.f32.partialorder %v1039, 0.0
    %vm1049 = vcmp.gt.f32.partialorder %v1042, 0.0
    %vm1050 = vcmp.gt.f32.partialorder %v1045, 0.0
    %v1051 = vmul.f32 %v1036, 1.442695
    %v1052 = vpow.pop %v1051
    %v1053 = vmul.f32 %v1039, 1.442695
    %v1054 = vpow.pop %v1053
    %v1055 = vmul.f32 %v1042, 1.442695
    %v1056 = vpow.pop %v1055
    %v1057 = vmul.f32 %v1045, 1.442695
    %v1058 = vpow.pop %v1057
    %v1059 = vsub.f32 %v1052, 1.0
    %v1060 = vsub.f32 %v1054, 1.0
    %v1061 = vsub.f32 %v1056, 1.0
    %v1062 = vsub.f32 %v1058, 1.0
    %v1063 = vsel %vm1047, %v1036, %v1059
    %v1064 = vsel %vm1048, %v1039, %v1060
    %v1065 = vsel %vm1049, %v1042, %v1061
    %v1066 = vsel %vm1050, %v1045, %v1062
    %v1067 = vadd.f32 %v1063, 1.0
    %v1068 = vadd.f32 %v1064, 1.0
    %v1069 = vadd.f32 %v1065, 1.0
    %v1070 = vadd.f32 %v1066, 1.0
    %v1071 = vld [vmem:[%s6] sm:$0xff]
    %v1072 = vld [vmem:[%s6 + $0x8] sm:$0xff]
    %v1073 = vld [vmem:[%s6 + $0x10] sm:$0xff]
    %v1074 = vld [vmem:[%s6 + $0x18] sm:$0xff]
    %v1076 = vsel %vm82, %v873, 0
    %v1079 = vsel %vm82, %v874, 0
    %v1082 = vsel %vm82, %v875, 0
    %v1085 = vsel %vm82, %v876, 0
    %1087 = vmatpush.msra.mxu0 0.0
    %1088 = vmatpush.msra.mxu0 0.0
    %1089 = vmatpush.msra.mxu0 0.0
    %1090 = vmatpush.msra.mxu0 0.0
    %1091 = vmatpush.msra.mxu0 0.0
    %1092 = vmatpush.msra.mxu0 0.0
    %1093 = vmatpush.msra.mxu0 0.0
    %1094 = vmatpush.msra.mxu0 0.0
    %1095 = vmatpush.msra.mxu0 0.0
    %1096 = vmatpush.msra.mxu0 0.0
    %1097 = vmatpush.msra.mxu0 0.0
    %1098 = vmatpush.msra.mxu0 0.0
    %1099 = vmatpush.msra.mxu0 %v1074
    %1100 = vmatpush.msra.mxu0 %v1073
    %1101 = vmatpush.msra.mxu0 %v1072
    %1102 = vmatpush.msra.mxu0 %v1071
    %1103 = vmatmul.f32.gmra.mxu0 %v1076
    %v1104 = vpop.f32.mrf.mxu0
    %v1105 = vadd.f32 0.0, %v1104
    %1106 = vmatmul.f32.gmra.mxu0 %v1079
    %v1107 = vpop.f32.mrf.mxu0
    %v1108 = vadd.f32 0.0, %v1107
    %1109 = vmatmul.f32.gmra.mxu0 %v1082
    %v1110 = vpop.f32.mrf.mxu0
    %v1111 = vadd.f32 0.0, %v1110
    %1112 = vmatmul.f32.gmra.mxu0 %v1085
    %v1113 = vpop.f32.mrf.mxu0
    %v1114 = vadd.f32 0.0, %v1113
    %1115 = vdwg.mxu0
    %v1116 = vperm.slane %v893, 4
    %v1117 = vadd.f32 %v1105, %v1116
    %v1118 = vadd.f32 %v1108, %v1116
    %v1119 = vadd.f32 %v1111, %v1116
    %v1120 = vadd.f32 %v1114, %v1116
    %vm1121 = vcmp.gt.f32.partialorder %v1117, 0.0
    %vm1122 = vcmp.gt.f32.partialorder %v1118, 0.0
    %vm1123 = vcmp.gt.f32.partialorder %v1119, 0.0
    %vm1124 = vcmp.gt.f32.partialorder %v1120, 0.0
    %v1125 = vmul.f32 %v1117, 1.442695
    %v1126 = vpow.pop %v1125
    %v1127 = vmul.f32 %v1118, 1.442695
    %v1128 = vpow.pop %v1127
    %v1129 = vmul.f32 %v1119, 1.442695
    %v1130 = vpow.pop %v1129
    %v1131 = vmul.f32 %v1120, 1.442695
    %v1132 = vpow.pop %v1131
    %v1133 = vsub.f32 %v1126, 1.0
    %v1134 = vsub.f32 %v1128, 1.0
    %v1135 = vsub.f32 %v1130, 1.0
    %v1136 = vsub.f32 %v1132, 1.0
    %v1137 = vsel %vm1121, %v1117, %v1133
    %v1138 = vsel %vm1122, %v1118, %v1134
    %v1139 = vsel %vm1123, %v1119, %v1135
    %v1140 = vsel %vm1124, %v1120, %v1136
    %v1141 = vadd.f32 %v1137, 1.0
    %v1142 = vadd.f32 %v1138, 1.0
    %v1143 = vadd.f32 %v1139, 1.0
    %v1144 = vadd.f32 %v1140, 1.0
    %v1145 = vperm.slane %v893, 5
    %1147 = vrot.lane.b32.xlu0 %v1145, 32
    %v1148 = vpop.permute.xlu0 %1147
    %v1150 = vadd.f32 %v1105, %v1148
    %v1151 = vadd.f32 %v1108, %v1148
    %v1152 = vadd.f32 %v1111, %v1148
    %v1153 = vadd.f32 %v1114, %v1148
    %vm1154 = vcmp.gt.f32.partialorder %v1150, 0.0
    %vm1155 = vcmp.gt.f32.partialorder %v1151, 0.0
    %vm1156 = vcmp.gt.f32.partialorder %v1152, 0.0
    %vm1157 = vcmp.gt.f32.partialorder %v1153, 0.0
    %v1158 = vmul.f32 %v1150, 1.442695
    %v1159 = vpow.pop %v1158
    %v1160 = vmul.f32 %v1151, 1.442695
    %v1161 = vpow.pop %v1160
    %v1162 = vmul.f32 %v1152, 1.442695
    %v1163 = vpow.pop %v1162
    %v1164 = vmul.f32 %v1153, 1.442695
    %v1165 = vpow.pop %v1164
    %v1166 = vsub.f32 %v1159, 1.0
    %v1167 = vsub.f32 %v1161, 1.0
    %v1168 = vsub.f32 %v1163, 1.0
    %v1169 = vsub.f32 %v1165, 1.0
    %v1170 = vsel %vm1154, %v1150, %v1166
    %v1171 = vsel %vm1155, %v1151, %v1167
    %v1172 = vsel %vm1156, %v1152, %v1168
    %v1173 = vsel %vm1157, %v1153, %v1169
    %v1174 = vadd.f32 %v1170, 1.0
    %v1175 = vadd.f32 %v1171, 1.0
    %v1176 = vadd.f32 %v1172, 1.0
    %v1177 = vadd.f32 %v1173, 1.0
    %v1178 = vmul.f32 %v931, %v931
    %v1179 = vmul.f32 %v934, %v934
    %v1180 = vmul.f32 %v937, %v937
    %v1181 = vmul.f32 %v940, %v940
    %v1182 = vmul.f32 %v988, %v988
    %v1183 = vmul.f32 %v989, %v989
    %v1184 = vmul.f32 %v990, %v990
    %v1185 = vmul.f32 %v991, %v991
    %v1186 = vmax.f32 %v1067, 1e-24
    %v1187 = vmax.f32 %v1068, 1e-24
    %v1188 = vmax.f32 %v1069, 1e-24
    %v1189 = vmax.f32 %v1070, 1e-24
    %v1190 = vrsqrt.pop %v1186
    %v1191 = vmul.f32 %v1190, %v1186
    %v1192 = vmul.f32 %v1191, %v1190
    %v1193 = vmul.f32 0.5, %v1192
    %v1194 = vsub.f32 1.5, %v1193
    %v1195 = vmul.f32 %v1190, %v1194
    %v1196 = vmul.f32 %v1186, %v1195
    %vm1197 = vcmp.eq.f32.partialorder %v1186, inf
    %v1198 = vsel %vm1197, %v1186, %v1196
    %vm1199 = vcmp.eq.f32.partialorder %v1186, 0.0
    %v1200 = vand.u32 %v1186, 2147483648
    %v1201 = vsel %vm1199, %v1200, %v1198
    %v1202 = vrsqrt.pop %v1187
    %v1203 = vmul.f32 %v1202, %v1187
    %v1204 = vmul.f32 %v1203, %v1202
    %v1205 = vmul.f32 0.5, %v1204
    %v1206 = vsub.f32 1.5, %v1205
    %v1207 = vmul.f32 %v1202, %v1206
    %v1208 = vmul.f32 %v1187, %v1207
    %vm1209 = vcmp.eq.f32.partialorder %v1187, inf
    %v1210 = vsel %vm1209, %v1187, %v1208
    %vm1211 = vcmp.eq.f32.partialorder %v1187, 0.0
    %v1212 = vand.u32 %v1187, 2147483648
    %v1213 = vsel %vm1211, %v1212, %v1210
    %v1214 = vrsqrt.pop %v1188
    %v1215 = vmul.f32 %v1214, %v1188
    %v1216 = vmul.f32 %v1215, %v1214
    %v1217 = vmul.f32 0.5, %v1216
    %v1218 = vsub.f32 1.5, %v1217
    %v1219 = vmul.f32 %v1214, %v1218
    %v1220 = vmul.f32 %v1188, %v1219
    %vm1221 = vcmp.eq.f32.partialorder %v1188, inf
    %v1222 = vsel %vm1221, %v1188, %v1220
    %vm1223 = vcmp.eq.f32.partialorder %v1188, 0.0
    %v1224 = vand.u32 %v1188, 2147483648
    %v1225 = vsel %vm1223, %v1224, %v1222
    %v1226 = vrsqrt.pop %v1189
    %v1227 = vmul.f32 %v1226, %v1189
    %v1228 = vmul.f32 %v1227, %v1226
    %v1229 = vmul.f32 0.5, %v1228
    %v1230 = vsub.f32 1.5, %v1229
    %v1231 = vmul.f32 %v1226, %v1230
    %v1232 = vmul.f32 %v1189, %v1231
    %vm1233 = vcmp.eq.f32.partialorder %v1189, inf
    %v1234 = vsel %vm1233, %v1189, %v1232
    %vm1235 = vcmp.eq.f32.partialorder %v1189, 0.0
    %v1236 = vand.u32 %v1189, 2147483648
    %v1237 = vsel %vm1235, %v1236, %v1234
    %v1238 = vmax.f32 %v1141, 1e-24
    %v1239 = vmax.f32 %v1142, 1e-24
    %v1240 = vmax.f32 %v1143, 1e-24
    %v1241 = vmax.f32 %v1144, 1e-24
    %v1242 = vrsqrt.pop %v1238
    %v1243 = vmul.f32 %v1242, %v1238
    %v1244 = vmul.f32 %v1243, %v1242
    %v1245 = vmul.f32 0.5, %v1244
    %v1246 = vsub.f32 1.5, %v1245
    %v1247 = vmul.f32 %v1242, %v1246
    %v1248 = vmul.f32 %v1238, %v1247
    %vm1249 = vcmp.eq.f32.partialorder %v1238, inf
    %v1250 = vsel %vm1249, %v1238, %v1248
    %vm1251 = vcmp.eq.f32.partialorder %v1238, 0.0
    %v1252 = vand.u32 %v1238, 2147483648
    %v1253 = vsel %vm1251, %v1252, %v1250
    %v1254 = vrsqrt.pop %v1239
    %v1255 = vmul.f32 %v1254, %v1239
    %v1256 = vmul.f32 %v1255, %v1254
    %v1257 = vmul.f32 0.5, %v1256
    %v1258 = vsub.f32 1.5, %v1257
    %v1259 = vmul.f32 %v1254, %v1258
    %v1260 = vmul.f32 %v1239, %v1259
    %vm1261 = vcmp.eq.f32.partialorder %v1239, inf
    %v1262 = vsel %vm1261, %v1239, %v1260
    %vm1263 = vcmp.eq.f32.partialorder %v1239, 0.0
    %v1264 = vand.u32 %v1239, 2147483648
    %v1265 = vsel %vm1263, %v1264, %v1262
    %v1266 = vrsqrt.pop %v1240
    %v1267 = vmul.f32 %v1266, %v1240
    %v1268 = vmul.f32 %v1267, %v1266
    %v1269 = vmul.f32 0.5, %v1268
    %v1270 = vsub.f32 1.5, %v1269
    %v1271 = vmul.f32 %v1266, %v1270
    %v1272 = vmul.f32 %v1240, %v1271
    %vm1273 = vcmp.eq.f32.partialorder %v1240, inf
    %v1274 = vsel %vm1273, %v1240, %v1272
    %vm1275 = vcmp.eq.f32.partialorder %v1240, 0.0
    %v1276 = vand.u32 %v1240, 2147483648
    %v1277 = vsel %vm1275, %v1276, %v1274
    %v1278 = vrsqrt.pop %v1241
    %v1279 = vmul.f32 %v1278, %v1241
    %v1280 = vmul.f32 %v1279, %v1278
    %v1281 = vmul.f32 0.5, %v1280
    %v1282 = vsub.f32 1.5, %v1281
    %v1283 = vmul.f32 %v1278, %v1282
    %v1284 = vmul.f32 %v1241, %v1283
    %vm1285 = vcmp.eq.f32.partialorder %v1241, inf
    %v1286 = vsel %vm1285, %v1241, %v1284
    %vm1287 = vcmp.eq.f32.partialorder %v1241, 0.0
    %v1288 = vand.u32 %v1241, 2147483648
    %v1289 = vsel %vm1287, %v1288, %v1286
    %v1290 = vmul.f32 %v1178, %v887
    %v1291 = vmul.f32 %v1179, %v887
    %v1292 = vmul.f32 %v1180, %v887
    %v1293 = vmul.f32 %v1181, %v887
    %v1294 = vsel %vm82, %v1290, 0.0
    %1295 = vadd.xlane.f32.xlu0 %v1294
    %v1296 = vpop.xlane.xlu0 %1295
    %v1297 = vsel %vm82, %v1291, 0.0
    %1298 = vadd.xlane.f32.xlu0 %v1297
    %v1299 = vpop.xlane.xlu0 %1298
    %v1300 = vsel %vm82, %v1292, 0.0
    %1301 = vadd.xlane.f32.xlu0 %v1300
    %v1302 = vpop.xlane.xlu0 %1301
    %v1303 = vsel %vm82, %v1293, 0.0
    %1304 = vadd.xlane.f32.xlu0 %v1303
    %v1305 = vpop.xlane.xlu0 %1304
    %v1307 = vsel %vm82, %v887, 0
    %v1310 = vsel %vm82, %v1182, 0
    %v1313 = vsel %vm82, %v1183, 0
    %v1316 = vsel %vm82, %v1184, 0
    %v1319 = vsel %vm82, %v1185, 0
    %1321 = vmatpush.xpose.msra.mxu0 0.0
    %1322 = vmatpush.xpose.msra.mxu0 0.0
    %1323 = vmatpush.xpose.msra.mxu0 0.0
    %1324 = vmatpush.xpose.msra.mxu0 0.0
    %1325 = vmatpush.xpose.msra.mxu0 0.0
    %1326 = vmatpush.xpose.msra.mxu0 0.0
    %1327 = vmatpush.xpose.msra.mxu0 0.0
    %1328 = vmatpush.xpose.msra.mxu0 0.0
    %1329 = vmatpush.xpose.msra.mxu0 0.0
    %1330 = vmatpush.xpose.msra.mxu0 0.0
    %1331 = vmatpush.xpose.msra.mxu0 0.0
    %1332 = vmatpush.xpose.msra.mxu0 0.0
    %1333 = vmatpush.xpose.msra.mxu0 %v1319
    %1334 = vmatpush.xpose.msra.mxu0 %v1316
    %1335 = vmatpush.xpose.msra.mxu0 %v1313
    %1336 = vmatpush.xpose.msra.mxu0 %v1310
    %1337 = vmatmul.f32.gmra.mxu0 %v1307
    %v1338 = vpop.f32.mrf.mxu0
    %v1339 = vadd.f32 0.0, %v1338
    %1340 = vdwg.mxu0
    %v1341 = vmul.f32 %v931, %v887
    %v1342 = vmul.f32 %v934, %v887
    %v1343 = vmul.f32 %v937, %v887
    %v1344 = vmul.f32 %v940, %v887
    %v1346 = vsel %vm82, %v1341, 0
    %v1349 = vsel %vm82, %v1342, 0
    %v1352 = vsel %vm82, %v1343, 0
    %v1355 = vsel %vm82, %v1344, 0
    %v1358 = vsel %vm82, %v988, 0
    %v1361 = vsel %vm82, %v989, 0
    %v1364 = vsel %vm82, %v990, 0
    %v1367 = vsel %vm82, %v991, 0
    %1369 = vmatpush.xpose.msra.mxu0 0.0
    %1370 = vmatpush.xpose.msra.mxu0 0.0
    %1371 = vmatpush.xpose.msra.mxu0 0.0
    %1372 = vmatpush.xpose.msra.mxu0 0.0
    %1373 = vmatpush.xpose.msra.mxu0 0.0
    %1374 = vmatpush.xpose.msra.mxu0 0.0
    %1375 = vmatpush.xpose.msra.mxu0 0.0
    %1376 = vmatpush.xpose.msra.mxu0 0.0
    %1377 = vmatpush.xpose.msra.mxu0 0.0
    %1378 = vmatpush.xpose.msra.mxu0 0.0
    %1379 = vmatpush.xpose.msra.mxu0 0.0
    %1380 = vmatpush.xpose.msra.mxu0 0.0
    %1381 = vmatpush.xpose.msra.mxu0 %v1367
    %1382 = vmatpush.xpose.msra.mxu0 %v1364
    %1383 = vmatpush.xpose.msra.mxu0 %v1361
    %1384 = vmatpush.xpose.msra.mxu0 %v1358
    %1385 = vmatmul.f32.gmra.mxu0 %v1346
    %v1386 = vpop.f32.mrf.mxu0
    %v1387 = vadd.f32 0.0, %v1386
    %1388 = vmatmul.f32.gmra.mxu0 %v1349
    %v1389 = vpop.f32.mrf.mxu0
    %v1390 = vadd.f32 0.0, %v1389
    %1391 = vmatmul.f32.gmra.mxu0 %v1352
    %v1392 = vpop.f32.mrf.mxu0
    %v1393 = vadd.f32 0.0, %v1392
    %1394 = vmatmul.f32.gmra.mxu0 %v1355
    %v1395 = vpop.f32.mrf.mxu0
    %v1396 = vadd.f32 0.0, %v1395
    %1397 = vdwg.mxu0
    %v1398 = vmul.f32 %v1387, -2.0
    %v1399 = vmul.f32 %v1390, -2.0
    %v1400 = vmul.f32 %v1393, -2.0
    %v1401 = vmul.f32 %v1396, -2.0
    %v1402 = vadd.f32 %v1398, %v1296
    %v1403 = vadd.f32 %v1399, %v1299
    %v1404 = vadd.f32 %v1400, %v1302
    %v1405 = vadd.f32 %v1401, %v1305
    %v1406 = vperm.slane %v1339, 0
    %v1407 = vadd.f32 %v1402, %v1406
    %v1408 = vadd.f32 %v1403, %v1406
    %v1409 = vadd.f32 %v1404, %v1406
    %v1410 = vadd.f32 %v1405, %v1406
    %v1411 = vmul.f32 %v1067, %v887
    %v1412 = vmul.f32 %v1068, %v887
    %v1413 = vmul.f32 %v1069, %v887
    %v1414 = vmul.f32 %v1070, %v887
    %v1415 = vsel %vm82, %v1411, 0.0
    %1416 = vadd.xlane.f32.xlu0 %v1415
    %v1417 = vpop.xlane.xlu0 %1416
    %v1418 = vsel %vm82, %v1412, 0.0
    %1419 = vadd.xlane.f32.xlu0 %v1418
    %v1420 = vpop.xlane.xlu0 %1419
    %v1421 = vsel %vm82, %v1413, 0.0
    %1422 = vadd.xlane.f32.xlu0 %v1421
    %v1423 = vpop.xlane.xlu0 %1422
    %v1424 = vsel %vm82, %v1414, 0.0
    %1425 = vadd.xlane.f32.xlu0 %v1424
    %v1426 = vpop.xlane.xlu0 %1425
    %v1428 = vsel %vm82, %v1141, 0
    %v1431 = vsel %vm82, %v1142, 0
    %v1434 = vsel %vm82, %v1143, 0
    %v1437 = vsel %vm82, %v1144, 0
    %1439 = vmatpush.xpose.msra.mxu0 0.0
    %1440 = vmatpush.xpose.msra.mxu0 0.0
    %1441 = vmatpush.xpose.msra.mxu0 0.0
    %1442 = vmatpush.xpose.msra.mxu0 0.0
    %1443 = vmatpush.xpose.msra.mxu0 0.0
    %1444 = vmatpush.xpose.msra.mxu0 0.0
    %1445 = vmatpush.xpose.msra.mxu0 0.0
    %1446 = vmatpush.xpose.msra.mxu0 0.0
    %1447 = vmatpush.xpose.msra.mxu0 0.0
    %1448 = vmatpush.xpose.msra.mxu0 0.0
    %1449 = vmatpush.xpose.msra.mxu0 0.0
    %1450 = vmatpush.xpose.msra.mxu0 0.0
    %1451 = vmatpush.xpose.msra.mxu0 %v1437
    %1452 = vmatpush.xpose.msra.mxu0 %v1434
    %1453 = vmatpush.xpose.msra.mxu0 %v1431
    %1454 = vmatpush.xpose.msra.mxu0 %v1428
    %1455 = vmatmul.f32.gmra.mxu0 %v1307
    %v1456 = vpop.f32.mrf.mxu0
    %v1457 = vadd.f32 0.0, %v1456
    %1458 = vdwg.mxu0
    %v1459 = vmul.f32 %v1201, %v887
    %v1460 = vmul.f32 %v1213, %v887
    %v1461 = vmul.f32 %v1225, %v887
    %v1462 = vmul.f32 %v1237, %v887
    %v1464 = vsel %vm82, %v1459, 0
    %v1467 = vsel %vm82, %v1460, 0
    %v1470 = vsel %vm82, %v1461, 0
    %v1473 = vsel %vm82, %v1462, 0
    %v1476 = vsel %vm82, %v1253, 0
    %v1479 = vsel %vm82, %v1265, 0
    %v1482 = vsel %vm82, %v1277, 0
    %v1485 = vsel %vm82, %v1289, 0
    %1487 = vmatpush.xpose.msra.mxu0 0.0
    %1488 = vmatpush.xpose.msra.mxu0 0.0
    %1489 = vmatpush.xpose.msra.mxu0 0.0
    %1490 = vmatpush.xpose.msra.mxu0 0.0
    %1491 = vmatpush.xpose.msra.mxu0 0.0
    %1492 = vmatpush.xpose.msra.mxu0 0.0
    %1493 = vmatpush.xpose.msra.mxu0 0.0
    %1494 = vmatpush.xpose.msra.mxu0 0.0
    %1495 = vmatpush.xpose.msra.mxu0 0.0
    %1496 = vmatpush.xpose.msra.mxu0 0.0
    %1497 = vmatpush.xpose.msra.mxu0 0.0
    %1498 = vmatpush.xpose.msra.mxu0 0.0
    %1499 = vmatpush.xpose.msra.mxu0 %v1485
    %1500 = vmatpush.xpose.msra.mxu0 %v1482
    %1501 = vmatpush.xpose.msra.mxu0 %v1479
    %1502 = vmatpush.xpose.msra.mxu0 %v1476
    %1503 = vmatmul.f32.gmra.mxu0 %v1464
    %v1504 = vpop.f32.mrf.mxu0
    %v1505 = vadd.f32 0.0, %v1504
    %1506 = vmatmul.f32.gmra.mxu0 %v1467
    %v1507 = vpop.f32.mrf.mxu0
    %v1508 = vadd.f32 0.0, %v1507
    %1509 = vmatmul.f32.gmra.mxu0 %v1470
    %v1510 = vpop.f32.mrf.mxu0
    %v1511 = vadd.f32 0.0, %v1510
    %1512 = vmatmul.f32.gmra.mxu0 %v1473
    %v1513 = vpop.f32.mrf.mxu0
    %v1514 = vadd.f32 0.0, %v1513
    %1515 = vdwg.mxu0
    %v1516 = vmul.f32 %v1505, -2.0
    %v1517 = vmul.f32 %v1508, -2.0
    %v1518 = vmul.f32 %v1511, -2.0
    %v1519 = vmul.f32 %v1514, -2.0
    %v1520 = vadd.f32 %v1516, %v1417
    %v1521 = vadd.f32 %v1517, %v1420
    %v1522 = vadd.f32 %v1518, %v1423
    %v1523 = vadd.f32 %v1519, %v1426
    %v1524 = vperm.slane %v1457, 0
    %v1525 = vadd.f32 %v1520, %v1524
    %v1526 = vadd.f32 %v1521, %v1524
    %v1527 = vadd.f32 %v1522, %v1524
    %v1528 = vadd.f32 %v1523, %v1524
    %v1529 = vadd.f32 %v1407, %v1525
    %v1530 = vadd.f32 %v1408, %v1526
    %v1531 = vadd.f32 %v1409, %v1527
    %v1532 = vadd.f32 %v1410, %v1528
    %v1533 = vsub.f32 0.0, %v1529
    %v1534 = vsub.f32 0.0, %v1530
    %v1535 = vsub.f32 0.0, %v1531
    %v1536 = vsub.f32 0.0, %v1532
    %v1537 = vmul.f32 %v1533, 0.25
    %v1538 = vmul.f32 %v1534, 0.25
    %v1539 = vmul.f32 %v1535, 0.25
    %v1540 = vmul.f32 %v1536, 0.25
    %v1541 = vadd.f32 %v1537, %v877
    %v1542 = vadd.f32 %v1538, %v878
    %v1543 = vadd.f32 %v1539, %v879
    %v1544 = vadd.f32 %v1540, %v880
    %v1545 = vsel %vm82, %v1541, -inf
    %1546 = vmax.xlane.f32.xlu0 %v1545
    %v1547 = vpop.xlane.xlu0 %1546
    %v1548 = vsel %vm82, %v1542, -inf
    %1549 = vmax.xlane.f32.xlu0 %v1548
    %v1550 = vpop.xlane.xlu0 %1549
    %v1551 = vsel %vm82, %v1543, -inf
    %1552 = vmax.xlane.f32.xlu0 %v1551
    %v1553 = vpop.xlane.xlu0 %1552
    %v1554 = vsel %vm82, %v1544, -inf
    %1555 = vmax.xlane.f32.xlu0 %v1554
    %v1556 = vpop.xlane.xlu0 %1555
    %v1557 = vsub.f32 %v1541, %v1547
    %v1558 = vsub.f32 %v1542, %v1550
    %v1559 = vsub.f32 %v1543, %v1553
    %v1560 = vsub.f32 %v1544, %v1556
    %v1561 = vmul.f32 %v1557, 1.442695
    %v1562 = vpow.pop %v1561
    %v1563 = vmul.f32 %v1558, 1.442695
    %v1564 = vpow.pop %v1563
    %v1565 = vmul.f32 %v1559, 1.442695
    %v1566 = vpow.pop %v1565
    %v1567 = vmul.f32 %v1560, 1.442695
    %v1568 = vpow.pop %v1567
    %v1569 = vsel %vm82, %v1562, 0.0
    %1570 = vadd.xlane.f32.xlu0 %v1569
    %v1571 = vpop.xlane.xlu0 %1570
    %v1572 = vsel %vm82, %v1564, 0.0
    %1573 = vadd.xlane.f32.xlu0 %v1572
    %v1574 = vpop.xlane.xlu0 %1573
    %v1575 = vsel %vm82, %v1566, 0.0
    %1576 = vadd.xlane.f32.xlu0 %v1575
    %v1577 = vpop.xlane.xlu0 %1576
    %v1578 = vsel %vm82, %v1568, 0.0
    %1579 = vadd.xlane.f32.xlu0 %v1578
    %v1580 = vpop.xlane.xlu0 %1579
    %v1581 = vrcp.pop %v1571
    %v1582 = vrcp.pop %v1574
    %v1583 = vrcp.pop %v1577
    %v1584 = vrcp.pop %v1580
    %v1585 = vmul.f32 %v1562, %v1581
    %v1586 = vmul.f32 %v1564, %v1582
    %v1587 = vmul.f32 %v1566, %v1583
    %v1588 = vmul.f32 %v1568, %v1584
    %1589 = vrot.lane.b32.xlu0 %v887, 32
    %v1590 = vpop.permute.xlu0 %1589
    %v1592 = vmul.f32 %v997, %v1590
    %v1593 = vmul.f32 %v998, %v1590
    %v1594 = vmul.f32 %v999, %v1590
    %v1595 = vmul.f32 %v1000, %v1590
    %v1596 = vmul.f32 %v1585, %v1585
    %v1597 = vmul.f32 %v1586, %v1586
    %v1598 = vmul.f32 %v1587, %v1587
    %v1599 = vmul.f32 %v1588, %v1588
    %v1600 = vmul.f32 %v1174, %v1590
    %v1601 = vmul.f32 %v1175, %v1590
    %v1602 = vmul.f32 %v1176, %v1590
    %v1603 = vmul.f32 %v1177, %v1590
    %v1604 = vmul.f32 %v1178, %v892
    %v1605 = vmul.f32 %v1179, %v892
    %v1606 = vmul.f32 %v1180, %v892
    %v1607 = vmul.f32 %v1181, %v892
    %v1608 = vsel %vm82, %v1604, 0.0
    %1609 = vadd.xlane.f32.xlu0 %v1608
    %v1610 = vpop.xlane.xlu0 %1609
    %v1611 = vsel %vm82, %v1605, 0.0
    %1612 = vadd.xlane.f32.xlu0 %v1611
    %v1613 = vpop.xlane.xlu0 %1612
    %v1614 = vsel %vm82, %v1606, 0.0
    %1615 = vadd.xlane.f32.xlu0 %v1614
    %v1616 = vpop.xlane.xlu0 %1615
    %v1617 = vsel %vm82, %v1607, 0.0
    %1618 = vadd.xlane.f32.xlu0 %v1617
    %v1619 = vpop.xlane.xlu0 %1618
    %v1621 = vsel %vm82, %v892, 0
    %1623 = vmatpush.xpose.msra.mxu0 0.0
    %1624 = vmatpush.xpose.msra.mxu0 0.0
    %1625 = vmatpush.xpose.msra.mxu0 0.0
    %1626 = vmatpush.xpose.msra.mxu0 0.0
    %1627 = vmatpush.xpose.msra.mxu0 0.0
    %1628 = vmatpush.xpose.msra.mxu0 0.0
    %1629 = vmatpush.xpose.msra.mxu0 0.0
    %1630 = vmatpush.xpose.msra.mxu0 0.0
    %1631 = vmatpush.xpose.msra.mxu0 0.0
    %1632 = vmatpush.xpose.msra.mxu0 0.0
    %1633 = vmatpush.xpose.msra.mxu0 0.0
    %1634 = vmatpush.xpose.msra.mxu0 0.0
    %1635 = vmatpush.xpose.msra.mxu0 %v1319
    %1636 = vmatpush.xpose.msra.mxu0 %v1316
    %1637 = vmatpush.xpose.msra.mxu0 %v1313
    %1638 = vmatpush.xpose.msra.mxu0 %v1310
    %1639 = vmatmul.f32.gmra.mxu0 %v1621
    %v1640 = vpop.f32.mrf.mxu0
    %v1641 = vadd.f32 0.0, %v1640
    %1642 = vdwg.mxu0
    %v1643 = vmul.f32 %v931, %v892
    %v1644 = vmul.f32 %v934, %v892
    %v1645 = vmul.f32 %v937, %v892
    %v1646 = vmul.f32 %v940, %v892
    %v1648 = vsel %vm82, %v1643, 0
    %v1651 = vsel %vm82, %v1644, 0
    %v1654 = vsel %vm82, %v1645, 0
    %v1657 = vsel %vm82, %v1646, 0
    %1659 = vmatpush.xpose.msra.mxu0 0.0
    %1660 = vmatpush.xpose.msra.mxu0 0.0
    %1661 = vmatpush.xpose.msra.mxu0 0.0
    %1662 = vmatpush.xpose.msra.mxu0 0.0
    %1663 = vmatpush.xpose.msra.mxu0 0.0
    %1664 = vmatpush.xpose.msra.mxu0 0.0
    %1665 = vmatpush.xpose.msra.mxu0 0.0
    %1666 = vmatpush.xpose.msra.mxu0 0.0
    %1667 = vmatpush.xpose.msra.mxu0 0.0
    %1668 = vmatpush.xpose.msra.mxu0 0.0
    %1669 = vmatpush.xpose.msra.mxu0 0.0
    %1670 = vmatpush.xpose.msra.mxu0 0.0
    %1671 = vmatpush.xpose.msra.mxu0 %v1367
    %1672 = vmatpush.xpose.msra.mxu0 %v1364
    %1673 = vmatpush.xpose.msra.mxu0 %v1361
    %1674 = vmatpush.xpose.msra.mxu0 %v1358
    %1675 = vmatmul.f32.gmra.mxu0 %v1648
    %v1676 = vpop.f32.mrf.mxu0
    %v1677 = vadd.f32 0.0, %v1676
    %1678 = vmatmul.f32.gmra.mxu0 %v1651
    %v1679 = vpop.f32.mrf.mxu0
    %v1680 = vadd.f32 0.0, %v1679
    %1681 = vmatmul.f32.gmra.mxu0 %v1654
    %v1682 = vpop.f32.mrf.mxu0
    %v1683 = vadd.f32 0.0, %v1682
    %1684 = vmatmul.f32.gmra.mxu0 %v1657
    %v1685 = vpop.f32.mrf.mxu0
    %v1686 = vadd.f32 0.0, %v1685
    %1687 = vdwg.mxu0
    %v1688 = vmul.f32 %v1677, -2.0
    %v1689 = vmul.f32 %v1680, -2.0
    %v1690 = vmul.f32 %v1683, -2.0
    %v1691 = vmul.f32 %v1686, -2.0
    %v1692 = vadd.f32 %v1688, %v1610
    %v1693 = vadd.f32 %v1689, %v1613
    %v1694 = vadd.f32 %v1690, %v1616
    %v1695 = vadd.f32 %v1691, %v1619
    %v1696 = vperm.slane %v1641, 0
    %v1697 = vadd.f32 %v1692, %v1696
    %v1698 = vadd.f32 %v1693, %v1696
    %v1699 = vadd.f32 %v1694, %v1696
    %v1700 = vadd.f32 %v1695, %v1696
    %v1701 = vmul.f32 %v1067, %v892
    %v1702 = vmul.f32 %v1068, %v892
    %v1703 = vmul.f32 %v1069, %v892
    %v1704 = vmul.f32 %v1070, %v892
    %v1705 = vsel %vm82, %v1701, 0.0
    %1706 = vadd.xlane.f32.xlu0 %v1705
    %v1707 = vpop.xlane.xlu0 %1706
    %v1708 = vsel %vm82, %v1702, 0.0
    %1709 = vadd.xlane.f32.xlu0 %v1708
    %v1710 = vpop.xlane.xlu0 %1709
    %v1711 = vsel %vm82, %v1703, 0.0
    %1712 = vadd.xlane.f32.xlu0 %v1711
    %v1713 = vpop.xlane.xlu0 %1712
    %v1714 = vsel %vm82, %v1704, 0.0
    %1715 = vadd.xlane.f32.xlu0 %v1714
    %v1716 = vpop.xlane.xlu0 %1715
    %1717 = vmatpush.xpose.msra.mxu0 0.0
    %1718 = vmatpush.xpose.msra.mxu0 0.0
    %1719 = vmatpush.xpose.msra.mxu0 0.0
    %1720 = vmatpush.xpose.msra.mxu0 0.0
    %1721 = vmatpush.xpose.msra.mxu0 0.0
    %1722 = vmatpush.xpose.msra.mxu0 0.0
    %1723 = vmatpush.xpose.msra.mxu0 0.0
    %1724 = vmatpush.xpose.msra.mxu0 0.0
    %1725 = vmatpush.xpose.msra.mxu0 0.0
    %1726 = vmatpush.xpose.msra.mxu0 0.0
    %1727 = vmatpush.xpose.msra.mxu0 0.0
    %1728 = vmatpush.xpose.msra.mxu0 0.0
    %1729 = vmatpush.xpose.msra.mxu0 %v1437
    %1730 = vmatpush.xpose.msra.mxu0 %v1434
    %1731 = vmatpush.xpose.msra.mxu0 %v1431
    %1732 = vmatpush.xpose.msra.mxu0 %v1428
    %1733 = vmatmul.f32.gmra.mxu0 %v1621
    %v1734 = vpop.f32.mrf.mxu0
    %v1735 = vadd.f32 0.0, %v1734
    %1736 = vdwg.mxu0
    %v1737 = vmul.f32 %v1201, %v892
    %v1738 = vmul.f32 %v1213, %v892
    %v1739 = vmul.f32 %v1225, %v892
    %v1740 = vmul.f32 %v1237, %v892
    %v1742 = vsel %vm82, %v1737, 0
    %v1745 = vsel %vm82, %v1738, 0
    %v1748 = vsel %vm82, %v1739, 0
    %v1751 = vsel %vm82, %v1740, 0
    %1753 = vmatpush.xpose.msra.mxu0 0.0
    %1754 = vmatpush.xpose.msra.mxu0 0.0
    %1755 = vmatpush.xpose.msra.mxu0 0.0
    %1756 = vmatpush.xpose.msra.mxu0 0.0
    %1757 = vmatpush.xpose.msra.mxu0 0.0
    %1758 = vmatpush.xpose.msra.mxu0 0.0
    %1759 = vmatpush.xpose.msra.mxu0 0.0
    %1760 = vmatpush.xpose.msra.mxu0 0.0
    %1761 = vmatpush.xpose.msra.mxu0 0.0
    %1762 = vmatpush.xpose.msra.mxu0 0.0
    %1763 = vmatpush.xpose.msra.mxu0 0.0
    %1764 = vmatpush.xpose.msra.mxu0 0.0
    %1765 = vmatpush.xpose.msra.mxu0 %v1485
    %1766 = vmatpush.xpose.msra.mxu0 %v1482
    %1767 = vmatpush.xpose.msra.mxu0 %v1479
    %1768 = vmatpush.xpose.msra.mxu0 %v1476
    %1769 = vmatmul.f32.gmra.mxu0 %v1742
    %v1770 = vpop.f32.mrf.mxu0
    %v1771 = vadd.f32 0.0, %v1770
    %1772 = vmatmul.f32.gmra.mxu0 %v1745
    %v1773 = vpop.f32.mrf.mxu0
    %v1774 = vadd.f32 0.0, %v1773
    %1775 = vmatmul.f32.gmra.mxu0 %v1748
    %v1776 = vpop.f32.mrf.mxu0
    %v1777 = vadd.f32 0.0, %v1776
    %1778 = vmatmul.f32.gmra.mxu0 %v1751
    %v1779 = vpop.f32.mrf.mxu0
    %v1780 = vadd.f32 0.0, %v1779
    %1781 = vdwg.mxu0
    %v1782 = vmul.f32 %v1771, -2.0
    %v1783 = vmul.f32 %v1774, -2.0
    %v1784 = vmul.f32 %v1777, -2.0
    %v1785 = vmul.f32 %v1780, -2.0
    %v1786 = vadd.f32 %v1782, %v1707
    %v1787 = vadd.f32 %v1783, %v1710
    %v1788 = vadd.f32 %v1784, %v1713
    %v1789 = vadd.f32 %v1785, %v1716
    %v1790 = vperm.slane %v1735, 0
    %v1791 = vadd.f32 %v1786, %v1790
    %v1792 = vadd.f32 %v1787, %v1790
    %v1793 = vadd.f32 %v1788, %v1790
    %v1794 = vadd.f32 %v1789, %v1790
    %v1795 = vadd.f32 %v1697, %v1791
    %v1796 = vadd.f32 %v1698, %v1792
    %v1797 = vadd.f32 %v1699, %v1793
    %v1798 = vadd.f32 %v1700, %v1794
    %v1799 = vsub.f32 0.0, %v1795
    %v1800 = vsub.f32 0.0, %v1796
    %v1801 = vsub.f32 0.0, %v1797
    %v1802 = vsub.f32 0.0, %v1798
    %v1803 = vmul.f32 %v1799, 0.25
    %v1804 = vmul.f32 %v1800, 0.25
    %v1805 = vmul.f32 %v1801, 0.25
    %v1806 = vmul.f32 %v1802, 0.25
    %v1807 = vadd.f32 %v1803, %v877
    %v1808 = vadd.f32 %v1804, %v878
    %v1809 = vadd.f32 %v1805, %v879
    %v1810 = vadd.f32 %v1806, %v880
    %v1811 = vsel %vm82, %v1807, -inf
    %1812 = vmax.xlane.f32.xlu0 %v1811
    %v1813 = vpop.xlane.xlu0 %1812
    %v1814 = vsel %vm82, %v1808, -inf
    %1815 = vmax.xlane.f32.xlu0 %v1814
    %v1816 = vpop.xlane.xlu0 %1815
    %v1817 = vsel %vm82, %v1809, -inf
    %1818 = vmax.xlane.f32.xlu0 %v1817
    %v1819 = vpop.xlane.xlu0 %1818
    %v1820 = vsel %vm82, %v1810, -inf
    %1821 = vmax.xlane.f32.xlu0 %v1820
    %v1822 = vpop.xlane.xlu0 %1821
    %v1823 = vsub.f32 %v1807, %v1813
    %v1824 = vsub.f32 %v1808, %v1816
    %v1825 = vsub.f32 %v1809, %v1819
    %v1826 = vsub.f32 %v1810, %v1822
    %v1827 = vmul.f32 %v1823, 1.442695
    %v1828 = vpow.pop %v1827
    %v1829 = vmul.f32 %v1824, 1.442695
    %v1830 = vpow.pop %v1829
    %v1831 = vmul.f32 %v1825, 1.442695
    %v1832 = vpow.pop %v1831
    %v1833 = vmul.f32 %v1826, 1.442695
    %v1834 = vpow.pop %v1833
    %v1835 = vsel %vm82, %v1828, 0.0
    %1836 = vadd.xlane.f32.xlu0 %v1835
    %v1837 = vpop.xlane.xlu0 %1836
    %v1838 = vsel %vm82, %v1830, 0.0
    %1839 = vadd.xlane.f32.xlu0 %v1838
    %v1840 = vpop.xlane.xlu0 %1839
    %v1841 = vsel %vm82, %v1832, 0.0
    %1842 = vadd.xlane.f32.xlu0 %v1841
    %v1843 = vpop.xlane.xlu0 %1842
    %v1844 = vsel %vm82, %v1834, 0.0
    %1845 = vadd.xlane.f32.xlu0 %v1844
    %v1846 = vpop.xlane.xlu0 %1845
    %v1847 = vrcp.pop %v1837
    %v1848 = vrcp.pop %v1840
    %v1849 = vrcp.pop %v1843
    %v1850 = vrcp.pop %v1846
    %v1851 = vmul.f32 %v1828, %v1847
    %v1852 = vmul.f32 %v1830, %v1848
    %v1853 = vmul.f32 %v1832, %v1849
    %v1854 = vmul.f32 %v1834, %v1850
    %1855 = vrot.lane.b32.xlu0 %v892, 32
    %v1856 = vpop.permute.xlu0 %1855
    %v1858 = vmul.f32 %v997, %v1856
    %v1859 = vmul.f32 %v998, %v1856
    %v1860 = vmul.f32 %v999, %v1856
    %v1861 = vmul.f32 %v1000, %v1856
    %1866 = vrot.lane.b32.xlu0 %v1858, 96
    %v1867 = vpop.permute.xlu0 %1866
    %1868 = vrot.lane.b32.xlu0 %v1859, 96
    %v1869 = vpop.permute.xlu0 %1868
    %1870 = vrot.lane.b32.xlu0 %v1860, 96
    %v1871 = vpop.permute.xlu0 %1870
    %1872 = vrot.lane.b32.xlu0 %v1861, 96
    %v1873 = vpop.permute.xlu0 %1872
    %v1879 = vsel %vm82, %v1851, 0
    %v1882 = vsel %vm82, %v1852, 0
    %v1885 = vsel %vm82, %v1853, 0
    %v1888 = vsel %vm82, %v1854, 0
    %1890 = vmatpush.msra.mxu0 0.0
    %1891 = vmatpush.msra.mxu0 0.0
    %1892 = vmatpush.msra.mxu0 0.0
    %1893 = vmatpush.msra.mxu0 0.0
    %1894 = vmatpush.msra.mxu0 0.0
    %1895 = vmatpush.msra.mxu0 0.0
    %1896 = vmatpush.msra.mxu0 0.0
    %1897 = vmatpush.msra.mxu0 0.0
    %1898 = vmatpush.msra.mxu0 0.0
    %1899 = vmatpush.msra.mxu0 0.0
    %1900 = vmatpush.msra.mxu0 0.0
    %1901 = vmatpush.msra.mxu0 0.0
    %1902 = vmatpush.msra.mxu0 %v1873
    %1903 = vmatpush.msra.mxu0 %v1871
    %1904 = vmatpush.msra.mxu0 %v1869
    %1905 = vmatpush.msra.mxu0 %v1867
    %1906 = vmatmul.f32.gmra.mxu0 %v1879
    %v1907 = vpop.f32.mrf.mxu0
    %v1908 = vadd.f32 0.0, %v1907
    %1909 = vmatmul.f32.gmra.mxu0 %v1882
    %v1910 = vpop.f32.mrf.mxu0
    %v1911 = vadd.f32 0.0, %v1910
    %1912 = vmatmul.f32.gmra.mxu0 %v1885
    %v1913 = vpop.f32.mrf.mxu0
    %v1914 = vadd.f32 0.0, %v1913
    %1915 = vmatmul.f32.gmra.mxu0 %v1888
    %v1916 = vpop.f32.mrf.mxu0
    %v1917 = vadd.f32 0.0, %v1916
    %1918 = vdwg.mxu0
    %1923 = vrot.lane.b32.xlu0 %v1592, 96
    %v1924 = vpop.permute.xlu0 %1923
    %1925 = vrot.lane.b32.xlu0 %v1593, 96
    %v1926 = vpop.permute.xlu0 %1925
    %1927 = vrot.lane.b32.xlu0 %v1594, 96
    %v1928 = vpop.permute.xlu0 %1927
    %1929 = vrot.lane.b32.xlu0 %v1595, 96
    %v1930 = vpop.permute.xlu0 %1929
    %v1936 = vsel %vm82, %v1585, 0
    %v1939 = vsel %vm82, %v1586, 0
    %v1942 = vsel %vm82, %v1587, 0
    %v1945 = vsel %vm82, %v1588, 0
    %1947 = vmatpush.msra.mxu0 0.0
    %1948 = vmatpush.msra.mxu0 0.0
    %1949 = vmatpush.msra.mxu0 0.0
    %1950 = vmatpush.msra.mxu0 0.0
    %1951 = vmatpush.msra.mxu0 0.0
    %1952 = vmatpush.msra.mxu0 0.0
    %1953 = vmatpush.msra.mxu0 0.0
    %1954 = vmatpush.msra.mxu0 0.0
    %1955 = vmatpush.msra.mxu0 0.0
    %1956 = vmatpush.msra.mxu0 0.0
    %1957 = vmatpush.msra.mxu0 0.0
    %1958 = vmatpush.msra.mxu0 0.0
    %1959 = vmatpush.msra.mxu0 %v1930
    %1960 = vmatpush.msra.mxu0 %v1928
    %1961 = vmatpush.msra.mxu0 %v1926
    %1962 = vmatpush.msra.mxu0 %v1924
    %1963 = vmatmul.f32.gmra.mxu0 %v1936
    %v1964 = vpop.f32.mrf.mxu0
    %v1965 = vadd.f32 %v1908, %v1964
    %1966 = vmatmul.f32.gmra.mxu0 %v1939
    %v1967 = vpop.f32.mrf.mxu0
    %v1968 = vadd.f32 %v1911, %v1967
    %1969 = vmatmul.f32.gmra.mxu0 %v1942
    %v1970 = vpop.f32.mrf.mxu0
    %v1971 = vadd.f32 %v1914, %v1970
    %1972 = vmatmul.f32.gmra.mxu0 %v1945
    %v1973 = vpop.f32.mrf.mxu0
    %v1974 = vadd.f32 %v1917, %v1973
    %1975 = vdwg.mxu0
    %v1976 = vmul.f32 %v1851, %v1851
    %v1977 = vmul.f32 %v1852, %v1852
    %v1978 = vmul.f32 %v1853, %v1853
    %v1979 = vmul.f32 %v1854, %v1854
    %v1980 = vmul.f32 %v1174, %v1856
    %v1981 = vmul.f32 %v1175, %v1856
    %v1982 = vmul.f32 %v1176, %v1856
    %v1983 = vmul.f32 %v1177, %v1856
    %1988 = vrot.lane.b32.xlu0 %v1980, 96
    %v1989 = vpop.permute.xlu0 %1988
    %1990 = vrot.lane.b32.xlu0 %v1981, 96
    %v1991 = vpop.permute.xlu0 %1990
    %1992 = vrot.lane.b32.xlu0 %v1982, 96
    %v1993 = vpop.permute.xlu0 %1992
    %1994 = vrot.lane.b32.xlu0 %v1983, 96
    %v1995 = vpop.permute.xlu0 %1994
    %v2001 = vsel %vm82, %v1976, 0
    %v2004 = vsel %vm82, %v1977, 0
    %v2007 = vsel %vm82, %v1978, 0
    %v2010 = vsel %vm82, %v1979, 0
    %2012 = vmatpush.msra.mxu0 0.0
    %2013 = vmatpush.msra.mxu0 0.0
    %2014 = vmatpush.msra.mxu0 0.0
    %2015 = vmatpush.msra.mxu0 0.0
    %2016 = vmatpush.msra.mxu0 0.0
    %2017 = vmatpush.msra.mxu0 0.0
    %2018 = vmatpush.msra.mxu0 0.0
    %2019 = vmatpush.msra.mxu0 0.0
    %2020 = vmatpush.msra.mxu0 0.0
    %2021 = vmatpush.msra.mxu0 0.0
    %2022 = vmatpush.msra.mxu0 0.0
    %2023 = vmatpush.msra.mxu0 0.0
    %2024 = vmatpush.msra.mxu0 %v1995
    %2025 = vmatpush.msra.mxu0 %v1993
    %2026 = vmatpush.msra.mxu0 %v1991
    %2027 = vmatpush.msra.mxu0 %v1989
    %2028 = vmatmul.f32.gmra.mxu0 %v2001
    %v2029 = vpop.f32.mrf.mxu0
    %v2030 = vadd.f32 0.0, %v2029
    %2031 = vmatmul.f32.gmra.mxu0 %v2004
    %v2032 = vpop.f32.mrf.mxu0
    %v2033 = vadd.f32 0.0, %v2032
    %2034 = vmatmul.f32.gmra.mxu0 %v2007
    %v2035 = vpop.f32.mrf.mxu0
    %v2036 = vadd.f32 0.0, %v2035
    %2037 = vmatmul.f32.gmra.mxu0 %v2010
    %v2038 = vpop.f32.mrf.mxu0
    %v2039 = vadd.f32 0.0, %v2038
    %2040 = vdwg.mxu0
    %2045 = vrot.lane.b32.xlu0 %v1600, 96
    %v2046 = vpop.permute.xlu0 %2045
    %2047 = vrot.lane.b32.xlu0 %v1601, 96
    %v2048 = vpop.permute.xlu0 %2047
    %2049 = vrot.lane.b32.xlu0 %v1602, 96
    %v2050 = vpop.permute.xlu0 %2049
    %2051 = vrot.lane.b32.xlu0 %v1603, 96
    %v2052 = vpop.permute.xlu0 %2051
    %v2058 = vsel %vm82, %v1596, 0
    %v2061 = vsel %vm82, %v1597, 0
    %v2064 = vsel %vm82, %v1598, 0
    %v2067 = vsel %vm82, %v1599, 0
    %2069 = vmatpush.msra.mxu0 0.0
    %2070 = vmatpush.msra.mxu0 0.0
    %2071 = vmatpush.msra.mxu0 0.0
    %2072 = vmatpush.msra.mxu0 0.0
    %2073 = vmatpush.msra.mxu0 0.0
    %2074 = vmatpush.msra.mxu0 0.0
    %2075 = vmatpush.msra.mxu0 0.0
    %2076 = vmatpush.msra.mxu0 0.0
    %2077 = vmatpush.msra.mxu0 0.0
    %2078 = vmatpush.msra.mxu0 0.0
    %2079 = vmatpush.msra.mxu0 0.0
    %2080 = vmatpush.msra.mxu0 0.0
    %2081 = vmatpush.msra.mxu0 %v2052
    %2082 = vmatpush.msra.mxu0 %v2050
    %2083 = vmatpush.msra.mxu0 %v2048
    %2084 = vmatpush.msra.mxu0 %v2046
    %2085 = vmatmul.f32.gmra.mxu0 %v2058
    %v2086 = vpop.f32.mrf.mxu0
    %v2087 = vadd.f32 %v2030, %v2086
    %2088 = vmatmul.f32.gmra.mxu0 %v2061
    %v2089 = vpop.f32.mrf.mxu0
    %v2090 = vadd.f32 %v2033, %v2089
    %2091 = vmatmul.f32.gmra.mxu0 %v2064
    %v2092 = vpop.f32.mrf.mxu0
    %v2093 = vadd.f32 %v2036, %v2092
    %2094 = vmatmul.f32.gmra.mxu0 %v2067
    %v2095 = vpop.f32.mrf.mxu0
    %v2096 = vadd.f32 %v2039, %v2095
    %2097 = vdwg.mxu0
    %v2098 = vld [vmem:[%s7] sm:$0xff]
    %v2099 = vld [vmem:[%s7 + $0x8] sm:$0xff]
    %v2100 = vld [vmem:[%s7 + $0x10] sm:$0xff]
    %v2101 = vld [vmem:[%s7 + $0x18] sm:$0xff]
    %v2102 = vperm.slane %v893, 6
    %v2104 = vsel %vm82, %v1965, 0
    %v2107 = vsel %vm82, %v1968, 0
    %v2110 = vsel %vm82, %v1971, 0
    %v2113 = vsel %vm82, %v1974, 0
    %2115 = vmatpush.msra.mxu0 0.0
    %2116 = vmatpush.msra.mxu0 0.0
    %2117 = vmatpush.msra.mxu0 0.0
    %2118 = vmatpush.msra.mxu0 0.0
    %2119 = vmatpush.msra.mxu0 0.0
    %2120 = vmatpush.msra.mxu0 0.0
    %2121 = vmatpush.msra.mxu0 0.0
    %2122 = vmatpush.msra.mxu0 0.0
    %2123 = vmatpush.msra.mxu0 0.0
    %2124 = vmatpush.msra.mxu0 0.0
    %2125 = vmatpush.msra.mxu0 0.0
    %2126 = vmatpush.msra.mxu0 0.0
    %2127 = vmatpush.msra.mxu0 %v2101
    %2128 = vmatpush.msra.mxu0 %v2100
    %2129 = vmatpush.msra.mxu0 %v2099
    %2130 = vmatpush.msra.mxu0 %v2098
    %2131 = vmatmul.f32.gmra.mxu0 %v2104
    %v2132 = vpop.f32.mrf.mxu0
    %v2133 = vadd.f32 %v2102, %v2132
    %2134 = vmatmul.f32.gmra.mxu0 %v2107
    %v2135 = vpop.f32.mrf.mxu0
    %v2136 = vadd.f32 %v2102, %v2135
    %2137 = vmatmul.f32.gmra.mxu0 %v2110
    %v2138 = vpop.f32.mrf.mxu0
    %v2139 = vadd.f32 %v2102, %v2138
    %2140 = vmatmul.f32.gmra.mxu0 %v2113
    %v2141 = vpop.f32.mrf.mxu0
    %v2142 = vadd.f32 %v2102, %v2141
    %2143 = vdwg.mxu0
    %v2144 = vadd.f32 %v2133, %v861
    %v2145 = vadd.f32 %v2136, %v862
    %v2146 = vadd.f32 %v2139, %v863
    %v2147 = vadd.f32 %v2142, %v864
    %v2148 = vld [vmem:[%s8] sm:$0xff]
    %v2149 = vld [vmem:[%s8 + $0x8] sm:$0xff]
    %v2150 = vld [vmem:[%s8 + $0x10] sm:$0xff]
    %v2151 = vld [vmem:[%s8 + $0x18] sm:$0xff]
    %v2152 = vperm.slane %v893, 7
    %v2154 = vsel %vm82, %v2087, 0
    %v2157 = vsel %vm82, %v2090, 0
    %v2160 = vsel %vm82, %v2093, 0
    %v2163 = vsel %vm82, %v2096, 0
    %2165 = vmatpush.msra.mxu0 0.0
    %2166 = vmatpush.msra.mxu0 0.0
    %2167 = vmatpush.msra.mxu0 0.0
    %2168 = vmatpush.msra.mxu0 0.0
    %2169 = vmatpush.msra.mxu0 0.0
    %2170 = vmatpush.msra.mxu0 0.0
    %2171 = vmatpush.msra.mxu0 0.0
    %2172 = vmatpush.msra.mxu0 0.0
    %2173 = vmatpush.msra.mxu0 0.0
    %2174 = vmatpush.msra.mxu0 0.0
    %2175 = vmatpush.msra.mxu0 0.0
    %2176 = vmatpush.msra.mxu0 0.0
    %2177 = vmatpush.msra.mxu0 %v2151
    %2178 = vmatpush.msra.mxu0 %v2150
    %2179 = vmatpush.msra.mxu0 %v2149
    %2180 = vmatpush.msra.mxu0 %v2148
    %2181 = vmatmul.f32.gmra.mxu0 %v2154
    %v2182 = vpop.f32.mrf.mxu0
    %v2183 = vadd.f32 %v2152, %v2182
    %2184 = vmatmul.f32.gmra.mxu0 %v2157
    %v2185 = vpop.f32.mrf.mxu0
    %v2186 = vadd.f32 %v2152, %v2185
    %2187 = vmatmul.f32.gmra.mxu0 %v2160
    %v2188 = vpop.f32.mrf.mxu0
    %v2189 = vadd.f32 %v2152, %v2188
    %2190 = vmatmul.f32.gmra.mxu0 %v2163
    %v2191 = vpop.f32.mrf.mxu0
    %v2192 = vadd.f32 %v2152, %v2191
    %2193 = vdwg.mxu0
    %v2194 = vadd.f32 %v2183, %v869
    %v2195 = vadd.f32 %v2186, %v870
    %v2196 = vadd.f32 %v2189, %v871
    %v2197 = vadd.f32 %v2192, %v872
    %v2198 = vsel %vm82, %v2144, 0.0
    %2199 = vadd.xlane.f32.xlu0 %v2198
    %v2200 = vpop.xlane.xlu0 %2199
    %v2201 = vsel %vm82, %v2145, 0.0
    %2202 = vadd.xlane.f32.xlu0 %v2201
    %v2203 = vpop.xlane.xlu0 %2202
    %v2204 = vsel %vm82, %v2146, 0.0
    %2205 = vadd.xlane.f32.xlu0 %v2204
    %v2206 = vpop.xlane.xlu0 %2205
    %v2207 = vsel %vm82, %v2147, 0.0
    %2208 = vadd.xlane.f32.xlu0 %v2207
    %v2209 = vpop.xlane.xlu0 %2208
    %v2210 = vsel %vm82, %v2194, 0.0
    %2211 = vadd.xlane.f32.xlu0 %v2210
    %v2212 = vpop.xlane.xlu0 %2211
    %v2213 = vsel %vm82, %v2195, 0.0
    %2214 = vadd.xlane.f32.xlu0 %v2213
    %v2215 = vpop.xlane.xlu0 %2214
    %v2216 = vsel %vm82, %v2196, 0.0
    %2217 = vadd.xlane.f32.xlu0 %v2216
    %v2218 = vpop.xlane.xlu0 %2217
    %v2219 = vsel %vm82, %v2197, 0.0
    %2220 = vadd.xlane.f32.xlu0 %v2219
    %v2221 = vpop.xlane.xlu0 %2220
    %v2222 = vmul.f32 %v2200, %v137
    %v2223 = vmul.f32 %v2203, %v137
    %v2224 = vmul.f32 %v2206, %v137
    %v2225 = vmul.f32 %v2209, %v137
    %v2226 = vmul.f32 %v2212, %v137
    %v2227 = vmul.f32 %v2215, %v137
    %v2228 = vmul.f32 %v2218, %v137
    %v2229 = vmul.f32 %v2221, %v137
    %v2230 = vsub.f32 %v2144, %v2222
    %v2231 = vsub.f32 %v2145, %v2223
    %v2232 = vsub.f32 %v2146, %v2224
    %v2233 = vsub.f32 %v2147, %v2225
    %v2234 = vsub.f32 %v2194, %v2226
    %v2235 = vsub.f32 %v2195, %v2227
    %v2236 = vsub.f32 %v2196, %v2228
    %v2237 = vsub.f32 %v2197, %v2229
    %v2238 = vmul.f32 %v2230, %v2230
    %v2239 = vmul.f32 %v2231, %v2231
    %v2240 = vmul.f32 %v2232, %v2232
    %v2241 = vmul.f32 %v2233, %v2233
    %v2242 = vmul.f32 %v2234, %v2234
    %v2243 = vmul.f32 %v2235, %v2235
    %v2244 = vmul.f32 %v2236, %v2236
    %v2245 = vmul.f32 %v2237, %v2237
    %v2246 = vsel %vm82, %v2238, 0.0
    %2247 = vadd.xlane.f32.xlu0 %v2246
    %v2248 = vpop.xlane.xlu0 %2247
    %v2249 = vsel %vm82, %v2239, 0.0
    %2250 = vadd.xlane.f32.xlu0 %v2249
    %v2251 = vpop.xlane.xlu0 %2250
    %v2252 = vsel %vm82, %v2240, 0.0
    %2253 = vadd.xlane.f32.xlu0 %v2252
    %v2254 = vpop.xlane.xlu0 %2253
    %v2255 = vsel %vm82, %v2241, 0.0
    %2256 = vadd.xlane.f32.xlu0 %v2255
    %v2257 = vpop.xlane.xlu0 %2256
    %v2258 = vsel %vm82, %v2242, 0.0
    %2259 = vadd.xlane.f32.xlu0 %v2258
    %v2260 = vpop.xlane.xlu0 %2259
    %v2261 = vsel %vm82, %v2243, 0.0
    %2262 = vadd.xlane.f32.xlu0 %v2261
    %v2263 = vpop.xlane.xlu0 %2262
    %v2264 = vsel %vm82, %v2244, 0.0
    %2265 = vadd.xlane.f32.xlu0 %v2264
    %v2266 = vpop.xlane.xlu0 %2265
    %v2267 = vsel %vm82, %v2245, 0.0
    %2268 = vadd.xlane.f32.xlu0 %v2267
    %v2269 = vpop.xlane.xlu0 %2268
    %v2270 = vmul.f32 %v2248, %v137
    %v2271 = vmul.f32 %v2251, %v137
    %v2272 = vmul.f32 %v2254, %v137
    %v2273 = vmul.f32 %v2257, %v137
    %v2274 = vmul.f32 %v2260, %v137
    %v2275 = vmul.f32 %v2263, %v137
    %v2276 = vmul.f32 %v2266, %v137
    %v2277 = vmul.f32 %v2269, %v137
    %v2278 = vadd.f32 %v2270, 1e-12
    %v2279 = vadd.f32 %v2271, 1e-12
    %v2280 = vadd.f32 %v2272, 1e-12
    %v2281 = vadd.f32 %v2273, 1e-12
    %v2282 = vadd.f32 %v2274, 1e-12
    %v2283 = vadd.f32 %v2275, 1e-12
    %v2284 = vadd.f32 %v2276, 1e-12
    %v2285 = vadd.f32 %v2277, 1e-12
    %v2286 = vrsqrt.pop %v2278
    %v2287 = vmul.f32 %v2286, %v2278
    %v2288 = vmul.f32 %v2287, %v2286
    %v2289 = vmul.f32 0.5, %v2288
    %v2290 = vsub.f32 1.5, %v2289
    %v2291 = vmul.f32 %v2286, %v2290
    %v2292 = vmul.f32 %v2278, %v2291
    %vm2293 = vcmp.eq.f32.partialorder %v2278, inf
    %v2294 = vsel %vm2293, %v2278, %v2292
    %vm2295 = vcmp.eq.f32.partialorder %v2278, 0.0
    %v2296 = vand.u32 %v2278, 2147483648
    %v2297 = vsel %vm2295, %v2296, %v2294
    %v2298 = vrsqrt.pop %v2279
    %v2299 = vmul.f32 %v2298, %v2279
    %v2300 = vmul.f32 %v2299, %v2298
    %v2301 = vmul.f32 0.5, %v2300
    %v2302 = vsub.f32 1.5, %v2301
    %v2303 = vmul.f32 %v2298, %v2302
    %v2304 = vmul.f32 %v2279, %v2303
    %vm2305 = vcmp.eq.f32.partialorder %v2279, inf
    %v2306 = vsel %vm2305, %v2279, %v2304
    %vm2307 = vcmp.eq.f32.partialorder %v2279, 0.0
    %v2308 = vand.u32 %v2279, 2147483648
    %v2309 = vsel %vm2307, %v2308, %v2306
    %v2310 = vrsqrt.pop %v2280
    %v2311 = vmul.f32 %v2310, %v2280
    %v2312 = vmul.f32 %v2311, %v2310
    %v2313 = vmul.f32 0.5, %v2312
    %v2314 = vsub.f32 1.5, %v2313
    %v2315 = vmul.f32 %v2310, %v2314
    %v2316 = vmul.f32 %v2280, %v2315
    %vm2317 = vcmp.eq.f32.partialorder %v2280, inf
    %v2318 = vsel %vm2317, %v2280, %v2316
    %vm2319 = vcmp.eq.f32.partialorder %v2280, 0.0
    %v2320 = vand.u32 %v2280, 2147483648
    %v2321 = vsel %vm2319, %v2320, %v2318
    %v2322 = vrsqrt.pop %v2281
    %v2323 = vmul.f32 %v2322, %v2281
    %v2324 = vmul.f32 %v2323, %v2322
    %v2325 = vmul.f32 0.5, %v2324
    %v2326 = vsub.f32 1.5, %v2325
    %v2327 = vmul.f32 %v2322, %v2326
    %v2328 = vmul.f32 %v2281, %v2327
    %vm2329 = vcmp.eq.f32.partialorder %v2281, inf
    %v2330 = vsel %vm2329, %v2281, %v2328
    %vm2331 = vcmp.eq.f32.partialorder %v2281, 0.0
    %v2332 = vand.u32 %v2281, 2147483648
    %v2333 = vsel %vm2331, %v2332, %v2330
    %v2334 = vrsqrt.pop %v2282
    %v2335 = vmul.f32 %v2334, %v2282
    %v2336 = vmul.f32 %v2335, %v2334
    %v2337 = vmul.f32 0.5, %v2336
    %v2338 = vsub.f32 1.5, %v2337
    %v2339 = vmul.f32 %v2334, %v2338
    %v2340 = vmul.f32 %v2282, %v2339
    %vm2341 = vcmp.eq.f32.partialorder %v2282, inf
    %v2342 = vsel %vm2341, %v2282, %v2340
    %vm2343 = vcmp.eq.f32.partialorder %v2282, 0.0
    %v2344 = vand.u32 %v2282, 2147483648
    %v2345 = vsel %vm2343, %v2344, %v2342
    %v2346 = vrsqrt.pop %v2283
    %v2347 = vmul.f32 %v2346, %v2283
    %v2348 = vmul.f32 %v2347, %v2346
    %v2349 = vmul.f32 0.5, %v2348
    %v2350 = vsub.f32 1.5, %v2349
    %v2351 = vmul.f32 %v2346, %v2350
    %v2352 = vmul.f32 %v2283, %v2351
    %vm2353 = vcmp.eq.f32.partialorder %v2283, inf
    %v2354 = vsel %vm2353, %v2283, %v2352
    %vm2355 = vcmp.eq.f32.partialorder %v2283, 0.0
    %v2356 = vand.u32 %v2283, 2147483648
    %v2357 = vsel %vm2355, %v2356, %v2354
    %v2358 = vrsqrt.pop %v2284
    %v2359 = vmul.f32 %v2358, %v2284
    %v2360 = vmul.f32 %v2359, %v2358
    %v2361 = vmul.f32 0.5, %v2360
    %v2362 = vsub.f32 1.5, %v2361
    %v2363 = vmul.f32 %v2358, %v2362
    %v2364 = vmul.f32 %v2284, %v2363
    %vm2365 = vcmp.eq.f32.partialorder %v2284, inf
    %v2366 = vsel %vm2365, %v2284, %v2364
    %vm2367 = vcmp.eq.f32.partialorder %v2284, 0.0
    %v2368 = vand.u32 %v2284, 2147483648
    %v2369 = vsel %vm2367, %v2368, %v2366
    %v2370 = vrsqrt.pop %v2285
    %v2371 = vmul.f32 %v2370, %v2285
    %v2372 = vmul.f32 %v2371, %v2370
    %v2373 = vmul.f32 0.5, %v2372
    %v2374 = vsub.f32 1.5, %v2373
    %v2375 = vmul.f32 %v2370, %v2374
    %v2376 = vmul.f32 %v2285, %v2375
    %vm2377 = vcmp.eq.f32.partialorder %v2285, inf
    %v2378 = vsel %vm2377, %v2285, %v2376
    %vm2379 = vcmp.eq.f32.partialorder %v2285, 0.0
    %v2380 = vand.u32 %v2285, 2147483648
    %v2381 = vsel %vm2379, %v2380, %v2378
    %v2382 = vrcp.pop %v2297
    %v2383 = vmul.f32 %v2297, %v2382
    %v2384 = vsub.f32 1.0, %v2383
    %v2385 = vmul.f32 %v2382, %v2384
    %v2386 = vadd.f32 %v2382, %v2385
    %vm2387 = vweird.f32 %v2297
    %vm2388 = vweird.f32 %v2382
    %vm2389 = vmor %vm2387, %vm2388
    %v2390 = vsel %vm2389, %v2382, %v2386
    %v2391 = vand.u32 2147483647, %v2297
    %vm2392 = vcmp.eq.f32.partialorder %v2391, 8.507059e+37
    %v2393 = vand.u32 %v2297, 2147483648
    %v2394 = vor.u32 1.1754944e-38, %v2393
    %v2395 = vsel %vm2392, %v2394, %v2390
    %v2396 = vmul.f32 %v2230, %v2395
    %v2397 = vrcp.pop %v2309
    %v2398 = vmul.f32 %v2309, %v2397
    %v2399 = vsub.f32 1.0, %v2398
    %v2400 = vmul.f32 %v2397, %v2399
    %v2401 = vadd.f32 %v2397, %v2400
    %vm2402 = vweird.f32 %v2309
    %vm2403 = vweird.f32 %v2397
    %vm2404 = vmor %vm2402, %vm2403
    %v2405 = vsel %vm2404, %v2397, %v2401
    %v2406 = vand.u32 2147483647, %v2309
    %vm2407 = vcmp.eq.f32.partialorder %v2406, 8.507059e+37
    %v2408 = vand.u32 %v2309, 2147483648
    %v2409 = vor.u32 1.1754944e-38, %v2408
    %v2410 = vsel %vm2407, %v2409, %v2405
    %v2411 = vmul.f32 %v2231, %v2410
    %v2412 = vrcp.pop %v2321
    %v2413 = vmul.f32 %v2321, %v2412
    %v2414 = vsub.f32 1.0, %v2413
    %v2415 = vmul.f32 %v2412, %v2414
    %v2416 = vadd.f32 %v2412, %v2415
    %vm2417 = vweird.f32 %v2321
    %vm2418 = vweird.f32 %v2412
    %vm2419 = vmor %vm2417, %vm2418
    %v2420 = vsel %vm2419, %v2412, %v2416
    %v2421 = vand.u32 2147483647, %v2321
    %vm2422 = vcmp.eq.f32.partialorder %v2421, 8.507059e+37
    %v2423 = vand.u32 %v2321, 2147483648
    %v2424 = vor.u32 1.1754944e-38, %v2423
    %v2425 = vsel %vm2422, %v2424, %v2420
    %v2426 = vmul.f32 %v2232, %v2425
    %v2427 = vrcp.pop %v2333
    %v2428 = vmul.f32 %v2333, %v2427
    %v2429 = vsub.f32 1.0, %v2428
    %v2430 = vmul.f32 %v2427, %v2429
    %v2431 = vadd.f32 %v2427, %v2430
    %vm2432 = vweird.f32 %v2333
    %vm2433 = vweird.f32 %v2427
    %vm2434 = vmor %vm2432, %vm2433
    %v2435 = vsel %vm2434, %v2427, %v2431
    %v2436 = vand.u32 2147483647, %v2333
    %vm2437 = vcmp.eq.f32.partialorder %v2436, 8.507059e+37
    %v2438 = vand.u32 %v2333, 2147483648
    %v2439 = vor.u32 1.1754944e-38, %v2438
    %v2440 = vsel %vm2437, %v2439, %v2435
    %v2441 = vmul.f32 %v2233, %v2440
    %v2442 = vrcp.pop %v2345
    %v2443 = vmul.f32 %v2345, %v2442
    %v2444 = vsub.f32 1.0, %v2443
    %v2445 = vmul.f32 %v2442, %v2444
    %v2446 = vadd.f32 %v2442, %v2445
    %vm2447 = vweird.f32 %v2345
    %vm2448 = vweird.f32 %v2442
    %vm2449 = vmor %vm2447, %vm2448
    %v2450 = vsel %vm2449, %v2442, %v2446
    %v2451 = vand.u32 2147483647, %v2345
    %vm2452 = vcmp.eq.f32.partialorder %v2451, 8.507059e+37
    %v2453 = vand.u32 %v2345, 2147483648
    %v2454 = vor.u32 1.1754944e-38, %v2453
    %v2455 = vsel %vm2452, %v2454, %v2450
    %v2456 = vmul.f32 %v2234, %v2455
    %v2457 = vrcp.pop %v2357
    %v2458 = vmul.f32 %v2357, %v2457
    %v2459 = vsub.f32 1.0, %v2458
    %v2460 = vmul.f32 %v2457, %v2459
    %v2461 = vadd.f32 %v2457, %v2460
    %vm2462 = vweird.f32 %v2357
    %vm2463 = vweird.f32 %v2457
    %vm2464 = vmor %vm2462, %vm2463
    %v2465 = vsel %vm2464, %v2457, %v2461
    %v2466 = vand.u32 2147483647, %v2357
    %vm2467 = vcmp.eq.f32.partialorder %v2466, 8.507059e+37
    %v2468 = vand.u32 %v2357, 2147483648
    %v2469 = vor.u32 1.1754944e-38, %v2468
    %v2470 = vsel %vm2467, %v2469, %v2465
    %v2471 = vmul.f32 %v2235, %v2470
    %v2472 = vrcp.pop %v2369
    %v2473 = vmul.f32 %v2369, %v2472
    %v2474 = vsub.f32 1.0, %v2473
    %v2475 = vmul.f32 %v2472, %v2474
    %v2476 = vadd.f32 %v2472, %v2475
    %vm2477 = vweird.f32 %v2369
    %vm2478 = vweird.f32 %v2472
    %vm2479 = vmor %vm2477, %vm2478
    %v2480 = vsel %vm2479, %v2472, %v2476
    %v2481 = vand.u32 2147483647, %v2369
    %vm2482 = vcmp.eq.f32.partialorder %v2481, 8.507059e+37
    %v2483 = vand.u32 %v2369, 2147483648
    %v2484 = vor.u32 1.1754944e-38, %v2483
    %v2485 = vsel %vm2482, %v2484, %v2480
    %v2486 = vmul.f32 %v2236, %v2485
    %v2487 = vrcp.pop %v2381
    %v2488 = vmul.f32 %v2381, %v2487
    %v2489 = vsub.f32 1.0, %v2488
    %v2490 = vmul.f32 %v2487, %v2489
    %v2491 = vadd.f32 %v2487, %v2490
    %vm2492 = vweird.f32 %v2381
    %vm2493 = vweird.f32 %v2487
    %vm2494 = vmor %vm2492, %vm2493
    %v2495 = vsel %vm2494, %v2487, %v2491
    %v2496 = vand.u32 2147483647, %v2381
    %vm2497 = vcmp.eq.f32.partialorder %v2496, 8.507059e+37
    %v2498 = vand.u32 %v2381, 2147483648
    %v2499 = vor.u32 1.1754944e-38, %v2498
    %v2500 = vsel %vm2497, %v2499, %v2495
    %v2501 = vmul.f32 %v2237, %v2500
    %v2502 = vperm.slane %v894, 0
    %v2503 = vmul.f32 %v2396, %v2502
    %v2504 = vmul.f32 %v2411, %v2502
    %v2505 = vmul.f32 %v2426, %v2502
    %v2506 = vmul.f32 %v2441, %v2502
    %v2507 = vmul.f32 %v2456, %v2502
    %v2508 = vmul.f32 %v2471, %v2502
    %v2509 = vmul.f32 %v2486, %v2502
    %v2510 = vmul.f32 %v2501, %v2502
    %v2511 = vperm.slane %v894, 1
    %v2512 = vadd.f32 %v2503, %v2511
    %v2513 = vadd.f32 %v2504, %v2511
    %v2514 = vadd.f32 %v2505, %v2511
    %v2515 = vadd.f32 %v2506, %v2511
    %v2516 = vadd.f32 %v2507, %v2511
    %v2517 = vadd.f32 %v2508, %v2511
    %v2518 = vadd.f32 %v2509, %v2511
    %v2519 = vadd.f32 %v2510, %v2511
    %v2520 = vld [vmem:[#allocation2] sm:$0xff]
    %v2521 = vld [vmem:[#allocation2 + $0x8] sm:$0xff]
    %v2522 = vld [vmem:[#allocation2 + $0x10] sm:$0xff]
    %v2523 = vld [vmem:[#allocation2 + $0x18] sm:$0xff]
    %v2525 = vperm.slane %v895, 0
    %v2528 = vsel %vm82, %v2512, 0
    %v2531 = vsel %vm82, %v2513, 0
    %v2534 = vsel %vm82, %v2514, 0
    %v2537 = vsel %vm82, %v2515, 0
    %v2540 = vsel %vm82, %v2516, 0
    %v2543 = vsel %vm82, %v2517, 0
    %v2546 = vsel %vm82, %v2518, 0
    %v2549 = vsel %vm82, %v2519, 0
    %2551 = vmatpush.msra.mxu0 0.0
    %2552 = vmatpush.msra.mxu0 0.0
    %2553 = vmatpush.msra.mxu0 0.0
    %2554 = vmatpush.msra.mxu0 0.0
    %2555 = vmatpush.msra.mxu0 0.0
    %2556 = vmatpush.msra.mxu0 0.0
    %2557 = vmatpush.msra.mxu0 0.0
    %2558 = vmatpush.msra.mxu0 0.0
    %2559 = vmatpush.msra.mxu0 0.0
    %2560 = vmatpush.msra.mxu0 0.0
    %2561 = vmatpush.msra.mxu0 0.0
    %2562 = vmatpush.msra.mxu0 0.0
    %2563 = vmatpush.msra.mxu0 %v2523
    %2564 = vmatpush.msra.mxu0 %v2522
    %2565 = vmatpush.msra.mxu0 %v2521
    %2566 = vmatpush.msra.mxu0 %v2520
    %2567 = vmatmul.f32.gmra.mxu0 %v2528
    %v2568 = vpop.f32.mrf.mxu0
    %v2569 = vadd.f32 %v2525, %v2568
    %2570 = vmatmul.f32.gmra.mxu0 %v2531
    %v2571 = vpop.f32.mrf.mxu0
    %v2572 = vadd.f32 %v2525, %v2571
    %2573 = vmatmul.f32.gmra.mxu0 %v2534
    %v2574 = vpop.f32.mrf.mxu0
    %v2575 = vadd.f32 %v2525, %v2574
    %2576 = vmatmul.f32.gmra.mxu0 %v2537
    %v2577 = vpop.f32.mrf.mxu0
    %v2578 = vadd.f32 %v2525, %v2577
    %2579 = vmatmul.f32.gmra.mxu0 %v2540
    %v2580 = vpop.f32.mrf.mxu0
    %v2581 = vadd.f32 %v2525, %v2580
    %2582 = vmatmul.f32.gmra.mxu0 %v2543
    %v2583 = vpop.f32.mrf.mxu0
    %v2584 = vadd.f32 %v2525, %v2583
    %2585 = vmatmul.f32.gmra.mxu0 %v2546
    %v2586 = vpop.f32.mrf.mxu0
    %v2587 = vadd.f32 %v2525, %v2586
    %2588 = vmatmul.f32.gmra.mxu0 %v2549
    %v2589 = vpop.f32.mrf.mxu0
    %v2590 = vadd.f32 %v2525, %v2589
    %2591 = vdwg.mxu0
    %v2592 = vmul.f32 %v2569, 0.5
    %v2593 = vmul.f32 %v2572, 0.5
    %v2594 = vmul.f32 %v2575, 0.5
    %v2595 = vmul.f32 %v2578, 0.5
    %v2596 = vmul.f32 %v2581, 0.5
    %v2597 = vmul.f32 %v2584, 0.5
    %v2598 = vmul.f32 %v2587, 0.5
    %v2599 = vmul.f32 %v2590, 0.5
    %v2600 = vmul.f32 %v2569, 0.044715
    %v2601 = vmul.f32 %v2572, 0.044715
    %v2602 = vmul.f32 %v2575, 0.044715
    %v2603 = vmul.f32 %v2578, 0.044715
    %v2604 = vmul.f32 %v2581, 0.044715
    %v2605 = vmul.f32 %v2584, 0.044715
    %v2606 = vmul.f32 %v2587, 0.044715
    %v2607 = vmul.f32 %v2590, 0.044715
    %v2608 = vmul.f32 %v2600, %v2569
    %v2609 = vmul.f32 %v2601, %v2572
    %v2610 = vmul.f32 %v2602, %v2575
    %v2611 = vmul.f32 %v2603, %v2578
    %v2612 = vmul.f32 %v2604, %v2581
    %v2613 = vmul.f32 %v2605, %v2584
    %v2614 = vmul.f32 %v2606, %v2587
    %v2615 = vmul.f32 %v2607, %v2590
    %v2616 = vmul.f32 %v2608, %v2569
    %v2617 = vmul.f32 %v2609, %v2572
    %v2618 = vmul.f32 %v2610, %v2575
    %v2619 = vmul.f32 %v2611, %v2578
    %v2620 = vmul.f32 %v2612, %v2581
    %v2621 = vmul.f32 %v2613, %v2584
    %v2622 = vmul.f32 %v2614, %v2587
    %v2623 = vmul.f32 %v2615, %v2590
    %v2624 = vadd.f32 %v2569, %v2616
    %v2625 = vadd.f32 %v2572, %v2617
    %v2626 = vadd.f32 %v2575, %v2618
    %v2627 = vadd.f32 %v2578, %v2619
    %v2628 = vadd.f32 %v2581, %v2620
    %v2629 = vadd.f32 %v2584, %v2621
    %v2630 = vadd.f32 %v2587, %v2622
    %v2631 = vadd.f32 %v2590, %v2623
    %v2632 = vmul.f32 %v2624, 0.7978846
    %v2633 = vmul.f32 %v2625, 0.7978846
    %v2634 = vmul.f32 %v2626, 0.7978846
    %v2635 = vmul.f32 %v2627, 0.7978846
    %v2636 = vmul.f32 %v2628, 0.7978846
    %v2637 = vmul.f32 %v2629, 0.7978846
    %v2638 = vmul.f32 %v2630, 0.7978846
    %v2639 = vmul.f32 %v2631, 0.7978846
    %v2640 = vtanh.pop %v2632
    %v2641 = vtanh.pop %v2633
    %v2642 = vtanh.pop %v2634
    %v2643 = vtanh.pop %v2635
    %v2644 = vtanh.pop %v2636
    %v2645 = vtanh.pop %v2637
    %v2646 = vtanh.pop %v2638
    %v2647 = vtanh.pop %v2639
    %v2648 = vadd.f32 %v2640, 1.0
    %v2649 = vadd.f32 %v2641, 1.0
    %v2650 = vadd.f32 %v2642, 1.0
    %v2651 = vadd.f32 %v2643, 1.0
    %v2652 = vadd.f32 %v2644, 1.0
    %v2653 = vadd.f32 %v2645, 1.0
    %v2654 = vadd.f32 %v2646, 1.0
    %v2655 = vadd.f32 %v2647, 1.0
    %v2656 = vmul.f32 %v2592, %v2648
    %v2657 = vmul.f32 %v2593, %v2649
    %v2658 = vmul.f32 %v2594, %v2650
    %v2659 = vmul.f32 %v2595, %v2651
    %v2660 = vmul.f32 %v2596, %v2652
    %v2661 = vmul.f32 %v2597, %v2653
    %v2662 = vmul.f32 %v2598, %v2654
    %v2663 = vmul.f32 %v2599, %v2655
    %v2664 = vld [vmem:[%s10] sm:$0xff]
    %v2665 = vld [vmem:[%s10 + $0x8] sm:$0xff]
    %v2666 = vld [vmem:[%s10 + $0x10] sm:$0xff]
    %v2667 = vld [vmem:[%s10 + $0x18] sm:$0xff]
    %v2668 = vld [vmem:[%s10 + $0x20] sm:$0xff]
    %v2669 = vld [vmem:[%s10 + $0x28] sm:$0xff]
    %v2670 = vld [vmem:[%s10 + $0x30] sm:$0xff]
    %v2671 = vld [vmem:[%s10 + $0x38] sm:$0xff]
    %v2672 = vld [vmem:[%s10 + $0x40] sm:$0xff]
    %v2673 = vld [vmem:[%s10 + $0x48] sm:$0xff]
    %v2674 = vld [vmem:[%s10 + $0x50] sm:$0xff]
    %v2675 = vld [vmem:[%s10 + $0x58] sm:$0xff]
    %v2676 = vld [vmem:[%s10 + $0x60] sm:$0xff]
    %v2677 = vld [vmem:[%s10 + $0x68] sm:$0xff]
    %v2678 = vld [vmem:[%s10 + $0x70] sm:$0xff]
    %v2679 = vld [vmem:[%s10 + $0x78] sm:$0xff]
    %v2680 = vperm.slane %v894, 2
    %2681 = vmatpush.msra.mxu0 %v2679
    %2682 = vmatpush.msra.mxu0 %v2678
    %2683 = vmatpush.msra.mxu0 %v2677
    %2684 = vmatpush.msra.mxu0 %v2676
    %2685 = vmatpush.msra.mxu0 %v2675
    %2686 = vmatpush.msra.mxu0 %v2674
    %2687 = vmatpush.msra.mxu0 %v2673
    %2688 = vmatpush.msra.mxu0 %v2672
    %2689 = vmatpush.msra.mxu0 %v2671
    %2690 = vmatpush.msra.mxu0 %v2670
    %2691 = vmatpush.msra.mxu0 %v2669
    %2692 = vmatpush.msra.mxu0 %v2668
    %2693 = vmatpush.msra.mxu0 %v2667
    %2694 = vmatpush.msra.mxu0 %v2666
    %2695 = vmatpush.msra.mxu0 %v2665
    %2696 = vmatpush.msra.mxu0 %v2664
    %2697 = vmatmul.f32.gmra.mxu0 %v2656
    %v2698 = vpop.f32.mrf.mxu0
    %v2699 = vadd.f32 %v2680, %v2698
    %2700 = vmatmul.f32.gmra.mxu0 %v2657
    %v2701 = vpop.f32.mrf.mxu0
    %v2702 = vadd.f32 %v2680, %v2701
    %2703 = vmatmul.f32.gmra.mxu0 %v2658
    %v2704 = vpop.f32.mrf.mxu0
    %v2705 = vadd.f32 %v2680, %v2704
    %2706 = vmatmul.f32.gmra.mxu0 %v2659
    %v2707 = vpop.f32.mrf.mxu0
    %v2708 = vadd.f32 %v2680, %v2707
    %2709 = vmatmul.f32.gmra.mxu0 %v2660
    %v2710 = vpop.f32.mrf.mxu0
    %v2711 = vadd.f32 %v2680, %v2710
    %2712 = vmatmul.f32.gmra.mxu0 %v2661
    %v2713 = vpop.f32.mrf.mxu0
    %v2714 = vadd.f32 %v2680, %v2713
    %2715 = vmatmul.f32.gmra.mxu0 %v2662
    %v2716 = vpop.f32.mrf.mxu0
    %v2717 = vadd.f32 %v2680, %v2716
    %2718 = vmatmul.f32.gmra.mxu0 %v2663
    %v2719 = vpop.f32.mrf.mxu0
    %v2720 = vadd.f32 %v2680, %v2719
    %2721 = vdwg.mxu0
    %v2722 = vadd.f32 %v2699, %v2512
    %v2723 = vadd.f32 %v2702, %v2513
    %v2724 = vadd.f32 %v2705, %v2514
    %v2725 = vadd.f32 %v2708, %v2515
    %v2726 = vadd.f32 %v2711, %v2516
    %v2727 = vadd.f32 %v2714, %v2517
    %v2728 = vadd.f32 %v2717, %v2518
    %v2729 = vadd.f32 %v2720, %v2519
    %v2730 = vsel %vm82, %v2722, 0.0
    %2731 = vadd.xlane.f32.xlu0 %v2730
    %v2732 = vpop.xlane.xlu0 %2731
    %v2733 = vsel %vm82, %v2723, 0.0
    %2734 = vadd.xlane.f32.xlu0 %v2733
    %v2735 = vpop.xlane.xlu0 %2734
    %v2736 = vsel %vm82, %v2724, 0.0
    %2737 = vadd.xlane.f32.xlu0 %v2736
    %v2738 = vpop.xlane.xlu0 %2737
    %v2739 = vsel %vm82, %v2725, 0.0
    %2740 = vadd.xlane.f32.xlu0 %v2739
    %v2741 = vpop.xlane.xlu0 %2740
    %v2742 = vsel %vm82, %v2726, 0.0
    %2743 = vadd.xlane.f32.xlu0 %v2742
    %v2744 = vpop.xlane.xlu0 %2743
    %v2745 = vsel %vm82, %v2727, 0.0
    %2746 = vadd.xlane.f32.xlu0 %v2745
    %v2747 = vpop.xlane.xlu0 %2746
    %v2748 = vsel %vm82, %v2728, 0.0
    %2749 = vadd.xlane.f32.xlu0 %v2748
    %v2750 = vpop.xlane.xlu0 %2749
    %v2751 = vsel %vm82, %v2729, 0.0
    %2752 = vadd.xlane.f32.xlu0 %v2751
    %v2753 = vpop.xlane.xlu0 %2752
    %v2754 = vmul.f32 %v2732, %v137
    %v2755 = vmul.f32 %v2735, %v137
    %v2756 = vmul.f32 %v2738, %v137
    %v2757 = vmul.f32 %v2741, %v137
    %v2758 = vmul.f32 %v2744, %v137
    %v2759 = vmul.f32 %v2747, %v137
    %v2760 = vmul.f32 %v2750, %v137
    %v2761 = vmul.f32 %v2753, %v137
    %v2762 = vsub.f32 %v2722, %v2754
    %v2763 = vsub.f32 %v2723, %v2755
    %v2764 = vsub.f32 %v2724, %v2756
    %v2765 = vsub.f32 %v2725, %v2757
    %v2766 = vsub.f32 %v2726, %v2758
    %v2767 = vsub.f32 %v2727, %v2759
    %v2768 = vsub.f32 %v2728, %v2760
    %v2769 = vsub.f32 %v2729, %v2761
    %v2770 = vmul.f32 %v2762, %v2762
    %v2771 = vmul.f32 %v2763, %v2763
    %v2772 = vmul.f32 %v2764, %v2764
    %v2773 = vmul.f32 %v2765, %v2765
    %v2774 = vmul.f32 %v2766, %v2766
    %v2775 = vmul.f32 %v2767, %v2767
    %v2776 = vmul.f32 %v2768, %v2768
    %v2777 = vmul.f32 %v2769, %v2769
    %v2778 = vsel %vm82, %v2770, 0.0
    %2779 = vadd.xlane.f32.xlu0 %v2778
    %v2780 = vpop.xlane.xlu0 %2779
    %v2781 = vsel %vm82, %v2771, 0.0
    %2782 = vadd.xlane.f32.xlu0 %v2781
    %v2783 = vpop.xlane.xlu0 %2782
    %v2784 = vsel %vm82, %v2772, 0.0
    %2785 = vadd.xlane.f32.xlu0 %v2784
    %v2786 = vpop.xlane.xlu0 %2785
    %v2787 = vsel %vm82, %v2773, 0.0
    %2788 = vadd.xlane.f32.xlu0 %v2787
    %v2789 = vpop.xlane.xlu0 %2788
    %v2790 = vsel %vm82, %v2774, 0.0
    %2791 = vadd.xlane.f32.xlu0 %v2790
    %v2792 = vpop.xlane.xlu0 %2791
    %v2793 = vsel %vm82, %v2775, 0.0
    %2794 = vadd.xlane.f32.xlu0 %v2793
    %v2795 = vpop.xlane.xlu0 %2794
    %v2796 = vsel %vm82, %v2776, 0.0
    %2797 = vadd.xlane.f32.xlu0 %v2796
    %v2798 = vpop.xlane.xlu0 %2797
    %v2799 = vsel %vm82, %v2777, 0.0
    %2800 = vadd.xlane.f32.xlu0 %v2799
    %v2801 = vpop.xlane.xlu0 %2800
    %v2802 = vmul.f32 %v2780, %v137
    %v2803 = vmul.f32 %v2783, %v137
    %v2804 = vmul.f32 %v2786, %v137
    %v2805 = vmul.f32 %v2789, %v137
    %v2806 = vmul.f32 %v2792, %v137
    %v2807 = vmul.f32 %v2795, %v137
    %v2808 = vmul.f32 %v2798, %v137
    %v2809 = vmul.f32 %v2801, %v137
    %v2810 = vadd.f32 %v2802, 1e-12
    %v2811 = vadd.f32 %v2803, 1e-12
    %v2812 = vadd.f32 %v2804, 1e-12
    %v2813 = vadd.f32 %v2805, 1e-12
    %v2814 = vadd.f32 %v2806, 1e-12
    %v2815 = vadd.f32 %v2807, 1e-12
    %v2816 = vadd.f32 %v2808, 1e-12
    %v2817 = vadd.f32 %v2809, 1e-12
    %v2818 = vrsqrt.pop %v2810
    %v2819 = vmul.f32 %v2818, %v2810
    %v2820 = vmul.f32 %v2819, %v2818
    %v2821 = vmul.f32 0.5, %v2820
    %v2822 = vsub.f32 1.5, %v2821
    %v2823 = vmul.f32 %v2818, %v2822
    %v2824 = vmul.f32 %v2810, %v2823
    %vm2825 = vcmp.eq.f32.partialorder %v2810, inf
    %v2826 = vsel %vm2825, %v2810, %v2824
    %vm2827 = vcmp.eq.f32.partialorder %v2810, 0.0
    %v2828 = vand.u32 %v2810, 2147483648
    %v2829 = vsel %vm2827, %v2828, %v2826
    %v2830 = vrsqrt.pop %v2811
    %v2831 = vmul.f32 %v2830, %v2811
    %v2832 = vmul.f32 %v2831, %v2830
    %v2833 = vmul.f32 0.5, %v2832
    %v2834 = vsub.f32 1.5, %v2833
    %v2835 = vmul.f32 %v2830, %v2834
    %v2836 = vmul.f32 %v2811, %v2835
    %vm2837 = vcmp.eq.f32.partialorder %v2811, inf
    %v2838 = vsel %vm2837, %v2811, %v2836
    %vm2839 = vcmp.eq.f32.partialorder %v2811, 0.0
    %v2840 = vand.u32 %v2811, 2147483648
    %v2841 = vsel %vm2839, %v2840, %v2838
    %v2842 = vrsqrt.pop %v2812
    %v2843 = vmul.f32 %v2842, %v2812
    %v2844 = vmul.f32 %v2843, %v2842
    %v2845 = vmul.f32 0.5, %v2844
    %v2846 = vsub.f32 1.5, %v2845
    %v2847 = vmul.f32 %v2842, %v2846
    %v2848 = vmul.f32 %v2812, %v2847
    %vm2849 = vcmp.eq.f32.partialorder %v2812, inf
    %v2850 = vsel %vm2849, %v2812, %v2848
    %vm2851 = vcmp.eq.f32.partialorder %v2812, 0.0
    %v2852 = vand.u32 %v2812, 2147483648
    %v2853 = vsel %vm2851, %v2852, %v2850
    %v2854 = vrsqrt.pop %v2813
    %v2855 = vmul.f32 %v2854, %v2813
    %v2856 = vmul.f32 %v2855, %v2854
    %v2857 = vmul.f32 0.5, %v2856
    %v2858 = vsub.f32 1.5, %v2857
    %v2859 = vmul.f32 %v2854, %v2858
    %v2860 = vmul.f32 %v2813, %v2859
    %vm2861 = vcmp.eq.f32.partialorder %v2813, inf
    %v2862 = vsel %vm2861, %v2813, %v2860
    %vm2863 = vcmp.eq.f32.partialorder %v2813, 0.0
    %v2864 = vand.u32 %v2813, 2147483648
    %v2865 = vsel %vm2863, %v2864, %v2862
    %v2866 = vrsqrt.pop %v2814
    %v2867 = vmul.f32 %v2866, %v2814
    %v2868 = vmul.f32 %v2867, %v2866
    %v2869 = vmul.f32 0.5, %v2868
    %v2870 = vsub.f32 1.5, %v2869
    %v2871 = vmul.f32 %v2866, %v2870
    %v2872 = vmul.f32 %v2814, %v2871
    %vm2873 = vcmp.eq.f32.partialorder %v2814, inf
    %v2874 = vsel %vm2873, %v2814, %v2872
    %vm2875 = vcmp.eq.f32.partialorder %v2814, 0.0
    %v2876 = vand.u32 %v2814, 2147483648
    %v2877 = vsel %vm2875, %v2876, %v2874
    %v2878 = vrsqrt.pop %v2815
    %v2879 = vmul.f32 %v2878, %v2815
    %v2880 = vmul.f32 %v2879, %v2878
    %v2881 = vmul.f32 0.5, %v2880
    %v2882 = vsub.f32 1.5, %v2881
    %v2883 = vmul.f32 %v2878, %v2882
    %v2884 = vmul.f32 %v2815, %v2883
    %vm2885 = vcmp.eq.f32.partialorder %v2815, inf
    %v2886 = vsel %vm2885, %v2815, %v2884
    %vm2887 = vcmp.eq.f32.partialorder %v2815, 0.0
    %v2888 = vand.u32 %v2815, 2147483648
    %v2889 = vsel %vm2887, %v2888, %v2886
    %v2890 = vrsqrt.pop %v2816
    %v2891 = vmul.f32 %v2890, %v2816
    %v2892 = vmul.f32 %v2891, %v2890
    %v2893 = vmul.f32 0.5, %v2892
    %v2894 = vsub.f32 1.5, %v2893
    %v2895 = vmul.f32 %v2890, %v2894
    %v2896 = vmul.f32 %v2816, %v2895
    %vm2897 = vcmp.eq.f32.partialorder %v2816, inf
    %v2898 = vsel %vm2897, %v2816, %v2896
    %vm2899 = vcmp.eq.f32.partialorder %v2816, 0.0
    %v2900 = vand.u32 %v2816, 2147483648
    %v2901 = vsel %vm2899, %v2900, %v2898
    %v2902 = vrsqrt.pop %v2817
    %v2903 = vmul.f32 %v2902, %v2817
    %v2904 = vmul.f32 %v2903, %v2902
    %v2905 = vmul.f32 0.5, %v2904
    %v2906 = vsub.f32 1.5, %v2905
    %v2907 = vmul.f32 %v2902, %v2906
    %v2908 = vmul.f32 %v2817, %v2907
    %vm2909 = vcmp.eq.f32.partialorder %v2817, inf
    %v2910 = vsel %vm2909, %v2817, %v2908
    %vm2911 = vcmp.eq.f32.partialorder %v2817, 0.0
    %v2912 = vand.u32 %v2817, 2147483648
    %v2913 = vsel %vm2911, %v2912, %v2910
    %v2914 = vrcp.pop %v2829
    %v2915 = vmul.f32 %v2829, %v2914
    %v2916 = vsub.f32 1.0, %v2915
    %v2917 = vmul.f32 %v2914, %v2916
    %v2918 = vadd.f32 %v2914, %v2917
    %vm2919 = vweird.f32 %v2829
    %vm2920 = vweird.f32 %v2914
    %vm2921 = vmor %vm2919, %vm2920
    %v2922 = vsel %vm2921, %v2914, %v2918
    %v2923 = vand.u32 2147483647, %v2829
    %vm2924 = vcmp.eq.f32.partialorder %v2923, 8.507059e+37
    %v2925 = vand.u32 %v2829, 2147483648
    %v2926 = vor.u32 1.1754944e-38, %v2925
    %v2927 = vsel %vm2924, %v2926, %v2922
    %v2928 = vmul.f32 %v2762, %v2927
    %v2929 = vrcp.pop %v2841
    %v2930 = vmul.f32 %v2841, %v2929
    %v2931 = vsub.f32 1.0, %v2930
    %v2932 = vmul.f32 %v2929, %v2931
    %v2933 = vadd.f32 %v2929, %v2932
    %vm2934 = vweird.f32 %v2841
    %vm2935 = vweird.f32 %v2929
    %vm2936 = vmor %vm2934, %vm2935
    %v2937 = vsel %vm2936, %v2929, %v2933
    %v2938 = vand.u32 2147483647, %v2841
    %vm2939 = vcmp.eq.f32.partialorder %v2938, 8.507059e+37
    %v2940 = vand.u32 %v2841, 2147483648
    %v2941 = vor.u32 1.1754944e-38, %v2940
    %v2942 = vsel %vm2939, %v2941, %v2937
    %v2943 = vmul.f32 %v2763, %v2942
    %v2944 = vrcp.pop %v2853
    %v2945 = vmul.f32 %v2853, %v2944
    %v2946 = vsub.f32 1.0, %v2945
    %v2947 = vmul.f32 %v2944, %v2946
    %v2948 = vadd.f32 %v2944, %v2947
    %vm2949 = vweird.f32 %v2853
    %vm2950 = vweird.f32 %v2944
    %vm2951 = vmor %vm2949, %vm2950
    %v2952 = vsel %vm2951, %v2944, %v2948
    %v2953 = vand.u32 2147483647, %v2853
    %vm2954 = vcmp.eq.f32.partialorder %v2953, 8.507059e+37
    %v2955 = vand.u32 %v2853, 2147483648
    %v2956 = vor.u32 1.1754944e-38, %v2955
    %v2957 = vsel %vm2954, %v2956, %v2952
    %v2958 = vmul.f32 %v2764, %v2957
    %v2959 = vrcp.pop %v2865
    %v2960 = vmul.f32 %v2865, %v2959
    %v2961 = vsub.f32 1.0, %v2960
    %v2962 = vmul.f32 %v2959, %v2961
    %v2963 = vadd.f32 %v2959, %v2962
    %vm2964 = vweird.f32 %v2865
    %vm2965 = vweird.f32 %v2959
    %vm2966 = vmor %vm2964, %vm2965
    %v2967 = vsel %vm2966, %v2959, %v2963
    %v2968 = vand.u32 2147483647, %v2865
    %vm2969 = vcmp.eq.f32.partialorder %v2968, 8.507059e+37
    %v2970 = vand.u32 %v2865, 2147483648
    %v2971 = vor.u32 1.1754944e-38, %v2970
    %v2972 = vsel %vm2969, %v2971, %v2967
    %v2973 = vmul.f32 %v2765, %v2972
    %v2974 = vrcp.pop %v2877
    %v2975 = vmul.f32 %v2877, %v2974
    %v2976 = vsub.f32 1.0, %v2975
    %v2977 = vmul.f32 %v2974, %v2976
    %v2978 = vadd.f32 %v2974, %v2977
    %vm2979 = vweird.f32 %v2877
    %vm2980 = vweird.f32 %v2974
    %vm2981 = vmor %vm2979, %vm2980
    %v2982 = vsel %vm2981, %v2974, %v2978
    %v2983 = vand.u32 2147483647, %v2877
    %vm2984 = vcmp.eq.f32.partialorder %v2983, 8.507059e+37
    %v2985 = vand.u32 %v2877, 2147483648
    %v2986 = vor.u32 1.1754944e-38, %v2985
    %v2987 = vsel %vm2984, %v2986, %v2982
    %v2988 = vmul.f32 %v2766, %v2987
    %v2989 = vrcp.pop %v2889
    %v2990 = vmul.f32 %v2889, %v2989
    %v2991 = vsub.f32 1.0, %v2990
    %v2992 = vmul.f32 %v2989, %v2991
    %v2993 = vadd.f32 %v2989, %v2992
    %vm2994 = vweird.f32 %v2889
    %vm2995 = vweird.f32 %v2989
    %vm2996 = vmor %vm2994, %vm2995
    %v2997 = vsel %vm2996, %v2989, %v2993
    %v2998 = vand.u32 2147483647, %v2889
    %vm2999 = vcmp.eq.f32.partialorder %v2998, 8.507059e+37
    %v3000 = vand.u32 %v2889, 2147483648
    %v3001 = vor.u32 1.1754944e-38, %v3000
    %v3002 = vsel %vm2999, %v3001, %v2997
    %v3003 = vmul.f32 %v2767, %v3002
    %v3004 = vrcp.pop %v2901
    %v3005 = vmul.f32 %v2901, %v3004
    %v3006 = vsub.f32 1.0, %v3005
    %v3007 = vmul.f32 %v3004, %v3006
    %v3008 = vadd.f32 %v3004, %v3007
    %vm3009 = vweird.f32 %v2901
    %vm3010 = vweird.f32 %v3004
    %vm3011 = vmor %vm3009, %vm3010
    %v3012 = vsel %vm3011, %v3004, %v3008
    %v3013 = vand.u32 2147483647, %v2901
    %vm3014 = vcmp.eq.f32.partialorder %v3013, 8.507059e+37
    %v3015 = vand.u32 %v2901, 2147483648
    %v3016 = vor.u32 1.1754944e-38, %v3015
    %v3017 = vsel %vm3014, %v3016, %v3012
    %v3018 = vmul.f32 %v2768, %v3017
    %v3019 = vrcp.pop %v2913
    %v3020 = vmul.f32 %v2913, %v3019
    %v3021 = vsub.f32 1.0, %v3020
    %v3022 = vmul.f32 %v3019, %v3021
    %v3023 = vadd.f32 %v3019, %v3022
    %vm3024 = vweird.f32 %v2913
    %vm3025 = vweird.f32 %v3019
    %vm3026 = vmor %vm3024, %vm3025
    %v3027 = vsel %vm3026, %v3019, %v3023
    %v3028 = vand.u32 2147483647, %v2913
    %vm3029 = vcmp.eq.f32.partialorder %v3028, 8.507059e+37
    %v3030 = vand.u32 %v2913, 2147483648
    %v3031 = vor.u32 1.1754944e-38, %v3030
    %v3032 = vsel %vm3029, %v3031, %v3027
    %v3033 = vmul.f32 %v2769, %v3032
    %v3034 = vperm.slane %v894, 3
    %v3035 = vmul.f32 %v2928, %v3034
    %v3036 = vmul.f32 %v2943, %v3034
    %v3037 = vmul.f32 %v2958, %v3034
    %v3038 = vmul.f32 %v2973, %v3034
    %v3039 = vmul.f32 %v2988, %v3034
    %v3040 = vmul.f32 %v3003, %v3034
    %v3041 = vmul.f32 %v3018, %v3034
    %v3042 = vmul.f32 %v3033, %v3034
    %v3043 = vperm.slane %v894, 4
    %v3044 = vadd.f32 %v3035, %v3043
    %v3045 = vadd.f32 %v3036, %v3043
    %v3046 = vadd.f32 %v3037, %v3043
    %v3047 = vadd.f32 %v3038, %v3043
    %v3048 = vadd.f32 %v3039, %v3043
    %v3049 = vadd.f32 %v3040, %v3043
    %v3050 = vadd.f32 %v3041, %v3043
    %v3051 = vadd.f32 %v3042, %v3043
    %s3052 = scalar_lea.vmem %s11, 16
    %v3053 = vld [vmem:[%s3052] sm:$0xff]
    %v3054 = vld [vmem:[%s3052 + $0x8] sm:$0x1f]
    %s3055 = scalar_lea.vmem %s12, 1
    %v3056 = vld [vmem:[%s3055] sm:$0x1]
    %s3057 = scalar_lea.vmem %s3, 32
    %v3058 = vld [vmem:[%s3057] sm:$0xff]
    %v3059 = vld [vmem:[%s3057 + $0x8] sm:$0xff]
    %v3060 = vld [vmem:[%s3057 + $0x10] sm:$0xff]
    %v3061 = vld [vmem:[%s3057 + $0x18] sm:$0xff]
    %v3062 = vperm.slane %v3053, 0
    %v3064 = vsel %vm82, %v3044, 0
    %v3067 = vsel %vm82, %v3045, 0
    %v3070 = vsel %vm82, %v3046, 0
    %v3073 = vsel %vm82, %v3047, 0
    %3075 = vmatpush.msra.mxu0 0.0
    %3076 = vmatpush.msra.mxu0 0.0
    %3077 = vmatpush.msra.mxu0 0.0
    %3078 = vmatpush.msra.mxu0 0.0
    %3079 = vmatpush.msra.mxu0 0.0
    %3080 = vmatpush.msra.mxu0 0.0
    %3081 = vmatpush.msra.mxu0 0.0
    %3082 = vmatpush.msra.mxu0 0.0
    %3083 = vmatpush.msra.mxu0 0.0
    %3084 = vmatpush.msra.mxu0 0.0
    %3085 = vmatpush.msra.mxu0 0.0
    %3086 = vmatpush.msra.mxu0 0.0
    %3087 = vmatpush.msra.mxu0 %v3061
    %3088 = vmatpush.msra.mxu0 %v3060
    %3089 = vmatpush.msra.mxu0 %v3059
    %3090 = vmatpush.msra.mxu0 %v3058
    %3091 = vmatmul.f32.gmra.mxu0 %v3064
    %v3092 = vpop.f32.mrf.mxu0
    %v3093 = vadd.f32 %v3062, %v3092
    %3094 = vmatmul.f32.gmra.mxu0 %v3067
    %v3095 = vpop.f32.mrf.mxu0
    %v3096 = vadd.f32 %v3062, %v3095
    %3097 = vmatmul.f32.gmra.mxu0 %v3070
    %v3098 = vpop.f32.mrf.mxu0
    %v3099 = vadd.f32 %v3062, %v3098
    %3100 = vmatmul.f32.gmra.mxu0 %v3073
    %v3101 = vpop.f32.mrf.mxu0
    %v3102 = vadd.f32 %v3062, %v3101
    %3103 = vdwg.mxu0
    %s3104 = scalar_lea.vmem %s4, 32
    %v3105 = vld [vmem:[%s3104] sm:$0xff]
    %v3106 = vld [vmem:[%s3104 + $0x8] sm:$0xff]
    %v3107 = vld [vmem:[%s3104 + $0x10] sm:$0xff]
    %v3108 = vld [vmem:[%s3104 + $0x18] sm:$0xff]
    %3109 = vmatpush.msra.mxu0 0.0
    %3110 = vmatpush.msra.mxu0 0.0
    %3111 = vmatpush.msra.mxu0 0.0
    %3112 = vmatpush.msra.mxu0 0.0
    %3113 = vmatpush.msra.mxu0 0.0
    %3114 = vmatpush.msra.mxu0 0.0
    %3115 = vmatpush.msra.mxu0 0.0
    %3116 = vmatpush.msra.mxu0 0.0
    %3117 = vmatpush.msra.mxu0 0.0
    %3118 = vmatpush.msra.mxu0 0.0
    %3119 = vmatpush.msra.mxu0 0.0
    %3120 = vmatpush.msra.mxu0 0.0
    %3121 = vmatpush.msra.mxu0 %v3108
    %3122 = vmatpush.msra.mxu0 %v3107
    %3123 = vmatpush.msra.mxu0 %v3106
    %3124 = vmatpush.msra.mxu0 %v3105
    %3125 = vmatmul.f32.gmra.mxu0 %v947
    %v3126 = vpop.f32.mrf.mxu0
    %v3127 = vadd.f32 0.0, %v3126
    %3128 = vmatmul.f32.gmra.mxu0 %v950
    %v3129 = vpop.f32.mrf.mxu0
    %v3130 = vadd.f32 0.0, %v3129
    %3131 = vmatmul.f32.gmra.mxu0 %v953
    %v3132 = vpop.f32.mrf.mxu0
    %v3133 = vadd.f32 0.0, %v3132
    %3134 = vmatmul.f32.gmra.mxu0 %v956
    %v3135 = vpop.f32.mrf.mxu0
    %v3136 = vadd.f32 0.0, %v3135
    %3137 = vdwg.mxu0
    %v3138 = vperm.slane %v3053, 1
    %v3139 = vadd.f32 %v3127, %v3138
    %v3140 = vadd.f32 %v3130, %v3138
    %v3141 = vadd.f32 %v3133, %v3138
    %v3142 = vadd.f32 %v3136, %v3138
    %v3143 = vperm.slane %v3053, 2
    %3145 = vrot.lane.b32.xlu0 %v3143, 32
    %v3146 = vpop.permute.xlu0 %3145
    %v3148 = vadd.f32 %v3127, %v3146
    %v3149 = vadd.f32 %v3130, %v3146
    %v3150 = vadd.f32 %v3133, %v3146
    %v3151 = vadd.f32 %v3136, %v3146
    %s3152 = scalar_lea.vmem %s5, 32
    %v3153 = vld [vmem:[%s3152] sm:$0xff]
    %v3154 = vld [vmem:[%s3152 + $0x8] sm:$0xff]
    %v3155 = vld [vmem:[%s3152 + $0x10] sm:$0xff]
    %v3156 = vld [vmem:[%s3152 + $0x18] sm:$0xff]
    %v3157 = vperm.slane %v3053, 3
    %v3159 = vsel %vm82, %v3048, 0
    %v3162 = vsel %vm82, %v3049, 0
    %v3165 = vsel %vm82, %v3050, 0
    %v3168 = vsel %vm82, %v3051, 0
    %3170 = vmatpush.msra.mxu0 0.0
    %3171 = vmatpush.msra.mxu0 0.0
    %3172 = vmatpush.msra.mxu0 0.0
    %3173 = vmatpush.msra.mxu0 0.0
    %3174 = vmatpush.msra.mxu0 0.0
    %3175 = vmatpush.msra.mxu0 0.0
    %3176 = vmatpush.msra.mxu0 0.0
    %3177 = vmatpush.msra.mxu0 0.0
    %3178 = vmatpush.msra.mxu0 0.0
    %3179 = vmatpush.msra.mxu0 0.0
    %3180 = vmatpush.msra.mxu0 0.0
    %3181 = vmatpush.msra.mxu0 0.0
    %3182 = vmatpush.msra.mxu0 %v3156
    %3183 = vmatpush.msra.mxu0 %v3155
    %3184 = vmatpush.msra.mxu0 %v3154
    %3185 = vmatpush.msra.mxu0 %v3153
    %3186 = vmatmul.f32.gmra.mxu0 %v3159
    %v3187 = vpop.f32.mrf.mxu0
    %v3188 = vadd.f32 %v3157, %v3187
    %3189 = vmatmul.f32.gmra.mxu0 %v3162
    %v3190 = vpop.f32.mrf.mxu0
    %v3191 = vadd.f32 %v3157, %v3190
    %3192 = vmatmul.f32.gmra.mxu0 %v3165
    %v3193 = vpop.f32.mrf.mxu0
    %v3194 = vadd.f32 %v3157, %v3193
    %3195 = vmatmul.f32.gmra.mxu0 %v3168
    %v3196 = vpop.f32.mrf.mxu0
    %v3197 = vadd.f32 %v3157, %v3196
    %3198 = vdwg.mxu0
    %vm3199 = vcmp.gt.f32.partialorder %v3188, 0.0
    %vm3200 = vcmp.gt.f32.partialorder %v3191, 0.0
    %vm3201 = vcmp.gt.f32.partialorder %v3194, 0.0
    %vm3202 = vcmp.gt.f32.partialorder %v3197, 0.0
    %v3203 = vmul.f32 %v3188, 1.442695
    %v3204 = vpow.pop %v3203
    %v3205 = vmul.f32 %v3191, 1.442695
    %v3206 = vpow.pop %v3205
    %v3207 = vmul.f32 %v3194, 1.442695
    %v3208 = vpow.pop %v3207
    %v3209 = vmul.f32 %v3197, 1.442695
    %v3210 = vpow.pop %v3209
    %v3211 = vsub.f32 %v3204, 1.0
    %v3212 = vsub.f32 %v3206, 1.0
    %v3213 = vsub.f32 %v3208, 1.0
    %v3214 = vsub.f32 %v3210, 1.0
    %v3215 = vsel %vm3199, %v3188, %v3211
    %v3216 = vsel %vm3200, %v3191, %v3212
    %v3217 = vsel %vm3201, %v3194, %v3213
    %v3218 = vsel %vm3202, %v3197, %v3214
    %v3219 = vadd.f32 %v3215, 1.0
    %v3220 = vadd.f32 %v3216, 1.0
    %v3221 = vadd.f32 %v3217, 1.0
    %v3222 = vadd.f32 %v3218, 1.0
    %s3223 = scalar_lea.vmem %s6, 32
    %v3224 = vld [vmem:[%s3223] sm:$0xff]
    %v3225 = vld [vmem:[%s3223 + $0x8] sm:$0xff]
    %v3226 = vld [vmem:[%s3223 + $0x10] sm:$0xff]
    %v3227 = vld [vmem:[%s3223 + $0x18] sm:$0xff]
    %3228 = vmatpush.msra.mxu0 0.0
    %3229 = vmatpush.msra.mxu0 0.0
    %3230 = vmatpush.msra.mxu0 0.0
    %3231 = vmatpush.msra.mxu0 0.0
    %3232 = vmatpush.msra.mxu0 0.0
    %3233 = vmatpush.msra.mxu0 0.0
    %3234 = vmatpush.msra.mxu0 0.0
    %3235 = vmatpush.msra.mxu0 0.0
    %3236 = vmatpush.msra.mxu0 0.0
    %3237 = vmatpush.msra.mxu0 0.0
    %3238 = vmatpush.msra.mxu0 0.0
    %3239 = vmatpush.msra.mxu0 0.0
    %3240 = vmatpush.msra.mxu0 %v3227
    %3241 = vmatpush.msra.mxu0 %v3226
    %3242 = vmatpush.msra.mxu0 %v3225
    %3243 = vmatpush.msra.mxu0 %v3224
    %3244 = vmatmul.f32.gmra.mxu0 %v1076
    %v3245 = vpop.f32.mrf.mxu0
    %v3246 = vadd.f32 0.0, %v3245
    %3247 = vmatmul.f32.gmra.mxu0 %v1079
    %v3248 = vpop.f32.mrf.mxu0
    %v3249 = vadd.f32 0.0, %v3248
    %3250 = vmatmul.f32.gmra.mxu0 %v1082
    %v3251 = vpop.f32.mrf.mxu0
    %v3252 = vadd.f32 0.0, %v3251
    %3253 = vmatmul.f32.gmra.mxu0 %v1085
    %v3254 = vpop.f32.mrf.mxu0
    %v3255 = vadd.f32 0.0, %v3254
    %3256 = vdwg.mxu0
    %v3257 = vperm.slane %v3053, 4
    %v3258 = vadd.f32 %v3246, %v3257
    %v3259 = vadd.f32 %v3249, %v3257
    %v3260 = vadd.f32 %v3252, %v3257
    %v3261 = vadd.f32 %v3255, %v3257
    %vm3262 = vcmp.gt.f32.partialorder %v3258, 0.0
    %vm3263 = vcmp.gt.f32.partialorder %v3259, 0.0
    %vm3264 = vcmp.gt.f32.partialorder %v3260, 0.0
    %vm3265 = vcmp.gt.f32.partialorder %v3261, 0.0
    %v3266 = vmul.f32 %v3258, 1.442695
    %v3267 = vpow.pop %v3266
    %v3268 = vmul.f32 %v3259, 1.442695
    %v3269 = vpow.pop %v3268
    %v3270 = vmul.f32 %v3260, 1.442695
    %v3271 = vpow.pop %v3270
    %v3272 = vmul.f32 %v3261, 1.442695
    %v3273 = vpow.pop %v3272
    %v3274 = vsub.f32 %v3267, 1.0
    %v3275 = vsub.f32 %v3269, 1.0
    %v3276 = vsub.f32 %v3271, 1.0
    %v3277 = vsub.f32 %v3273, 1.0
    %v3278 = vsel %vm3262, %v3258, %v3274
    %v3279 = vsel %vm3263, %v3259, %v3275
    %v3280 = vsel %vm3264, %v3260, %v3276
    %v3281 = vsel %vm3265, %v3261, %v3277
    %v3282 = vadd.f32 %v3278, 1.0
    %v3283 = vadd.f32 %v3279, 1.0
    %v3284 = vadd.f32 %v3280, 1.0
    %v3285 = vadd.f32 %v3281, 1.0
    %v3286 = vperm.slane %v3053, 5
    %3288 = vrot.lane.b32.xlu0 %v3286, 32
    %v3289 = vpop.permute.xlu0 %3288
    %v3291 = vadd.f32 %v3246, %v3289
    %v3292 = vadd.f32 %v3249, %v3289
    %v3293 = vadd.f32 %v3252, %v3289
    %v3294 = vadd.f32 %v3255, %v3289
    %vm3295 = vcmp.gt.f32.partialorder %v3291, 0.0
    %vm3296 = vcmp.gt.f32.partialorder %v3292, 0.0
    %vm3297 = vcmp.gt.f32.partialorder %v3293, 0.0
    %vm3298 = vcmp.gt.f32.partialorder %v3294, 0.0
    %v3299 = vmul.f32 %v3291, 1.442695
    %v3300 = vpow.pop %v3299
    %v3301 = vmul.f32 %v3292, 1.442695
    %v3302 = vpow.pop %v3301
    %v3303 = vmul.f32 %v3293, 1.442695
    %v3304 = vpow.pop %v3303
    %v3305 = vmul.f32 %v3294, 1.442695
    %v3306 = vpow.pop %v3305
    %v3307 = vsub.f32 %v3300, 1.0
    %v3308 = vsub.f32 %v3302, 1.0
    %v3309 = vsub.f32 %v3304, 1.0
    %v3310 = vsub.f32 %v3306, 1.0
    %v3311 = vsel %vm3295, %v3291, %v3307
    %v3312 = vsel %vm3296, %v3292, %v3308
    %v3313 = vsel %vm3297, %v3293, %v3309
    %v3314 = vsel %vm3298, %v3294, %v3310
    %v3315 = vadd.f32 %v3311, 1.0
    %v3316 = vadd.f32 %v3312, 1.0
    %v3317 = vadd.f32 %v3313, 1.0
    %v3318 = vadd.f32 %v3314, 1.0
    %v3319 = vmul.f32 %v3093, %v3093
    %v3320 = vmul.f32 %v3096, %v3096
    %v3321 = vmul.f32 %v3099, %v3099
    %v3322 = vmul.f32 %v3102, %v3102
    %v3323 = vmul.f32 %v3139, %v3139
    %v3324 = vmul.f32 %v3140, %v3140
    %v3325 = vmul.f32 %v3141, %v3141
    %v3326 = vmul.f32 %v3142, %v3142
    %v3327 = vmax.f32 %v3219, 1e-24
    %v3328 = vmax.f32 %v3220, 1e-24
    %v3329 = vmax.f32 %v3221, 1e-24
    %v3330 = vmax.f32 %v3222, 1e-24
    %v3331 = vrsqrt.pop %v3327
    %v3332 = vmul.f32 %v3331, %v3327
    %v3333 = vmul.f32 %v3332, %v3331
    %v3334 = vmul.f32 0.5, %v3333
    %v3335 = vsub.f32 1.5, %v3334
    %v3336 = vmul.f32 %v3331, %v3335
    %v3337 = vmul.f32 %v3327, %v3336
    %vm3338 = vcmp.eq.f32.partialorder %v3327, inf
    %v3339 = vsel %vm3338, %v3327, %v3337
    %vm3340 = vcmp.eq.f32.partialorder %v3327, 0.0
    %v3341 = vand.u32 %v3327, 2147483648
    %v3342 = vsel %vm3340, %v3341, %v3339
    %v3343 = vrsqrt.pop %v3328
    %v3344 = vmul.f32 %v3343, %v3328
    %v3345 = vmul.f32 %v3344, %v3343
    %v3346 = vmul.f32 0.5, %v3345
    %v3347 = vsub.f32 1.5, %v3346
    %v3348 = vmul.f32 %v3343, %v3347
    %v3349 = vmul.f32 %v3328, %v3348
    %vm3350 = vcmp.eq.f32.partialorder %v3328, inf
    %v3351 = vsel %vm3350, %v3328, %v3349
    %vm3352 = vcmp.eq.f32.partialorder %v3328, 0.0
    %v3353 = vand.u32 %v3328, 2147483648
    %v3354 = vsel %vm3352, %v3353, %v3351
    %v3355 = vrsqrt.pop %v3329
    %v3356 = vmul.f32 %v3355, %v3329
    %v3357 = vmul.f32 %v3356, %v3355
    %v3358 = vmul.f32 0.5, %v3357
    %v3359 = vsub.f32 1.5, %v3358
    %v3360 = vmul.f32 %v3355, %v3359
    %v3361 = vmul.f32 %v3329, %v3360
    %vm3362 = vcmp.eq.f32.partialorder %v3329, inf
    %v3363 = vsel %vm3362, %v3329, %v3361
    %vm3364 = vcmp.eq.f32.partialorder %v3329, 0.0
    %v3365 = vand.u32 %v3329, 2147483648
    %v3366 = vsel %vm3364, %v3365, %v3363
    %v3367 = vrsqrt.pop %v3330
    %v3368 = vmul.f32 %v3367, %v3330
    %v3369 = vmul.f32 %v3368, %v3367
    %v3370 = vmul.f32 0.5, %v3369
    %v3371 = vsub.f32 1.5, %v3370
    %v3372 = vmul.f32 %v3367, %v3371
    %v3373 = vmul.f32 %v3330, %v3372
    %vm3374 = vcmp.eq.f32.partialorder %v3330, inf
    %v3375 = vsel %vm3374, %v3330, %v3373
    %vm3376 = vcmp.eq.f32.partialorder %v3330, 0.0
    %v3377 = vand.u32 %v3330, 2147483648
    %v3378 = vsel %vm3376, %v3377, %v3375
    %v3379 = vmax.f32 %v3282, 1e-24
    %v3380 = vmax.f32 %v3283, 1e-24
    %v3381 = vmax.f32 %v3284, 1e-24
    %v3382 = vmax.f32 %v3285, 1e-24
    %v3383 = vrsqrt.pop %v3379
    %v3384 = vmul.f32 %v3383, %v3379
    %v3385 = vmul.f32 %v3384, %v3383
    %v3386 = vmul.f32 0.5, %v3385
    %v3387 = vsub.f32 1.5, %v3386
    %v3388 = vmul.f32 %v3383, %v3387
    %v3389 = vmul.f32 %v3379, %v3388
    %vm3390 = vcmp.eq.f32.partialorder %v3379, inf
    %v3391 = vsel %vm3390, %v3379, %v3389
    %vm3392 = vcmp.eq.f32.partialorder %v3379, 0.0
    %v3393 = vand.u32 %v3379, 2147483648
    %v3394 = vsel %vm3392, %v3393, %v3391
    %v3395 = vrsqrt.pop %v3380
    %v3396 = vmul.f32 %v3395, %v3380
    %v3397 = vmul.f32 %v3396, %v3395
    %v3398 = vmul.f32 0.5, %v3397
    %v3399 = vsub.f32 1.5, %v3398
    %v3400 = vmul.f32 %v3395, %v3399
    %v3401 = vmul.f32 %v3380, %v3400
    %vm3402 = vcmp.eq.f32.partialorder %v3380, inf
    %v3403 = vsel %vm3402, %v3380, %v3401
    %vm3404 = vcmp.eq.f32.partialorder %v3380, 0.0
    %v3405 = vand.u32 %v3380, 2147483648
    %v3406 = vsel %vm3404, %v3405, %v3403
    %v3407 = vrsqrt.pop %v3381
    %v3408 = vmul.f32 %v3407, %v3381
    %v3409 = vmul.f32 %v3408, %v3407
    %v3410 = vmul.f32 0.5, %v3409
    %v3411 = vsub.f32 1.5, %v3410
    %v3412 = vmul.f32 %v3407, %v3411
    %v3413 = vmul.f32 %v3381, %v3412
    %vm3414 = vcmp.eq.f32.partialorder %v3381, inf
    %v3415 = vsel %vm3414, %v3381, %v3413
    %vm3416 = vcmp.eq.f32.partialorder %v3381, 0.0
    %v3417 = vand.u32 %v3381, 2147483648
    %v3418 = vsel %vm3416, %v3417, %v3415
    %v3419 = vrsqrt.pop %v3382
    %v3420 = vmul.f32 %v3419, %v3382
    %v3421 = vmul.f32 %v3420, %v3419
    %v3422 = vmul.f32 0.5, %v3421
    %v3423 = vsub.f32 1.5, %v3422
    %v3424 = vmul.f32 %v3419, %v3423
    %v3425 = vmul.f32 %v3382, %v3424
    %vm3426 = vcmp.eq.f32.partialorder %v3382, inf
    %v3427 = vsel %vm3426, %v3382, %v3425
    %vm3428 = vcmp.eq.f32.partialorder %v3382, 0.0
    %v3429 = vand.u32 %v3382, 2147483648
    %v3430 = vsel %vm3428, %v3429, %v3427
    %v3431 = vmul.f32 %v3319, %v887
    %v3432 = vmul.f32 %v3320, %v887
    %v3433 = vmul.f32 %v3321, %v887
    %v3434 = vmul.f32 %v3322, %v887
    %v3435 = vsel %vm82, %v3431, 0.0
    %3436 = vadd.xlane.f32.xlu0 %v3435
    %v3437 = vpop.xlane.xlu0 %3436
    %v3438 = vsel %vm82, %v3432, 0.0
    %3439 = vadd.xlane.f32.xlu0 %v3438
    %v3440 = vpop.xlane.xlu0 %3439
    %v3441 = vsel %vm82, %v3433, 0.0
    %3442 = vadd.xlane.f32.xlu0 %v3441
    %v3443 = vpop.xlane.xlu0 %3442
    %v3444 = vsel %vm82, %v3434, 0.0
    %3445 = vadd.xlane.f32.xlu0 %v3444
    %v3446 = vpop.xlane.xlu0 %3445
    %v3448 = vsel %vm82, %v3323, 0
    %v3451 = vsel %vm82, %v3324, 0
    %v3454 = vsel %vm82, %v3325, 0
    %v3457 = vsel %vm82, %v3326, 0
    %3459 = vmatpush.xpose.msra.mxu0 0.0
    %3460 = vmatpush.xpose.msra.mxu0 0.0
    %3461 = vmatpush.xpose.msra.mxu0 0.0
    %3462 = vmatpush.xpose.msra.mxu0 0.0
    %3463 = vmatpush.xpose.msra.mxu0 0.0
    %3464 = vmatpush.xpose.msra.mxu0 0.0
    %3465 = vmatpush.xpose.msra.mxu0 0.0
    %3466 = vmatpush.xpose.msra.mxu0 0.0
    %3467 = vmatpush.xpose.msra.mxu0 0.0
    %3468 = vmatpush.xpose.msra.mxu0 0.0
    %3469 = vmatpush.xpose.msra.mxu0 0.0
    %3470 = vmatpush.xpose.msra.mxu0 0.0
    %3471 = vmatpush.xpose.msra.mxu0 %v3457
    %3472 = vmatpush.xpose.msra.mxu0 %v3454
    %3473 = vmatpush.xpose.msra.mxu0 %v3451
    %3474 = vmatpush.xpose.msra.mxu0 %v3448
    %3475 = vmatmul.f32.gmra.mxu0 %v1307
    %v3476 = vpop.f32.mrf.mxu0
    %v3477 = vadd.f32 0.0, %v3476
    %3478 = vdwg.mxu0
    %v3479 = vmul.f32 %v3093, %v887
    %v3480 = vmul.f32 %v3096, %v887
    %v3481 = vmul.f32 %v3099, %v887
    %v3482 = vmul.f32 %v3102, %v887
    %v3484 = vsel %vm82, %v3479, 0
    %v3487 = vsel %vm82, %v3480, 0
    %v3490 = vsel %vm82, %v3481, 0
    %v3493 = vsel %vm82, %v3482, 0
    %v3496 = vsel %vm82, %v3139, 0
    %v3499 = vsel %vm82, %v3140, 0
    %v3502 = vsel %vm82, %v3141, 0
    %v3505 = vsel %vm82, %v3142, 0
    %3507 = vmatpush.xpose.msra.mxu0 0.0
    %3508 = vmatpush.xpose.msra.mxu0 0.0
    %3509 = vmatpush.xpose.msra.mxu0 0.0
    %3510 = vmatpush.xpose.msra.mxu0 0.0
    %3511 = vmatpush.xpose.msra.mxu0 0.0
    %3512 = vmatpush.xpose.msra.mxu0 0.0
    %3513 = vmatpush.xpose.msra.mxu0 0.0
    %3514 = vmatpush.xpose.msra.mxu0 0.0
    %3515 = vmatpush.xpose.msra.mxu0 0.0
    %3516 = vmatpush.xpose.msra.mxu0 0.0
    %3517 = vmatpush.xpose.msra.mxu0 0.0
    %3518 = vmatpush.xpose.msra.mxu0 0.0
    %3519 = vmatpush.xpose.msra.mxu0 %v3505
    %3520 = vmatpush.xpose.msra.mxu0 %v3502
    %3521 = vmatpush.xpose.msra.mxu0 %v3499
    %3522 = vmatpush.xpose.msra.mxu0 %v3496
    %3523 = vmatmul.f32.gmra.mxu0 %v3484
    %v3524 = vpop.f32.mrf.mxu0
    %v3525 = vadd.f32 0.0, %v3524
    %3526 = vmatmul.f32.gmra.mxu0 %v3487
    %v3527 = vpop.f32.mrf.mxu0
    %v3528 = vadd.f32 0.0, %v3527
    %3529 = vmatmul.f32.gmra.mxu0 %v3490
    %v3530 = vpop.f32.mrf.mxu0
    %v3531 = vadd.f32 0.0, %v3530
    %3532 = vmatmul.f32.gmra.mxu0 %v3493
    %v3533 = vpop.f32.mrf.mxu0
    %v3534 = vadd.f32 0.0, %v3533
    %3535 = vdwg.mxu0
    %v3536 = vmul.f32 %v3525, -2.0
    %v3537 = vmul.f32 %v3528, -2.0
    %v3538 = vmul.f32 %v3531, -2.0
    %v3539 = vmul.f32 %v3534, -2.0
    %v3540 = vadd.f32 %v3536, %v3437
    %v3541 = vadd.f32 %v3537, %v3440
    %v3542 = vadd.f32 %v3538, %v3443
    %v3543 = vadd.f32 %v3539, %v3446
    %v3544 = vperm.slane %v3477, 0
    %v3545 = vadd.f32 %v3540, %v3544
    %v3546 = vadd.f32 %v3541, %v3544
    %v3547 = vadd.f32 %v3542, %v3544
    %v3548 = vadd.f32 %v3543, %v3544
    %v3549 = vmul.f32 %v3219, %v887
    %v3550 = vmul.f32 %v3220, %v887
    %v3551 = vmul.f32 %v3221, %v887
    %v3552 = vmul.f32 %v3222, %v887
    %v3553 = vsel %vm82, %v3549, 0.0
    %3554 = vadd.xlane.f32.xlu0 %v3553
    %v3555 = vpop.xlane.xlu0 %3554
    %v3556 = vsel %vm82, %v3550, 0.0
    %3557 = vadd.xlane.f32.xlu0 %v3556
    %v3558 = vpop.xlane.xlu0 %3557
    %v3559 = vsel %vm82, %v3551, 0.0
    %3560 = vadd.xlane.f32.xlu0 %v3559
    %v3561 = vpop.xlane.xlu0 %3560
    %v3562 = vsel %vm82, %v3552, 0.0
    %3563 = vadd.xlane.f32.xlu0 %v3562
    %v3564 = vpop.xlane.xlu0 %3563
    %v3566 = vsel %vm82, %v3282, 0
    %v3569 = vsel %vm82, %v3283, 0
    %v3572 = vsel %vm82, %v3284, 0
    %v3575 = vsel %vm82, %v3285, 0
    %3577 = vmatpush.xpose.msra.mxu0 0.0
    %3578 = vmatpush.xpose.msra.mxu0 0.0
    %3579 = vmatpush.xpose.msra.mxu0 0.0
    %3580 = vmatpush.xpose.msra.mxu0 0.0
    %3581 = vmatpush.xpose.msra.mxu0 0.0
    %3582 = vmatpush.xpose.msra.mxu0 0.0
    %3583 = vmatpush.xpose.msra.mxu0 0.0
    %3584 = vmatpush.xpose.msra.mxu0 0.0
    %3585 = vmatpush.xpose.msra.mxu0 0.0
    %3586 = vmatpush.xpose.msra.mxu0 0.0
    %3587 = vmatpush.xpose.msra.mxu0 0.0
    %3588 = vmatpush.xpose.msra.mxu0 0.0
    %3589 = vmatpush.xpose.msra.mxu0 %v3575
    %3590 = vmatpush.xpose.msra.mxu0 %v3572
    %3591 = vmatpush.xpose.msra.mxu0 %v3569
    %3592 = vmatpush.xpose.msra.mxu0 %v3566
    %3593 = vmatmul.f32.gmra.mxu0 %v1307
    %v3594 = vpop.f32.mrf.mxu0
    %v3595 = vadd.f32 0.0, %v3594
    %3596 = vdwg.mxu0
    %v3597 = vmul.f32 %v3342, %v887
    %v3598 = vmul.f32 %v3354, %v887
    %v3599 = vmul.f32 %v3366, %v887
    %v3600 = vmul.f32 %v3378, %v887
    %v3602 = vsel %vm82, %v3597, 0
    %v3605 = vsel %vm82, %v3598, 0
    %v3608 = vsel %vm82, %v3599, 0
    %v3611 = vsel %vm82, %v3600, 0
    %v3614 = vsel %vm82, %v3394, 0
    %v3617 = vsel %vm82, %v3406, 0
    %v3620 = vsel %vm82, %v3418, 0
    %v3623 = vsel %vm82, %v3430, 0
    %3625 = vmatpush.xpose.msra.mxu0 0.0
    %3626 = vmatpush.xpose.msra.mxu0 0.0
    %3627 = vmatpush.xpose.msra.mxu0 0.0
    %3628 = vmatpush.xpose.msra.mxu0 0.0
    %3629 = vmatpush.xpose.msra.mxu0 0.0
    %3630 = vmatpush.xpose.msra.mxu0 0.0
    %3631 = vmatpush.xpose.msra.mxu0 0.0
    %3632 = vmatpush.xpose.msra.mxu0 0.0
    %3633 = vmatpush.xpose.msra.mxu0 0.0
    %3634 = vmatpush.xpose.msra.mxu0 0.0
    %3635 = vmatpush.xpose.msra.mxu0 0.0
    %3636 = vmatpush.xpose.msra.mxu0 0.0
    %3637 = vmatpush.xpose.msra.mxu0 %v3623
    %3638 = vmatpush.xpose.msra.mxu0 %v3620
    %3639 = vmatpush.xpose.msra.mxu0 %v3617
    %3640 = vmatpush.xpose.msra.mxu0 %v3614
    %3641 = vmatmul.f32.gmra.mxu0 %v3602
    %v3642 = vpop.f32.mrf.mxu0
    %v3643 = vadd.f32 0.0, %v3642
    %3644 = vmatmul.f32.gmra.mxu0 %v3605
    %v3645 = vpop.f32.mrf.mxu0
    %v3646 = vadd.f32 0.0, %v3645
    %3647 = vmatmul.f32.gmra.mxu0 %v3608
    %v3648 = vpop.f32.mrf.mxu0
    %v3649 = vadd.f32 0.0, %v3648
    %3650 = vmatmul.f32.gmra.mxu0 %v3611
    %v3651 = vpop.f32.mrf.mxu0
    %v3652 = vadd.f32 0.0, %v3651
    %3653 = vdwg.mxu0
    %v3654 = vmul.f32 %v3643, -2.0
    %v3655 = vmul.f32 %v3646, -2.0
    %v3656 = vmul.f32 %v3649, -2.0
    %v3657 = vmul.f32 %v3652, -2.0
    %v3658 = vadd.f32 %v3654, %v3555
    %v3659 = vadd.f32 %v3655, %v3558
    %v3660 = vadd.f32 %v3656, %v3561
    %v3661 = vadd.f32 %v3657, %v3564
    %v3662 = vperm.slane %v3595, 0
    %v3663 = vadd.f32 %v3658, %v3662
    %v3664 = vadd.f32 %v3659, %v3662
    %v3665 = vadd.f32 %v3660, %v3662
    %v3666 = vadd.f32 %v3661, %v3662
    %v3667 = vadd.f32 %v3545, %v3663
    %v3668 = vadd.f32 %v3546, %v3664
    %v3669 = vadd.f32 %v3547, %v3665
    %v3670 = vadd.f32 %v3548, %v3666
    %v3671 = vsub.f32 0.0, %v3667
    %v3672 = vsub.f32 0.0, %v3668
    %v3673 = vsub.f32 0.0, %v3669
    %v3674 = vsub.f32 0.0, %v3670
    %v3675 = vmul.f32 %v3671, 0.25
    %v3676 = vmul.f32 %v3672, 0.25
    %v3677 = vmul.f32 %v3673, 0.25
    %v3678 = vmul.f32 %v3674, 0.25
    %v3679 = vadd.f32 %v3675, %v877
    %v3680 = vadd.f32 %v3676, %v878
    %v3681 = vadd.f32 %v3677, %v879
    %v3682 = vadd.f32 %v3678, %v880
    %v3683 = vsel %vm82, %v3679, -inf
    %3684 = vmax.xlane.f32.xlu0 %v3683
    %v3685 = vpop.xlane.xlu0 %3684
    %v3686 = vsel %vm82, %v3680, -inf
    %3687 = vmax.xlane.f32.xlu0 %v3686
    %v3688 = vpop.xlane.xlu0 %3687
    %v3689 = vsel %vm82, %v3681, -inf
    %3690 = vmax.xlane.f32.xlu0 %v3689
    %v3691 = vpop.xlane.xlu0 %3690
    %v3692 = vsel %vm82, %v3682, -inf
    %3693 = vmax.xlane.f32.xlu0 %v3692
    %v3694 = vpop.xlane.xlu0 %3693
    %v3695 = vsub.f32 %v3679, %v3685
    %v3696 = vsub.f32 %v3680, %v3688
    %v3697 = vsub.f32 %v3681, %v3691
    %v3698 = vsub.f32 %v3682, %v3694
    %v3699 = vmul.f32 %v3695, 1.442695
    %v3700 = vpow.pop %v3699
    %v3701 = vmul.f32 %v3696, 1.442695
    %v3702 = vpow.pop %v3701
    %v3703 = vmul.f32 %v3697, 1.442695
    %v3704 = vpow.pop %v3703
    %v3705 = vmul.f32 %v3698, 1.442695
    %v3706 = vpow.pop %v3705
    %v3707 = vsel %vm82, %v3700, 0.0
    %3708 = vadd.xlane.f32.xlu0 %v3707
    %v3709 = vpop.xlane.xlu0 %3708
    %v3710 = vsel %vm82, %v3702, 0.0
    %3711 = vadd.xlane.f32.xlu0 %v3710
    %v3712 = vpop.xlane.xlu0 %3711
    %v3713 = vsel %vm82, %v3704, 0.0
    %3714 = vadd.xlane.f32.xlu0 %v3713
    %v3715 = vpop.xlane.xlu0 %3714
    %v3716 = vsel %vm82, %v3706, 0.0
    %3717 = vadd.xlane.f32.xlu0 %v3716
    %v3718 = vpop.xlane.xlu0 %3717
    %v3719 = vrcp.pop %v3709
    %v3720 = vrcp.pop %v3712
    %v3721 = vrcp.pop %v3715
    %v3722 = vrcp.pop %v3718
    %v3723 = vmul.f32 %v3700, %v3719
    %v3724 = vmul.f32 %v3702, %v3720
    %v3725 = vmul.f32 %v3704, %v3721
    %v3726 = vmul.f32 %v3706, %v3722
    %v3727 = vmul.f32 %v3148, %v1590
    %v3728 = vmul.f32 %v3149, %v1590
    %v3729 = vmul.f32 %v3150, %v1590
    %v3730 = vmul.f32 %v3151, %v1590
    %v3731 = vmul.f32 %v3723, %v3723
    %v3732 = vmul.f32 %v3724, %v3724
    %v3733 = vmul.f32 %v3725, %v3725
    %v3734 = vmul.f32 %v3726, %v3726
    %v3735 = vmul.f32 %v3315, %v1590
    %v3736 = vmul.f32 %v3316, %v1590
    %v3737 = vmul.f32 %v3317, %v1590
    %v3738 = vmul.f32 %v3318, %v1590
    %v3739 = vmul.f32 %v3319, %v892
    %v3740 = vmul.f32 %v3320, %v892
    %v3741 = vmul.f32 %v3321, %v892
    %v3742 = vmul.f32 %v3322, %v892
    %v3743 = vsel %vm82, %v3739, 0.0
    %3744 = vadd.xlane.f32.xlu0 %v3743
    %v3745 = vpop.xlane.xlu0 %3744
    %v3746 = vsel %vm82, %v3740, 0.0
    %3747 = vadd.xlane.f32.xlu0 %v3746
    %v3748 = vpop.xlane.xlu0 %3747
    %v3749 = vsel %vm82, %v3741, 0.0
    %3750 = vadd.xlane.f32.xlu0 %v3749
    %v3751 = vpop.xlane.xlu0 %3750
    %v3752 = vsel %vm82, %v3742, 0.0
    %3753 = vadd.xlane.f32.xlu0 %v3752
    %v3754 = vpop.xlane.xlu0 %3753
    %3755 = vmatpush.xpose.msra.mxu0 0.0
    %3756 = vmatpush.xpose.msra.mxu0 0.0
    %3757 = vmatpush.xpose.msra.mxu0 0.0
    %3758 = vmatpush.xpose.msra.mxu0 0.0
    %3759 = vmatpush.xpose.msra.mxu0 0.0
    %3760 = vmatpush.xpose.msra.mxu0 0.0
    %3761 = vmatpush.xpose.msra.mxu0 0.0
    %3762 = vmatpush.xpose.msra.mxu0 0.0
    %3763 = vmatpush.xpose.msra.mxu0 0.0
    %3764 = vmatpush.xpose.msra.mxu0 0.0
    %3765 = vmatpush.xpose.msra.mxu0 0.0
    %3766 = vmatpush.xpose.msra.mxu0 0.0
    %3767 = vmatpush.xpose.msra.mxu0 %v3457
    %3768 = vmatpush.xpose.msra.mxu0 %v3454
    %3769 = vmatpush.xpose.msra.mxu0 %v3451
    %3770 = vmatpush.xpose.msra.mxu0 %v3448
    %3771 = vmatmul.f32.gmra.mxu0 %v1621
    %v3772 = vpop.f32.mrf.mxu0
    %v3773 = vadd.f32 0.0, %v3772
    %3774 = vdwg.mxu0
    %v3775 = vmul.f32 %v3093, %v892
    %v3776 = vmul.f32 %v3096, %v892
    %v3777 = vmul.f32 %v3099, %v892
    %v3778 = vmul.f32 %v3102, %v892
    %v3780 = vsel %vm82, %v3775, 0
    %v3783 = vsel %vm82, %v3776, 0
    %v3786 = vsel %vm82, %v3777, 0
    %v3789 = vsel %vm82, %v3778, 0
    %3791 = vmatpush.xpose.msra.mxu0 0.0
    %3792 = vmatpush.xpose.msra.mxu0 0.0
    %3793 = vmatpush.xpose.msra.mxu0 0.0
    %3794 = vmatpush.xpose.msra.mxu0 0.0
    %3795 = vmatpush.xpose.msra.mxu0 0.0
    %3796 = vmatpush.xpose.msra.mxu0 0.0
    %3797 = vmatpush.xpose.msra.mxu0 0.0
    %3798 = vmatpush.xpose.msra.mxu0 0.0
    %3799 = vmatpush.xpose.msra.mxu0 0.0
    %3800 = vmatpush.xpose.msra.mxu0 0.0
    %3801 = vmatpush.xpose.msra.mxu0 0.0
    %3802 = vmatpush.xpose.msra.mxu0 0.0
    %3803 = vmatpush.xpose.msra.mxu0 %v3505
    %3804 = vmatpush.xpose.msra.mxu0 %v3502
    %3805 = vmatpush.xpose.msra.mxu0 %v3499
    %3806 = vmatpush.xpose.msra.mxu0 %v3496
    %3807 = vmatmul.f32.gmra.mxu0 %v3780
    %v3808 = vpop.f32.mrf.mxu0
    %v3809 = vadd.f32 0.0, %v3808
    %3810 = vmatmul.f32.gmra.mxu0 %v3783
    %v3811 = vpop.f32.mrf.mxu0
    %v3812 = vadd.f32 0.0, %v3811
    %3813 = vmatmul.f32.gmra.mxu0 %v3786
    %v3814 = vpop.f32.mrf.mxu0
    %v3815 = vadd.f32 0.0, %v3814
    %3816 = vmatmul.f32.gmra.mxu0 %v3789
    %v3817 = vpop.f32.mrf.mxu0
    %v3818 = vadd.f32 0.0, %v3817
    %3819 = vdwg.mxu0
    %v3820 = vmul.f32 %v3809, -2.0
    %v3821 = vmul.f32 %v3812, -2.0
    %v3822 = vmul.f32 %v3815, -2.0
    %v3823 = vmul.f32 %v3818, -2.0
    %v3824 = vadd.f32 %v3820, %v3745
    %v3825 = vadd.f32 %v3821, %v3748
    %v3826 = vadd.f32 %v3822, %v3751
    %v3827 = vadd.f32 %v3823, %v3754
    %v3828 = vperm.slane %v3773, 0
    %v3829 = vadd.f32 %v3824, %v3828
    %v3830 = vadd.f32 %v3825, %v3828
    %v3831 = vadd.f32 %v3826, %v3828
    %v3832 = vadd.f32 %v3827, %v3828
    %v3833 = vmul.f32 %v3219, %v892
    %v3834 = vmul.f32 %v3220, %v892
    %v3835 = vmul.f32 %v3221, %v892
    %v3836 = vmul.f32 %v3222, %v892
    %v3837 = vsel %vm82, %v3833, 0.0
    %3838 = vadd.xlane.f32.xlu0 %v3837
    %v3839 = vpop.xlane.xlu0 %3838
    %v3840 = vsel %vm82, %v3834, 0.0
    %3841 = vadd.xlane.f32.xlu0 %v3840
    %v3842 = vpop.xlane.xlu0 %3841
    %v3843 = vsel %vm82, %v3835, 0.0
    %3844 = vadd.xlane.f32.xlu0 %v3843
    %v3845 = vpop.xlane.xlu0 %3844
    %v3846 = vsel %vm82, %v3836, 0.0
    %3847 = vadd.xlane.f32.xlu0 %v3846
    %v3848 = vpop.xlane.xlu0 %3847
    %3849 = vmatpush.xpose.msra.mxu0 0.0
    %3850 = vmatpush.xpose.msra.mxu0 0.0
    %3851 = vmatpush.xpose.msra.mxu0 0.0
    %3852 = vmatpush.xpose.msra.mxu0 0.0
    %3853 = vmatpush.xpose.msra.mxu0 0.0
    %3854 = vmatpush.xpose.msra.mxu0 0.0
    %3855 = vmatpush.xpose.msra.mxu0 0.0
    %3856 = vmatpush.xpose.msra.mxu0 0.0
    %3857 = vmatpush.xpose.msra.mxu0 0.0
    %3858 = vmatpush.xpose.msra.mxu0 0.0
    %3859 = vmatpush.xpose.msra.mxu0 0.0
    %3860 = vmatpush.xpose.msra.mxu0 0.0
    %3861 = vmatpush.xpose.msra.mxu0 %v3575
    %3862 = vmatpush.xpose.msra.mxu0 %v3572
    %3863 = vmatpush.xpose.msra.mxu0 %v3569
    %3864 = vmatpush.xpose.msra.mxu0 %v3566
    %3865 = vmatmul.f32.gmra.mxu0 %v1621
    %v3866 = vpop.f32.mrf.mxu0
    %v3867 = vadd.f32 0.0, %v3866
    %3868 = vdwg.mxu0
    %v3869 = vmul.f32 %v3342, %v892
    %v3870 = vmul.f32 %v3354, %v892
    %v3871 = vmul.f32 %v3366, %v892
    %v3872 = vmul.f32 %v3378, %v892
    %v3874 = vsel %vm82, %v3869, 0
    %v3877 = vsel %vm82, %v3870, 0
    %v3880 = vsel %vm82, %v3871, 0
    %v3883 = vsel %vm82, %v3872, 0
    %3885 = vmatpush.xpose.msra.mxu0 0.0
    %3886 = vmatpush.xpose.msra.mxu0 0.0
    %3887 = vmatpush.xpose.msra.mxu0 0.0
    %3888 = vmatpush.xpose.msra.mxu0 0.0
    %3889 = vmatpush.xpose.msra.mxu0 0.0
    %3890 = vmatpush.xpose.msra.mxu0 0.0
    %3891 = vmatpush.xpose.msra.mxu0 0.0
    %3892 = vmatpush.xpose.msra.mxu0 0.0
    %3893 = vmatpush.xpose.msra.mxu0 0.0
    %3894 = vmatpush.xpose.msra.mxu0 0.0
    %3895 = vmatpush.xpose.msra.mxu0 0.0
    %3896 = vmatpush.xpose.msra.mxu0 0.0
    %3897 = vmatpush.xpose.msra.mxu0 %v3623
    %3898 = vmatpush.xpose.msra.mxu0 %v3620
    %3899 = vmatpush.xpose.msra.mxu0 %v3617
    %3900 = vmatpush.xpose.msra.mxu0 %v3614
    %3901 = vmatmul.f32.gmra.mxu0 %v3874
    %v3902 = vpop.f32.mrf.mxu0
    %v3903 = vadd.f32 0.0, %v3902
    %3904 = vmatmul.f32.gmra.mxu0 %v3877
    %v3905 = vpop.f32.mrf.mxu0
    %v3906 = vadd.f32 0.0, %v3905
    %3907 = vmatmul.f32.gmra.mxu0 %v3880
    %v3908 = vpop.f32.mrf.mxu0
    %v3909 = vadd.f32 0.0, %v3908
    %3910 = vmatmul.f32.gmra.mxu0 %v3883
    %v3911 = vpop.f32.mrf.mxu0
    %v3912 = vadd.f32 0.0, %v3911
    %3913 = vdwg.mxu0
    %v3914 = vmul.f32 %v3903, -2.0
    %v3915 = vmul.f32 %v3906, -2.0
    %v3916 = vmul.f32 %v3909, -2.0
    %v3917 = vmul.f32 %v3912, -2.0
    %v3918 = vadd.f32 %v3914, %v3839
    %v3919 = vadd.f32 %v3915, %v3842
    %v3920 = vadd.f32 %v3916, %v3845
    %v3921 = vadd.f32 %v3917, %v3848
    %v3922 = vperm.slane %v3867, 0
    %v3923 = vadd.f32 %v3918, %v3922
    %v3924 = vadd.f32 %v3919, %v3922
    %v3925 = vadd.f32 %v3920, %v3922
    %v3926 = vadd.f32 %v3921, %v3922
    %v3927 = vadd.f32 %v3829, %v3923
    %v3928 = vadd.f32 %v3830, %v3924
    %v3929 = vadd.f32 %v3831, %v3925
    %v3930 = vadd.f32 %v3832, %v3926
    %v3931 = vsub.f32 0.0, %v3927
    %v3932 = vsub.f32 0.0, %v3928
    %v3933 = vsub.f32 0.0, %v3929
    %v3934 = vsub.f32 0.0, %v3930
    %v3935 = vmul.f32 %v3931, 0.25
    %v3936 = vmul.f32 %v3932, 0.25
    %v3937 = vmul.f32 %v3933, 0.25
    %v3938 = vmul.f32 %v3934, 0.25
    %v3939 = vadd.f32 %v3935, %v877
    %v3940 = vadd.f32 %v3936, %v878
    %v3941 = vadd.f32 %v3937, %v879
    %v3942 = vadd.f32 %v3938, %v880
    %v3943 = vsel %vm82, %v3939, -inf
    %3944 = vmax.xlane.f32.xlu0 %v3943
    %v3945 = vpop.xlane.xlu0 %3944
    %v3946 = vsel %vm82, %v3940, -inf
    %3947 = vmax.xlane.f32.xlu0 %v3946
    %v3948 = vpop.xlane.xlu0 %3947
    %v3949 = vsel %vm82, %v3941, -inf
    %3950 = vmax.xlane.f32.xlu0 %v3949
    %v3951 = vpop.xlane.xlu0 %3950
    %v3952 = vsel %vm82, %v3942, -inf
    %3953 = vmax.xlane.f32.xlu0 %v3952
    %v3954 = vpop.xlane.xlu0 %3953
    %v3955 = vsub.f32 %v3939, %v3945
    %v3956 = vsub.f32 %v3940, %v3948
    %v3957 = vsub.f32 %v3941, %v3951
    %v3958 = vsub.f32 %v3942, %v3954
    %v3959 = vmul.f32 %v3955, 1.442695
    %v3960 = vpow.pop %v3959
    %v3961 = vmul.f32 %v3956, 1.442695
    %v3962 = vpow.pop %v3961
    %v3963 = vmul.f32 %v3957, 1.442695
    %v3964 = vpow.pop %v3963
    %v3965 = vmul.f32 %v3958, 1.442695
    %v3966 = vpow.pop %v3965
    %v3967 = vsel %vm82, %v3960, 0.0
    %3968 = vadd.xlane.f32.xlu0 %v3967
    %v3969 = vpop.xlane.xlu0 %3968
    %v3970 = vsel %vm82, %v3962, 0.0
    %3971 = vadd.xlane.f32.xlu0 %v3970
    %v3972 = vpop.xlane.xlu0 %3971
    %v3973 = vsel %vm82, %v3964, 0.0
    %3974 = vadd.xlane.f32.xlu0 %v3973
    %v3975 = vpop.xlane.xlu0 %3974
    %v3976 = vsel %vm82, %v3966, 0.0
    %3977 = vadd.xlane.f32.xlu0 %v3976
    %v3978 = vpop.xlane.xlu0 %3977
    %v3979 = vrcp.pop %v3969
    %v3980 = vrcp.pop %v3972
    %v3981 = vrcp.pop %v3975
    %v3982 = vrcp.pop %v3978
    %v3983 = vmul.f32 %v3960, %v3979
    %v3984 = vmul.f32 %v3962, %v3980
    %v3985 = vmul.f32 %v3964, %v3981
    %v3986 = vmul.f32 %v3966, %v3982
    %v3987 = vmul.f32 %v3148, %v1856
    %v3988 = vmul.f32 %v3149, %v1856
    %v3989 = vmul.f32 %v3150, %v1856
    %v3990 = vmul.f32 %v3151, %v1856
    %3995 = vrot.lane.b32.xlu0 %v3987, 96
    %v3996 = vpop.permute.xlu0 %3995
    %3997 = vrot.lane.b32.xlu0 %v3988, 96
    %v3998 = vpop.permute.xlu0 %3997
    %3999 = vrot.lane.b32.xlu0 %v3989, 96
    %v4000 = vpop.permute.xlu0 %3999
    %4001 = vrot.lane.b32.xlu0 %v3990, 96
    %v4002 = vpop.permute.xlu0 %4001
    %v4008 = vsel %vm82, %v3983, 0
    %v4011 = vsel %vm82, %v3984, 0
    %v4014 = vsel %vm82, %v3985, 0
    %v4017 = vsel %vm82, %v3986, 0
    %4019 = vmatpush.msra.mxu0 0.0
    %4020 = vmatpush.msra.mxu0 0.0
    %4021 = vmatpush.msra.mxu0 0.0
    %4022 = vmatpush.msra.mxu0 0.0
    %4023 = vmatpush.msra.mxu0 0.0
    %4024 = vmatpush.msra.mxu0 0.0
    %4025 = vmatpush.msra.mxu0 0.0
    %4026 = vmatpush.msra.mxu0 0.0
    %4027 = vmatpush.msra.mxu0 0.0
    %4028 = vmatpush.msra.mxu0 0.0
    %4029 = vmatpush.msra.mxu0 0.0
    %4030 = vmatpush.msra.mxu0 0.0
    %4031 = vmatpush.msra.mxu0 %v4002
    %4032 = vmatpush.msra.mxu0 %v4000
    %4033 = vmatpush.msra.mxu0 %v3998
    %4034 = vmatpush.msra.mxu0 %v3996
    %4035 = vmatmul.f32.gmra.mxu0 %v4008
    %v4036 = vpop.f32.mrf.mxu0
    %v4037 = vadd.f32 0.0, %v4036
    %4038 = vmatmul.f32.gmra.mxu0 %v4011
    %v4039 = vpop.f32.mrf.mxu0
    %v4040 = vadd.f32 0.0, %v4039
    %4041 = vmatmul.f32.gmra.mxu0 %v4014
    %v4042 = vpop.f32.mrf.mxu0
    %v4043 = vadd.f32 0.0, %v4042
    %4044 = vmatmul.f32.gmra.mxu0 %v4017
    %v4045 = vpop.f32.mrf.mxu0
    %v4046 = vadd.f32 0.0, %v4045
    %4047 = vdwg.mxu0
    %4052 = vrot.lane.b32.xlu0 %v3727, 96
    %v4053 = vpop.permute.xlu0 %4052
    %4054 = vrot.lane.b32.xlu0 %v3728, 96
    %v4055 = vpop.permute.xlu0 %4054
    %4056 = vrot.lane.b32.xlu0 %v3729, 96
    %v4057 = vpop.permute.xlu0 %4056
    %4058 = vrot.lane.b32.xlu0 %v3730, 96
    %v4059 = vpop.permute.xlu0 %4058
    %v4065 = vsel %vm82, %v3723, 0
    %v4068 = vsel %vm82, %v3724, 0
    %v4071 = vsel %vm82, %v3725, 0
    %v4074 = vsel %vm82, %v3726, 0
    %4076 = vmatpush.msra.mxu0 0.0
    %4077 = vmatpush.msra.mxu0 0.0
    %4078 = vmatpush.msra.mxu0 0.0
    %4079 = vmatpush.msra.mxu0 0.0
    %4080 = vmatpush.msra.mxu0 0.0
    %4081 = vmatpush.msra.mxu0 0.0
    %4082 = vmatpush.msra.mxu0 0.0
    %4083 = vmatpush.msra.mxu0 0.0
    %4084 = vmatpush.msra.mxu0 0.0
    %4085 = vmatpush.msra.mxu0 0.0
    %4086 = vmatpush.msra.mxu0 0.0
    %4087 = vmatpush.msra.mxu0 0.0
    %4088 = vmatpush.msra.mxu0 %v4059
    %4089 = vmatpush.msra.mxu0 %v4057
    %4090 = vmatpush.msra.mxu0 %v4055
    %4091 = vmatpush.msra.mxu0 %v4053
    %4092 = vmatmul.f32.gmra.mxu0 %v4065
    %v4093 = vpop.f32.mrf.mxu0
    %v4094 = vadd.f32 %v4037, %v4093
    %4095 = vmatmul.f32.gmra.mxu0 %v4068
    %v4096 = vpop.f32.mrf.mxu0
    %v4097 = vadd.f32 %v4040, %v4096
    %4098 = vmatmul.f32.gmra.mxu0 %v4071
    %v4099 = vpop.f32.mrf.mxu0
    %v4100 = vadd.f32 %v4043, %v4099
    %4101 = vmatmul.f32.gmra.mxu0 %v4074
    %v4102 = vpop.f32.mrf.mxu0
    %v4103 = vadd.f32 %v4046, %v4102
    %4104 = vdwg.mxu0
    %v4105 = vmul.f32 %v3983, %v3983
    %v4106 = vmul.f32 %v3984, %v3984
    %v4107 = vmul.f32 %v3985, %v3985
    %v4108 = vmul.f32 %v3986, %v3986
    %v4109 = vmul.f32 %v3315, %v1856
    %v4110 = vmul.f32 %v3316, %v1856
    %v4111 = vmul.f32 %v3317, %v1856
    %v4112 = vmul.f32 %v3318, %v1856
    %4117 = vrot.lane.b32.xlu0 %v4109, 96
    %v4118 = vpop.permute.xlu0 %4117
    %4119 = vrot.lane.b32.xlu0 %v4110, 96
    %v4120 = vpop.permute.xlu0 %4119
    %4121 = vrot.lane.b32.xlu0 %v4111, 96
    %v4122 = vpop.permute.xlu0 %4121
    %4123 = vrot.lane.b32.xlu0 %v4112, 96
    %v4124 = vpop.permute.xlu0 %4123
    %v4130 = vsel %vm82, %v4105, 0
    %v4133 = vsel %vm82, %v4106, 0
    %v4136 = vsel %vm82, %v4107, 0
    %v4139 = vsel %vm82, %v4108, 0
    %4141 = vmatpush.msra.mxu0 0.0
    %4142 = vmatpush.msra.mxu0 0.0
    %4143 = vmatpush.msra.mxu0 0.0
    %4144 = vmatpush.msra.mxu0 0.0
    %4145 = vmatpush.msra.mxu0 0.0
    %4146 = vmatpush.msra.mxu0 0.0
    %4147 = vmatpush.msra.mxu0 0.0
    %4148 = vmatpush.msra.mxu0 0.0
    %4149 = vmatpush.msra.mxu0 0.0
    %4150 = vmatpush.msra.mxu0 0.0
    %4151 = vmatpush.msra.mxu0 0.0
    %4152 = vmatpush.msra.mxu0 0.0
    %4153 = vmatpush.msra.mxu0 %v4124
    %4154 = vmatpush.msra.mxu0 %v4122
    %4155 = vmatpush.msra.mxu0 %v4120
    %4156 = vmatpush.msra.mxu0 %v4118
    %4157 = vmatmul.f32.gmra.mxu0 %v4130
    %v4158 = vpop.f32.mrf.mxu0
    %v4159 = vadd.f32 0.0, %v4158
    %4160 = vmatmul.f32.gmra.mxu0 %v4133
    %v4161 = vpop.f32.mrf.mxu0
    %v4162 = vadd.f32 0.0, %v4161
    %4163 = vmatmul.f32.gmra.mxu0 %v4136
    %v4164 = vpop.f32.mrf.mxu0
    %v4165 = vadd.f32 0.0, %v4164
    %4166 = vmatmul.f32.gmra.mxu0 %v4139
    %v4167 = vpop.f32.mrf.mxu0
    %v4168 = vadd.f32 0.0, %v4167
    %4169 = vdwg.mxu0
    %4174 = vrot.lane.b32.xlu0 %v3735, 96
    %v4175 = vpop.permute.xlu0 %4174
    %4176 = vrot.lane.b32.xlu0 %v3736, 96
    %v4177 = vpop.permute.xlu0 %4176
    %4178 = vrot.lane.b32.xlu0 %v3737, 96
    %v4179 = vpop.permute.xlu0 %4178
    %4180 = vrot.lane.b32.xlu0 %v3738, 96
    %v4181 = vpop.permute.xlu0 %4180
    %v4187 = vsel %vm82, %v3731, 0
    %v4190 = vsel %vm82, %v3732, 0
    %v4193 = vsel %vm82, %v3733, 0
    %v4196 = vsel %vm82, %v3734, 0
    %4198 = vmatpush.msra.mxu0 0.0
    %4199 = vmatpush.msra.mxu0 0.0
    %4200 = vmatpush.msra.mxu0 0.0
    %4201 = vmatpush.msra.mxu0 0.0
    %4202 = vmatpush.msra.mxu0 0.0
    %4203 = vmatpush.msra.mxu0 0.0
    %4204 = vmatpush.msra.mxu0 0.0
    %4205 = vmatpush.msra.mxu0 0.0
    %4206 = vmatpush.msra.mxu0 0.0
    %4207 = vmatpush.msra.mxu0 0.0
    %4208 = vmatpush.msra.mxu0 0.0
    %4209 = vmatpush.msra.mxu0 0.0
    %4210 = vmatpush.msra.mxu0 %v4181
    %4211 = vmatpush.msra.mxu0 %v4179
    %4212 = vmatpush.msra.mxu0 %v4177
    %4213 = vmatpush.msra.mxu0 %v4175
    %4214 = vmatmul.f32.gmra.mxu0 %v4187
    %v4215 = vpop.f32.mrf.mxu0
    %v4216 = vadd.f32 %v4159, %v4215
    %4217 = vmatmul.f32.gmra.mxu0 %v4190
    %v4218 = vpop.f32.mrf.mxu0
    %v4219 = vadd.f32 %v4162, %v4218
    %4220 = vmatmul.f32.gmra.mxu0 %v4193
    %v4221 = vpop.f32.mrf.mxu0
    %v4222 = vadd.f32 %v4165, %v4221
    %4223 = vmatmul.f32.gmra.mxu0 %v4196
    %v4224 = vpop.f32.mrf.mxu0
    %v4225 = vadd.f32 %v4168, %v4224
    %4226 = vdwg.mxu0
    %s4227 = scalar_lea.vmem %s7, 32
    %v4228 = vld [vmem:[%s4227] sm:$0xff]
    %v4229 = vld [vmem:[%s4227 + $0x8] sm:$0xff]
    %v4230 = vld [vmem:[%s4227 + $0x10] sm:$0xff]
    %v4231 = vld [vmem:[%s4227 + $0x18] sm:$0xff]
    %v4232 = vperm.slane %v3053, 6
    %v4234 = vsel %vm82, %v4094, 0
    %v4237 = vsel %vm82, %v4097, 0
    %v4240 = vsel %vm82, %v4100, 0
    %v4243 = vsel %vm82, %v4103, 0
    %4245 = vmatpush.msra.mxu0 0.0
    %4246 = vmatpush.msra.mxu0 0.0
    %4247 = vmatpush.msra.mxu0 0.0
    %4248 = vmatpush.msra.mxu0 0.0
    %4249 = vmatpush.msra.mxu0 0.0
    %4250 = vmatpush.msra.mxu0 0.0
    %4251 = vmatpush.msra.mxu0 0.0
    %4252 = vmatpush.msra.mxu0 0.0
    %4253 = vmatpush.msra.mxu0 0.0
    %4254 = vmatpush.msra.mxu0 0.0
    %4255 = vmatpush.msra.mxu0 0.0
    %4256 = vmatpush.msra.mxu0 0.0
    %4257 = vmatpush.msra.mxu0 %v4231
    %4258 = vmatpush.msra.mxu0 %v4230
    %4259 = vmatpush.msra.mxu0 %v4229
    %4260 = vmatpush.msra.mxu0 %v4228
    %4261 = vmatmul.f32.gmra.mxu0 %v4234
    %v4262 = vpop.f32.mrf.mxu0
    %v4263 = vadd.f32 %v4232, %v4262
    %4264 = vmatmul.f32.gmra.mxu0 %v4237
    %v4265 = vpop.f32.mrf.mxu0
    %v4266 = vadd.f32 %v4232, %v4265
    %4267 = vmatmul.f32.gmra.mxu0 %v4240
    %v4268 = vpop.f32.mrf.mxu0
    %v4269 = vadd.f32 %v4232, %v4268
    %4270 = vmatmul.f32.gmra.mxu0 %v4243
    %v4271 = vpop.f32.mrf.mxu0
    %v4272 = vadd.f32 %v4232, %v4271
    %4273 = vdwg.mxu0
    %v4274 = vadd.f32 %v4263, %v3044
    %v4275 = vadd.f32 %v4266, %v3045
    %v4276 = vadd.f32 %v4269, %v3046
    %v4277 = vadd.f32 %v4272, %v3047
    %s4278 = scalar_lea.vmem %s8, 32
    %v4279 = vld [vmem:[%s4278] sm:$0xff]
    %v4280 = vld [vmem:[%s4278 + $0x8] sm:$0xff]
    %v4281 = vld [vmem:[%s4278 + $0x10] sm:$0xff]
    %v4282 = vld [vmem:[%s4278 + $0x18] sm:$0xff]
    %v4283 = vperm.slane %v3053, 7
    %v4285 = vsel %vm82, %v4216, 0
    %v4288 = vsel %vm82, %v4219, 0
    %v4291 = vsel %vm82, %v4222, 0
    %v4294 = vsel %vm82, %v4225, 0
    %4296 = vmatpush.msra.mxu0 0.0
    %4297 = vmatpush.msra.mxu0 0.0
    %4298 = vmatpush.msra.mxu0 0.0
    %4299 = vmatpush.msra.mxu0 0.0
    %4300 = vmatpush.msra.mxu0 0.0
    %4301 = vmatpush.msra.mxu0 0.0
    %4302 = vmatpush.msra.mxu0 0.0
    %4303 = vmatpush.msra.mxu0 0.0
    %4304 = vmatpush.msra.mxu0 0.0
    %4305 = vmatpush.msra.mxu0 0.0
    %4306 = vmatpush.msra.mxu0 0.0
    %4307 = vmatpush.msra.mxu0 0.0
    %4308 = vmatpush.msra.mxu0 %v4282
    %4309 = vmatpush.msra.mxu0 %v4281
    %4310 = vmatpush.msra.mxu0 %v4280
    %4311 = vmatpush.msra.mxu0 %v4279
    %4312 = vmatmul.f32.gmra.mxu0 %v4285
    %v4313 = vpop.f32.mrf.mxu0
    %v4314 = vadd.f32 %v4283, %v4313
    %4315 = vmatmul.f32.gmra.mxu0 %v4288
    %v4316 = vpop.f32.mrf.mxu0
    %v4317 = vadd.f32 %v4283, %v4316
    %4318 = vmatmul.f32.gmra.mxu0 %v4291
    %v4319 = vpop.f32.mrf.mxu0
    %v4320 = vadd.f32 %v4283, %v4319
    %4321 = vmatmul.f32.gmra.mxu0 %v4294
    %v4322 = vpop.f32.mrf.mxu0
    %v4323 = vadd.f32 %v4283, %v4322
    %4324 = vdwg.mxu0
    %v4325 = vadd.f32 %v4314, %v3048
    %v4326 = vadd.f32 %v4317, %v3049
    %v4327 = vadd.f32 %v4320, %v3050
    %v4328 = vadd.f32 %v4323, %v3051
    %v4329 = vsel %vm82, %v4274, 0.0
    %4330 = vadd.xlane.f32.xlu0 %v4329
    %v4331 = vpop.xlane.xlu0 %4330
    %v4332 = vsel %vm82, %v4275, 0.0
    %4333 = vadd.xlane.f32.xlu0 %v4332
    %v4334 = vpop.xlane.xlu0 %4333
    %v4335 = vsel %vm82, %v4276, 0.0
    %4336 = vadd.xlane.f32.xlu0 %v4335
    %v4337 = vpop.xlane.xlu0 %4336
    %v4338 = vsel %vm82, %v4277, 0.0
    %4339 = vadd.xlane.f32.xlu0 %v4338
    %v4340 = vpop.xlane.xlu0 %4339
    %v4341 = vsel %vm82, %v4325, 0.0
    %4342 = vadd.xlane.f32.xlu0 %v4341
    %v4343 = vpop.xlane.xlu0 %4342
    %v4344 = vsel %vm82, %v4326, 0.0
    %4345 = vadd.xlane.f32.xlu0 %v4344
    %v4346 = vpop.xlane.xlu0 %4345
    %v4347 = vsel %vm82, %v4327, 0.0
    %4348 = vadd.xlane.f32.xlu0 %v4347
    %v4349 = vpop.xlane.xlu0 %4348
    %v4350 = vsel %vm82, %v4328, 0.0
    %4351 = vadd.xlane.f32.xlu0 %v4350
    %v4352 = vpop.xlane.xlu0 %4351
    %v4353 = vmul.f32 %v4331, %v137
    %v4354 = vmul.f32 %v4334, %v137
    %v4355 = vmul.f32 %v4337, %v137
    %v4356 = vmul.f32 %v4340, %v137
    %v4357 = vmul.f32 %v4343, %v137
    %v4358 = vmul.f32 %v4346, %v137
    %v4359 = vmul.f32 %v4349, %v137
    %v4360 = vmul.f32 %v4352, %v137
    %v4361 = vsub.f32 %v4274, %v4353
    %v4362 = vsub.f32 %v4275, %v4354
    %v4363 = vsub.f32 %v4276, %v4355
    %v4364 = vsub.f32 %v4277, %v4356
    %v4365 = vsub.f32 %v4325, %v4357
    %v4366 = vsub.f32 %v4326, %v4358
    %v4367 = vsub.f32 %v4327, %v4359
    %v4368 = vsub.f32 %v4328, %v4360
    %v4369 = vmul.f32 %v4361, %v4361
    %v4370 = vmul.f32 %v4362, %v4362
    %v4371 = vmul.f32 %v4363, %v4363
    %v4372 = vmul.f32 %v4364, %v4364
    %v4373 = vmul.f32 %v4365, %v4365
    %v4374 = vmul.f32 %v4366, %v4366
    %v4375 = vmul.f32 %v4367, %v4367
    %v4376 = vmul.f32 %v4368, %v4368
    %v4377 = vsel %vm82, %v4369, 0.0
    %4378 = vadd.xlane.f32.xlu0 %v4377
    %v4379 = vpop.xlane.xlu0 %4378
    %v4380 = vsel %vm82, %v4370, 0.0
    %4381 = vadd.xlane.f32.xlu0 %v4380
    %v4382 = vpop.xlane.xlu0 %4381
    %v4383 = vsel %vm82, %v4371, 0.0
    %4384 = vadd.xlane.f32.xlu0 %v4383
    %v4385 = vpop.xlane.xlu0 %4384
    %v4386 = vsel %vm82, %v4372, 0.0
    %4387 = vadd.xlane.f32.xlu0 %v4386
    %v4388 = vpop.xlane.xlu0 %4387
    %v4389 = vsel %vm82, %v4373, 0.0
    %4390 = vadd.xlane.f32.xlu0 %v4389
    %v4391 = vpop.xlane.xlu0 %4390
    %v4392 = vsel %vm82, %v4374, 0.0
    %4393 = vadd.xlane.f32.xlu0 %v4392
    %v4394 = vpop.xlane.xlu0 %4393
    %v4395 = vsel %vm82, %v4375, 0.0
    %4396 = vadd.xlane.f32.xlu0 %v4395
    %v4397 = vpop.xlane.xlu0 %4396
    %v4398 = vsel %vm82, %v4376, 0.0
    %4399 = vadd.xlane.f32.xlu0 %v4398
    %v4400 = vpop.xlane.xlu0 %4399
    %v4401 = vmul.f32 %v4379, %v137
    %v4402 = vmul.f32 %v4382, %v137
    %v4403 = vmul.f32 %v4385, %v137
    %v4404 = vmul.f32 %v4388, %v137
    %v4405 = vmul.f32 %v4391, %v137
    %v4406 = vmul.f32 %v4394, %v137
    %v4407 = vmul.f32 %v4397, %v137
    %v4408 = vmul.f32 %v4400, %v137
    %v4409 = vadd.f32 %v4401, 1e-12
    %v4410 = vadd.f32 %v4402, 1e-12
    %v4411 = vadd.f32 %v4403, 1e-12
    %v4412 = vadd.f32 %v4404, 1e-12
    %v4413 = vadd.f32 %v4405, 1e-12
    %v4414 = vadd.f32 %v4406, 1e-12
    %v4415 = vadd.f32 %v4407, 1e-12
    %v4416 = vadd.f32 %v4408, 1e-12
    %v4417 = vrsqrt.pop %v4409
    %v4418 = vmul.f32 %v4417, %v4409
    %v4419 = vmul.f32 %v4418, %v4417
    %v4420 = vmul.f32 0.5, %v4419
    %v4421 = vsub.f32 1.5, %v4420
    %v4422 = vmul.f32 %v4417, %v4421
    %v4423 = vmul.f32 %v4409, %v4422
    %vm4424 = vcmp.eq.f32.partialorder %v4409, inf
    %v4425 = vsel %vm4424, %v4409, %v4423
    %vm4426 = vcmp.eq.f32.partialorder %v4409, 0.0
    %v4427 = vand.u32 %v4409, 2147483648
    %v4428 = vsel %vm4426, %v4427, %v4425
    %v4429 = vrsqrt.pop %v4410
    %v4430 = vmul.f32 %v4429, %v4410
    %v4431 = vmul.f32 %v4430, %v4429
    %v4432 = vmul.f32 0.5, %v4431
    %v4433 = vsub.f32 1.5, %v4432
    %v4434 = vmul.f32 %v4429, %v4433
    %v4435 = vmul.f32 %v4410, %v4434
    %vm4436 = vcmp.eq.f32.partialorder %v4410, inf
    %v4437 = vsel %vm4436, %v4410, %v4435
    %vm4438 = vcmp.eq.f32.partialorder %v4410, 0.0
    %v4439 = vand.u32 %v4410, 2147483648
    %v4440 = vsel %vm4438, %v4439, %v4437
    %v4441 = vrsqrt.pop %v4411
    %v4442 = vmul.f32 %v4441, %v4411
    %v4443 = vmul.f32 %v4442, %v4441
    %v4444 = vmul.f32 0.5, %v4443
    %v4445 = vsub.f32 1.5, %v4444
    %v4446 = vmul.f32 %v4441, %v4445
    %v4447 = vmul.f32 %v4411, %v4446
    %vm4448 = vcmp.eq.f32.partialorder %v4411, inf
    %v4449 = vsel %vm4448, %v4411, %v4447
    %vm4450 = vcmp.eq.f32.partialorder %v4411, 0.0
    %v4451 = vand.u32 %v4411, 2147483648
    %v4452 = vsel %vm4450, %v4451, %v4449
    %v4453 = vrsqrt.pop %v4412
    %v4454 = vmul.f32 %v4453, %v4412
    %v4455 = vmul.f32 %v4454, %v4453
    %v4456 = vmul.f32 0.5, %v4455
    %v4457 = vsub.f32 1.5, %v4456
    %v4458 = vmul.f32 %v4453, %v4457
    %v4459 = vmul.f32 %v4412, %v4458
    %vm4460 = vcmp.eq.f32.partialorder %v4412, inf
    %v4461 = vsel %vm4460, %v4412, %v4459
    %vm4462 = vcmp.eq.f32.partialorder %v4412, 0.0
    %v4463 = vand.u32 %v4412, 2147483648
    %v4464 = vsel %vm4462, %v4463, %v4461
    %v4465 = vrsqrt.pop %v4413
    %v4466 = vmul.f32 %v4465, %v4413
    %v4467 = vmul.f32 %v4466, %v4465
    %v4468 = vmul.f32 0.5, %v4467
    %v4469 = vsub.f32 1.5, %v4468
    %v4470 = vmul.f32 %v4465, %v4469
    %v4471 = vmul.f32 %v4413, %v4470
    %vm4472 = vcmp.eq.f32.partialorder %v4413, inf
    %v4473 = vsel %vm4472, %v4413, %v4471
    %vm4474 = vcmp.eq.f32.partialorder %v4413, 0.0
    %v4475 = vand.u32 %v4413, 2147483648
    %v4476 = vsel %vm4474, %v4475, %v4473
    %v4477 = vrsqrt.pop %v4414
    %v4478 = vmul.f32 %v4477, %v4414
    %v4479 = vmul.f32 %v4478, %v4477
    %v4480 = vmul.f32 0.5, %v4479
    %v4481 = vsub.f32 1.5, %v4480
    %v4482 = vmul.f32 %v4477, %v4481
    %v4483 = vmul.f32 %v4414, %v4482
    %vm4484 = vcmp.eq.f32.partialorder %v4414, inf
    %v4485 = vsel %vm4484, %v4414, %v4483
    %vm4486 = vcmp.eq.f32.partialorder %v4414, 0.0
    %v4487 = vand.u32 %v4414, 2147483648
    %v4488 = vsel %vm4486, %v4487, %v4485
    %v4489 = vrsqrt.pop %v4415
    %v4490 = vmul.f32 %v4489, %v4415
    %v4491 = vmul.f32 %v4490, %v4489
    %v4492 = vmul.f32 0.5, %v4491
    %v4493 = vsub.f32 1.5, %v4492
    %v4494 = vmul.f32 %v4489, %v4493
    %v4495 = vmul.f32 %v4415, %v4494
    %vm4496 = vcmp.eq.f32.partialorder %v4415, inf
    %v4497 = vsel %vm4496, %v4415, %v4495
    %vm4498 = vcmp.eq.f32.partialorder %v4415, 0.0
    %v4499 = vand.u32 %v4415, 2147483648
    %v4500 = vsel %vm4498, %v4499, %v4497
    %v4501 = vrsqrt.pop %v4416
    %v4502 = vmul.f32 %v4501, %v4416
    %v4503 = vmul.f32 %v4502, %v4501
    %v4504 = vmul.f32 0.5, %v4503
    %v4505 = vsub.f32 1.5, %v4504
    %v4506 = vmul.f32 %v4501, %v4505
    %v4507 = vmul.f32 %v4416, %v4506
    %vm4508 = vcmp.eq.f32.partialorder %v4416, inf
    %v4509 = vsel %vm4508, %v4416, %v4507
    %vm4510 = vcmp.eq.f32.partialorder %v4416, 0.0
    %v4511 = vand.u32 %v4416, 2147483648
    %v4512 = vsel %vm4510, %v4511, %v4509
    %v4513 = vrcp.pop %v4428
    %v4514 = vmul.f32 %v4428, %v4513
    %v4515 = vsub.f32 1.0, %v4514
    %v4516 = vmul.f32 %v4513, %v4515
    %v4517 = vadd.f32 %v4513, %v4516
    %vm4518 = vweird.f32 %v4428
    %vm4519 = vweird.f32 %v4513
    %vm4520 = vmor %vm4518, %vm4519
    %v4521 = vsel %vm4520, %v4513, %v4517
    %v4522 = vand.u32 2147483647, %v4428
    %vm4523 = vcmp.eq.f32.partialorder %v4522, 8.507059e+37
    %v4524 = vand.u32 %v4428, 2147483648
    %v4525 = vor.u32 1.1754944e-38, %v4524
    %v4526 = vsel %vm4523, %v4525, %v4521
    %v4527 = vmul.f32 %v4361, %v4526
    %v4528 = vrcp.pop %v4440
    %v4529 = vmul.f32 %v4440, %v4528
    %v4530 = vsub.f32 1.0, %v4529
    %v4531 = vmul.f32 %v4528, %v4530
    %v4532 = vadd.f32 %v4528, %v4531
    %vm4533 = vweird.f32 %v4440
    %vm4534 = vweird.f32 %v4528
    %vm4535 = vmor %vm4533, %vm4534
    %v4536 = vsel %vm4535, %v4528, %v4532
    %v4537 = vand.u32 2147483647, %v4440
    %vm4538 = vcmp.eq.f32.partialorder %v4537, 8.507059e+37
    %v4539 = vand.u32 %v4440, 2147483648
    %v4540 = vor.u32 1.1754944e-38, %v4539
    %v4541 = vsel %vm4538, %v4540, %v4536
    %v4542 = vmul.f32 %v4362, %v4541
    %v4543 = vrcp.pop %v4452
    %v4544 = vmul.f32 %v4452, %v4543
    %v4545 = vsub.f32 1.0, %v4544
    %v4546 = vmul.f32 %v4543, %v4545
    %v4547 = vadd.f32 %v4543, %v4546
    %vm4548 = vweird.f32 %v4452
    %vm4549 = vweird.f32 %v4543
    %vm4550 = vmor %vm4548, %vm4549
    %v4551 = vsel %vm4550, %v4543, %v4547
    %v4552 = vand.u32 2147483647, %v4452
    %vm4553 = vcmp.eq.f32.partialorder %v4552, 8.507059e+37
    %v4554 = vand.u32 %v4452, 2147483648
    %v4555 = vor.u32 1.1754944e-38, %v4554
    %v4556 = vsel %vm4553, %v4555, %v4551
    %v4557 = vmul.f32 %v4363, %v4556
    %v4558 = vrcp.pop %v4464
    %v4559 = vmul.f32 %v4464, %v4558
    %v4560 = vsub.f32 1.0, %v4559
    %v4561 = vmul.f32 %v4558, %v4560
    %v4562 = vadd.f32 %v4558, %v4561
    %vm4563 = vweird.f32 %v4464
    %vm4564 = vweird.f32 %v4558
    %vm4565 = vmor %vm4563, %vm4564
    %v4566 = vsel %vm4565, %v4558, %v4562
    %v4567 = vand.u32 2147483647, %v4464
    %vm4568 = vcmp.eq.f32.partialorder %v4567, 8.507059e+37
    %v4569 = vand.u32 %v4464, 2147483648
    %v4570 = vor.u32 1.1754944e-38, %v4569
    %v4571 = vsel %vm4568, %v4570, %v4566
    %v4572 = vmul.f32 %v4364, %v4571
    %v4573 = vrcp.pop %v4476
    %v4574 = vmul.f32 %v4476, %v4573
    %v4575 = vsub.f32 1.0, %v4574
    %v4576 = vmul.f32 %v4573, %v4575
    %v4577 = vadd.f32 %v4573, %v4576
    %vm4578 = vweird.f32 %v4476
    %vm4579 = vweird.f32 %v4573
    %vm4580 = vmor %vm4578, %vm4579
    %v4581 = vsel %vm4580, %v4573, %v4577
    %v4582 = vand.u32 2147483647, %v4476
    %vm4583 = vcmp.eq.f32.partialorder %v4582, 8.507059e+37
    %v4584 = vand.u32 %v4476, 2147483648
    %v4585 = vor.u32 1.1754944e-38, %v4584
    %v4586 = vsel %vm4583, %v4585, %v4581
    %v4587 = vmul.f32 %v4365, %v4586
    %v4588 = vrcp.pop %v4488
    %v4589 = vmul.f32 %v4488, %v4588
    %v4590 = vsub.f32 1.0, %v4589
    %v4591 = vmul.f32 %v4588, %v4590
    %v4592 = vadd.f32 %v4588, %v4591
    %vm4593 = vweird.f32 %v4488
    %vm4594 = vweird.f32 %v4588
    %vm4595 = vmor %vm4593, %vm4594
    %v4596 = vsel %vm4595, %v4588, %v4592
    %v4597 = vand.u32 2147483647, %v4488
    %vm4598 = vcmp.eq.f32.partialorder %v4597, 8.507059e+37
    %v4599 = vand.u32 %v4488, 2147483648
    %v4600 = vor.u32 1.1754944e-38, %v4599
    %v4601 = vsel %vm4598, %v4600, %v4596
    %v4602 = vmul.f32 %v4366, %v4601
    %v4603 = vrcp.pop %v4500
    %v4604 = vmul.f32 %v4500, %v4603
    %v4605 = vsub.f32 1.0, %v4604
    %v4606 = vmul.f32 %v4603, %v4605
    %v4607 = vadd.f32 %v4603, %v4606
    %vm4608 = vweird.f32 %v4500
    %vm4609 = vweird.f32 %v4603
    %vm4610 = vmor %vm4608, %vm4609
    %v4611 = vsel %vm4610, %v4603, %v4607
    %v4612 = vand.u32 2147483647, %v4500
    %vm4613 = vcmp.eq.f32.partialorder %v4612, 8.507059e+37
    %v4614 = vand.u32 %v4500, 2147483648
    %v4615 = vor.u32 1.1754944e-38, %v4614
    %v4616 = vsel %vm4613, %v4615, %v4611
    %v4617 = vmul.f32 %v4367, %v4616
    %v4618 = vrcp.pop %v4512
    %v4619 = vmul.f32 %v4512, %v4618
    %v4620 = vsub.f32 1.0, %v4619
    %v4621 = vmul.f32 %v4618, %v4620
    %v4622 = vadd.f32 %v4618, %v4621
    %vm4623 = vweird.f32 %v4512
    %vm4624 = vweird.f32 %v4618
    %vm4625 = vmor %vm4623, %vm4624
    %v4626 = vsel %vm4625, %v4618, %v4622
    %v4627 = vand.u32 2147483647, %v4512
    %vm4628 = vcmp.eq.f32.partialorder %v4627, 8.507059e+37
    %v4629 = vand.u32 %v4512, 2147483648
    %v4630 = vor.u32 1.1754944e-38, %v4629
    %v4631 = vsel %vm4628, %v4630, %v4626
    %v4632 = vmul.f32 %v4368, %v4631
    %v4633 = vperm.slane %v3054, 0
    %v4634 = vmul.f32 %v4527, %v4633
    %v4635 = vmul.f32 %v4542, %v4633
    %v4636 = vmul.f32 %v4557, %v4633
    %v4637 = vmul.f32 %v4572, %v4633
    %v4638 = vmul.f32 %v4587, %v4633
    %v4639 = vmul.f32 %v4602, %v4633
    %v4640 = vmul.f32 %v4617, %v4633
    %v4641 = vmul.f32 %v4632, %v4633
    %v4642 = vperm.slane %v3054, 1
    %v4643 = vadd.f32 %v4634, %v4642
    %v4644 = vadd.f32 %v4635, %v4642
    %v4645 = vadd.f32 %v4636, %v4642
    %v4646 = vadd.f32 %v4637, %v4642
    %v4647 = vadd.f32 %v4638, %v4642
    %v4648 = vadd.f32 %v4639, %v4642
    %v4649 = vadd.f32 %v4640, %v4642
    %v4650 = vadd.f32 %v4641, %v4642
    %s4651 = scalar_lea.vmem [#allocation2], 32
    %v4652 = vld [vmem:[%s4651] sm:$0xff]
    %v4653 = vld [vmem:[%s4651 + $0x8] sm:$0xff]
    %v4654 = vld [vmem:[%s4651 + $0x10] sm:$0xff]
    %v4655 = vld [vmem:[%s4651 + $0x18] sm:$0xff]
    %v4657 = vperm.slane %v3056, 0
    %v4660 = vsel %vm82, %v4643, 0
    %v4663 = vsel %vm82, %v4644, 0
    %v4666 = vsel %vm82, %v4645, 0
    %v4669 = vsel %vm82, %v4646, 0
    %v4672 = vsel %vm82, %v4647, 0
    %v4675 = vsel %vm82, %v4648, 0
    %v4678 = vsel %vm82, %v4649, 0
    %v4681 = vsel %vm82, %v4650, 0
    %4683 = vmatpush.msra.mxu0 0.0
    %4684 = vmatpush.msra.mxu0 0.0
    %4685 = vmatpush.msra.mxu0 0.0
    %4686 = vmatpush.msra.mxu0 0.0
    %4687 = vmatpush.msra.mxu0 0.0
    %4688 = vmatpush.msra.mxu0 0.0
    %4689 = vmatpush.msra.mxu0 0.0
    %4690 = vmatpush.msra.mxu0 0.0
    %4691 = vmatpush.msra.mxu0 0.0
    %4692 = vmatpush.msra.mxu0 0.0
    %4693 = vmatpush.msra.mxu0 0.0
    %4694 = vmatpush.msra.mxu0 0.0
    %4695 = vmatpush.msra.mxu0 %v4655
    %4696 = vmatpush.msra.mxu0 %v4654
    %4697 = vmatpush.msra.mxu0 %v4653
    %4698 = vmatpush.msra.mxu0 %v4652
    %4699 = vmatmul.f32.gmra.mxu0 %v4660
    %v4700 = vpop.f32.mrf.mxu0
    %v4701 = vadd.f32 %v4657, %v4700
    %4702 = vmatmul.f32.gmra.mxu0 %v4663
    %v4703 = vpop.f32.mrf.mxu0
    %v4704 = vadd.f32 %v4657, %v4703
    %4705 = vmatmul.f32.gmra.mxu0 %v4666
    %v4706 = vpop.f32.mrf.mxu0
    %v4707 = vadd.f32 %v4657, %v4706
    %4708 = vmatmul.f32.gmra.mxu0 %v4669
    %v4709 = vpop.f32.mrf.mxu0
    %v4710 = vadd.f32 %v4657, %v4709
    %4711 = vmatmul.f32.gmra.mxu0 %v4672
    %v4712 = vpop.f32.mrf.mxu0
    %v4713 = vadd.f32 %v4657, %v4712
    %4714 = vmatmul.f32.gmra.mxu0 %v4675
    %v4715 = vpop.f32.mrf.mxu0
    %v4716 = vadd.f32 %v4657, %v4715
    %4717 = vmatmul.f32.gmra.mxu0 %v4678
    %v4718 = vpop.f32.mrf.mxu0
    %v4719 = vadd.f32 %v4657, %v4718
    %4720 = vmatmul.f32.gmra.mxu0 %v4681
    %v4721 = vpop.f32.mrf.mxu0
    %v4722 = vadd.f32 %v4657, %v4721
    %4723 = vdwg.mxu0
    %v4724 = vmul.f32 %v4701, 0.5
    %v4725 = vmul.f32 %v4704, 0.5
    %v4726 = vmul.f32 %v4707, 0.5
    %v4727 = vmul.f32 %v4710, 0.5
    %v4728 = vmul.f32 %v4713, 0.5
    %v4729 = vmul.f32 %v4716, 0.5
    %v4730 = vmul.f32 %v4719, 0.5
    %v4731 = vmul.f32 %v4722, 0.5
    %v4732 = vmul.f32 %v4701, 0.044715
    %v4733 = vmul.f32 %v4704, 0.044715
    %v4734 = vmul.f32 %v4707, 0.044715
    %v4735 = vmul.f32 %v4710, 0.044715
    %v4736 = vmul.f32 %v4713, 0.044715
    %v4737 = vmul.f32 %v4716, 0.044715
    %v4738 = vmul.f32 %v4719, 0.044715
    %v4739 = vmul.f32 %v4722, 0.044715
    %v4740 = vmul.f32 %v4732, %v4701
    %v4741 = vmul.f32 %v4733, %v4704
    %v4742 = vmul.f32 %v4734, %v4707
    %v4743 = vmul.f32 %v4735, %v4710
    %v4744 = vmul.f32 %v4736, %v4713
    %v4745 = vmul.f32 %v4737, %v4716
    %v4746 = vmul.f32 %v4738, %v4719
    %v4747 = vmul.f32 %v4739, %v4722
    %v4748 = vmul.f32 %v4740, %v4701
    %v4749 = vmul.f32 %v4741, %v4704
    %v4750 = vmul.f32 %v4742, %v4707
    %v4751 = vmul.f32 %v4743, %v4710
    %v4752 = vmul.f32 %v4744, %v4713
    %v4753 = vmul.f32 %v4745, %v4716
    %v4754 = vmul.f32 %v4746, %v4719
    %v4755 = vmul.f32 %v4747, %v4722
    %v4756 = vadd.f32 %v4701, %v4748
    %v4757 = vadd.f32 %v4704, %v4749
    %v4758 = vadd.f32 %v4707, %v4750
    %v4759 = vadd.f32 %v4710, %v4751
    %v4760 = vadd.f32 %v4713, %v4752
    %v4761 = vadd.f32 %v4716, %v4753
    %v4762 = vadd.f32 %v4719, %v4754
    %v4763 = vadd.f32 %v4722, %v4755
    %v4764 = vmul.f32 %v4756, 0.7978846
    %v4765 = vmul.f32 %v4757, 0.7978846
    %v4766 = vmul.f32 %v4758, 0.7978846
    %v4767 = vmul.f32 %v4759, 0.7978846
    %v4768 = vmul.f32 %v4760, 0.7978846
    %v4769 = vmul.f32 %v4761, 0.7978846
    %v4770 = vmul.f32 %v4762, 0.7978846
    %v4771 = vmul.f32 %v4763, 0.7978846
    %v4772 = vtanh.pop %v4764
    %v4773 = vtanh.pop %v4765
    %v4774 = vtanh.pop %v4766
    %v4775 = vtanh.pop %v4767
    %v4776 = vtanh.pop %v4768
    %v4777 = vtanh.pop %v4769
    %v4778 = vtanh.pop %v4770
    %v4779 = vtanh.pop %v4771
    %v4780 = vadd.f32 %v4772, 1.0
    %v4781 = vadd.f32 %v4773, 1.0
    %v4782 = vadd.f32 %v4774, 1.0
    %v4783 = vadd.f32 %v4775, 1.0
    %v4784 = vadd.f32 %v4776, 1.0
    %v4785 = vadd.f32 %v4777, 1.0
    %v4786 = vadd.f32 %v4778, 1.0
    %v4787 = vadd.f32 %v4779, 1.0
    %v4788 = vmul.f32 %v4724, %v4780
    %v4789 = vmul.f32 %v4725, %v4781
    %v4790 = vmul.f32 %v4726, %v4782
    %v4791 = vmul.f32 %v4727, %v4783
    %v4792 = vmul.f32 %v4728, %v4784
    %v4793 = vmul.f32 %v4729, %v4785
    %v4794 = vmul.f32 %v4730, %v4786
    %v4795 = vmul.f32 %v4731, %v4787
    %s4796 = scalar_lea.vmem %s10, 128
    %v4797 = vld [vmem:[%s4796] sm:$0xff]
    %v4798 = vld [vmem:[%s4796 + $0x8] sm:$0xff]
    %v4799 = vld [vmem:[%s4796 + $0x10] sm:$0xff]
    %v4800 = vld [vmem:[%s4796 + $0x18] sm:$0xff]
    %v4801 = vld [vmem:[%s4796 + $0x20] sm:$0xff]
    %v4802 = vld [vmem:[%s4796 + $0x28] sm:$0xff]
    %v4803 = vld [vmem:[%s4796 + $0x30] sm:$0xff]
    %v4804 = vld [vmem:[%s4796 + $0x38] sm:$0xff]
    %v4805 = vld [vmem:[%s4796 + $0x40] sm:$0xff]
    %v4806 = vld [vmem:[%s4796 + $0x48] sm:$0xff]
    %v4807 = vld [vmem:[%s4796 + $0x50] sm:$0xff]
    %v4808 = vld [vmem:[%s4796 + $0x58] sm:$0xff]
    %v4809 = vld [vmem:[%s4796 + $0x60] sm:$0xff]
    %v4810 = vld [vmem:[%s4796 + $0x68] sm:$0xff]
    %v4811 = vld [vmem:[%s4796 + $0x70] sm:$0xff]
    %v4812 = vld [vmem:[%s4796 + $0x78] sm:$0xff]
    %v4813 = vperm.slane %v3054, 2
    %4814 = vmatpush.msra.mxu0 %v4812
    %4815 = vmatpush.msra.mxu0 %v4811
    %4816 = vmatpush.msra.mxu0 %v4810
    %4817 = vmatpush.msra.mxu0 %v4809
    %4818 = vmatpush.msra.mxu0 %v4808
    %4819 = vmatpush.msra.mxu0 %v4807
    %4820 = vmatpush.msra.mxu0 %v4806
    %4821 = vmatpush.msra.mxu0 %v4805
    %4822 = vmatpush.msra.mxu0 %v4804
    %4823 = vmatpush.msra.mxu0 %v4803
    %4824 = vmatpush.msra.mxu0 %v4802
    %4825 = vmatpush.msra.mxu0 %v4801
    %4826 = vmatpush.msra.mxu0 %v4800
    %4827 = vmatpush.msra.mxu0 %v4799
    %4828 = vmatpush.msra.mxu0 %v4798
    %4829 = vmatpush.msra.mxu0 %v4797
    %4830 = vmatmul.f32.gmra.mxu0 %v4788
    %v4831 = vpop.f32.mrf.mxu0
    %v4832 = vadd.f32 %v4813, %v4831
    %4833 = vmatmul.f32.gmra.mxu0 %v4789
    %v4834 = vpop.f32.mrf.mxu0
    %v4835 = vadd.f32 %v4813, %v4834
    %4836 = vmatmul.f32.gmra.mxu0 %v4790
    %v4837 = vpop.f32.mrf.mxu0
    %v4838 = vadd.f32 %v4813, %v4837
    %4839 = vmatmul.f32.gmra.mxu0 %v4791
    %v4840 = vpop.f32.mrf.mxu0
    %v4841 = vadd.f32 %v4813, %v4840
    %4842 = vmatmul.f32.gmra.mxu0 %v4792
    %v4843 = vpop.f32.mrf.mxu0
    %v4844 = vadd.f32 %v4813, %v4843
    %4845 = vmatmul.f32.gmra.mxu0 %v4793
    %v4846 = vpop.f32.mrf.mxu0
    %v4847 = vadd.f32 %v4813, %v4846
    %4848 = vmatmul.f32.gmra.mxu0 %v4794
    %v4849 = vpop.f32.mrf.mxu0
    %v4850 = vadd.f32 %v4813, %v4849
    %4851 = vmatmul.f32.gmra.mxu0 %v4795
    %v4852 = vpop.f32.mrf.mxu0
    %v4853 = vadd.f32 %v4813, %v4852
    %4854 = vdwg.mxu0
    %v4855 = vadd.f32 %v4832, %v4643
    %v4856 = vadd.f32 %v4835, %v4644
    %v4857 = vadd.f32 %v4838, %v4645
    %v4858 = vadd.f32 %v4841, %v4646
    %v4859 = vadd.f32 %v4844, %v4647
    %v4860 = vadd.f32 %v4847, %v4648
    %v4861 = vadd.f32 %v4850, %v4649
    %v4862 = vadd.f32 %v4853, %v4650
    %v4863 = vsel %vm82, %v4855, 0.0
    %4864 = vadd.xlane.f32.xlu0 %v4863
    %v4865 = vpop.xlane.xlu0 %4864
    %v4866 = vsel %vm82, %v4856, 0.0
    %4867 = vadd.xlane.f32.xlu0 %v4866
    %v4868 = vpop.xlane.xlu0 %4867
    %v4869 = vsel %vm82, %v4857, 0.0
    %4870 = vadd.xlane.f32.xlu0 %v4869
    %v4871 = vpop.xlane.xlu0 %4870
    %v4872 = vsel %vm82, %v4858, 0.0
    %4873 = vadd.xlane.f32.xlu0 %v4872
    %v4874 = vpop.xlane.xlu0 %4873
    %v4875 = vsel %vm82, %v4859, 0.0
    %4876 = vadd.xlane.f32.xlu0 %v4875
    %v4877 = vpop.xlane.xlu0 %4876
    %v4878 = vsel %vm82, %v4860, 0.0
    %4879 = vadd.xlane.f32.xlu0 %v4878
    %v4880 = vpop.xlane.xlu0 %4879
    %v4881 = vsel %vm82, %v4861, 0.0
    %4882 = vadd.xlane.f32.xlu0 %v4881
    %v4883 = vpop.xlane.xlu0 %4882
    %v4884 = vsel %vm82, %v4862, 0.0
    %4885 = vadd.xlane.f32.xlu0 %v4884
    %v4886 = vpop.xlane.xlu0 %4885
    %v4887 = vmul.f32 %v4865, %v137
    %v4888 = vmul.f32 %v4868, %v137
    %v4889 = vmul.f32 %v4871, %v137
    %v4890 = vmul.f32 %v4874, %v137
    %v4891 = vmul.f32 %v4877, %v137
    %v4892 = vmul.f32 %v4880, %v137
    %v4893 = vmul.f32 %v4883, %v137
    %v4894 = vmul.f32 %v4886, %v137
    %v4895 = vsub.f32 %v4855, %v4887
    %v4896 = vsub.f32 %v4856, %v4888
    %v4897 = vsub.f32 %v4857, %v4889
    %v4898 = vsub.f32 %v4858, %v4890
    %v4899 = vsub.f32 %v4859, %v4891
    %v4900 = vsub.f32 %v4860, %v4892
    %v4901 = vsub.f32 %v4861, %v4893
    %v4902 = vsub.f32 %v4862, %v4894
    %v4903 = vmul.f32 %v4895, %v4895
    %v4904 = vmul.f32 %v4896, %v4896
    %v4905 = vmul.f32 %v4897, %v4897
    %v4906 = vmul.f32 %v4898, %v4898
    %v4907 = vmul.f32 %v4899, %v4899
    %v4908 = vmul.f32 %v4900, %v4900
    %v4909 = vmul.f32 %v4901, %v4901
    %v4910 = vmul.f32 %v4902, %v4902
    %v4911 = vsel %vm82, %v4903, 0.0
    %4912 = vadd.xlane.f32.xlu0 %v4911
    %v4913 = vpop.xlane.xlu0 %4912
    %v4914 = vsel %vm82, %v4904, 0.0
    %4915 = vadd.xlane.f32.xlu0 %v4914
    %v4916 = vpop.xlane.xlu0 %4915
    %v4917 = vsel %vm82, %v4905, 0.0
    %4918 = vadd.xlane.f32.xlu0 %v4917
    %v4919 = vpop.xlane.xlu0 %4918
    %v4920 = vsel %vm82, %v4906, 0.0
    %4921 = vadd.xlane.f32.xlu0 %v4920
    %v4922 = vpop.xlane.xlu0 %4921
    %v4923 = vsel %vm82, %v4907, 0.0
    %4924 = vadd.xlane.f32.xlu0 %v4923
    %v4925 = vpop.xlane.xlu0 %4924
    %v4926 = vsel %vm82, %v4908, 0.0
    %4927 = vadd.xlane.f32.xlu0 %v4926
    %v4928 = vpop.xlane.xlu0 %4927
    %v4929 = vsel %vm82, %v4909, 0.0
    %4930 = vadd.xlane.f32.xlu0 %v4929
    %v4931 = vpop.xlane.xlu0 %4930
    %v4932 = vsel %vm82, %v4910, 0.0
    %4933 = vadd.xlane.f32.xlu0 %v4932
    %v4934 = vpop.xlane.xlu0 %4933
    %v4935 = vmul.f32 %v4913, %v137
    %v4936 = vmul.f32 %v4916, %v137
    %v4937 = vmul.f32 %v4919, %v137
    %v4938 = vmul.f32 %v4922, %v137
    %v4939 = vmul.f32 %v4925, %v137
    %v4940 = vmul.f32 %v4928, %v137
    %v4941 = vmul.f32 %v4931, %v137
    %v4942 = vmul.f32 %v4934, %v137
    %v4943 = vadd.f32 %v4935, 1e-12
    %v4944 = vadd.f32 %v4936, 1e-12
    %v4945 = vadd.f32 %v4937, 1e-12
    %v4946 = vadd.f32 %v4938, 1e-12
    %v4947 = vadd.f32 %v4939, 1e-12
    %v4948 = vadd.f32 %v4940, 1e-12
    %v4949 = vadd.f32 %v4941, 1e-12
    %v4950 = vadd.f32 %v4942, 1e-12
    %v4951 = vrsqrt.pop %v4943
    %v4952 = vmul.f32 %v4951, %v4943
    %v4953 = vmul.f32 %v4952, %v4951
    %v4954 = vmul.f32 0.5, %v4953
    %v4955 = vsub.f32 1.5, %v4954
    %v4956 = vmul.f32 %v4951, %v4955
    %v4957 = vmul.f32 %v4943, %v4956
    %vm4958 = vcmp.eq.f32.partialorder %v4943, inf
    %v4959 = vsel %vm4958, %v4943, %v4957
    %vm4960 = vcmp.eq.f32.partialorder %v4943, 0.0
    %v4961 = vand.u32 %v4943, 2147483648
    %v4962 = vsel %vm4960, %v4961, %v4959
    %v4963 = vrsqrt.pop %v4944
    %v4964 = vmul.f32 %v4963, %v4944
    %v4965 = vmul.f32 %v4964, %v4963
    %v4966 = vmul.f32 0.5, %v4965
    %v4967 = vsub.f32 1.5, %v4966
    %v4968 = vmul.f32 %v4963, %v4967
    %v4969 = vmul.f32 %v4944, %v4968
    %vm4970 = vcmp.eq.f32.partialorder %v4944, inf
    %v4971 = vsel %vm4970, %v4944, %v4969
    %vm4972 = vcmp.eq.f32.partialorder %v4944, 0.0
    %v4973 = vand.u32 %v4944, 2147483648
    %v4974 = vsel %vm4972, %v4973, %v4971
    %v4975 = vrsqrt.pop %v4945
    %v4976 = vmul.f32 %v4975, %v4945
    %v4977 = vmul.f32 %v4976, %v4975
    %v4978 = vmul.f32 0.5, %v4977
    %v4979 = vsub.f32 1.5, %v4978
    %v4980 = vmul.f32 %v4975, %v4979
    %v4981 = vmul.f32 %v4945, %v4980
    %vm4982 = vcmp.eq.f32.partialorder %v4945, inf
    %v4983 = vsel %vm4982, %v4945, %v4981
    %vm4984 = vcmp.eq.f32.partialorder %v4945, 0.0
    %v4985 = vand.u32 %v4945, 2147483648
    %v4986 = vsel %vm4984, %v4985, %v4983
    %v4987 = vrsqrt.pop %v4946
    %v4988 = vmul.f32 %v4987, %v4946
    %v4989 = vmul.f32 %v4988, %v4987
    %v4990 = vmul.f32 0.5, %v4989
    %v4991 = vsub.f32 1.5, %v4990
    %v4992 = vmul.f32 %v4987, %v4991
    %v4993 = vmul.f32 %v4946, %v4992
    %vm4994 = vcmp.eq.f32.partialorder %v4946, inf
    %v4995 = vsel %vm4994, %v4946, %v4993
    %vm4996 = vcmp.eq.f32.partialorder %v4946, 0.0
    %v4997 = vand.u32 %v4946, 2147483648
    %v4998 = vsel %vm4996, %v4997, %v4995
    %v4999 = vrsqrt.pop %v4947
    %v5000 = vmul.f32 %v4999, %v4947
    %v5001 = vmul.f32 %v5000, %v4999
    %v5002 = vmul.f32 0.5, %v5001
    %v5003 = vsub.f32 1.5, %v5002
    %v5004 = vmul.f32 %v4999, %v5003
    %v5005 = vmul.f32 %v4947, %v5004
    %vm5006 = vcmp.eq.f32.partialorder %v4947, inf
    %v5007 = vsel %vm5006, %v4947, %v5005
    %vm5008 = vcmp.eq.f32.partialorder %v4947, 0.0
    %v5009 = vand.u32 %v4947, 2147483648
    %v5010 = vsel %vm5008, %v5009, %v5007
    %v5011 = vrsqrt.pop %v4948
    %v5012 = vmul.f32 %v5011, %v4948
    %v5013 = vmul.f32 %v5012, %v5011
    %v5014 = vmul.f32 0.5, %v5013
    %v5015 = vsub.f32 1.5, %v5014
    %v5016 = vmul.f32 %v5011, %v5015
    %v5017 = vmul.f32 %v4948, %v5016
    %vm5018 = vcmp.eq.f32.partialorder %v4948, inf
    %v5019 = vsel %vm5018, %v4948, %v5017
    %vm5020 = vcmp.eq.f32.partialorder %v4948, 0.0
    %v5021 = vand.u32 %v4948, 2147483648
    %v5022 = vsel %vm5020, %v5021, %v5019
    %v5023 = vrsqrt.pop %v4949
    %v5024 = vmul.f32 %v5023, %v4949
    %v5025 = vmul.f32 %v5024, %v5023
    %v5026 = vmul.f32 0.5, %v5025
    %v5027 = vsub.f32 1.5, %v5026
    %v5028 = vmul.f32 %v5023, %v5027
    %v5029 = vmul.f32 %v4949, %v5028
    %vm5030 = vcmp.eq.f32.partialorder %v4949, inf
    %v5031 = vsel %vm5030, %v4949, %v5029
    %vm5032 = vcmp.eq.f32.partialorder %v4949, 0.0
    %v5033 = vand.u32 %v4949, 2147483648
    %v5034 = vsel %vm5032, %v5033, %v5031
    %v5035 = vrsqrt.pop %v4950
    %v5036 = vmul.f32 %v5035, %v4950
    %v5037 = vmul.f32 %v5036, %v5035
    %v5038 = vmul.f32 0.5, %v5037
    %v5039 = vsub.f32 1.5, %v5038
    %v5040 = vmul.f32 %v5035, %v5039
    %v5041 = vmul.f32 %v4950, %v5040
    %vm5042 = vcmp.eq.f32.partialorder %v4950, inf
    %v5043 = vsel %vm5042, %v4950, %v5041
    %vm5044 = vcmp.eq.f32.partialorder %v4950, 0.0
    %v5045 = vand.u32 %v4950, 2147483648
    %v5046 = vsel %vm5044, %v5045, %v5043
    %v5047 = vrcp.pop %v4962
    %v5048 = vmul.f32 %v4962, %v5047
    %v5049 = vsub.f32 1.0, %v5048
    %v5050 = vmul.f32 %v5047, %v5049
    %v5051 = vadd.f32 %v5047, %v5050
    %vm5052 = vweird.f32 %v4962
    %vm5053 = vweird.f32 %v5047
    %vm5054 = vmor %vm5052, %vm5053
    %v5055 = vsel %vm5054, %v5047, %v5051
    %v5056 = vand.u32 2147483647, %v4962
    %vm5057 = vcmp.eq.f32.partialorder %v5056, 8.507059e+37
    %v5058 = vand.u32 %v4962, 2147483648
    %v5059 = vor.u32 1.1754944e-38, %v5058
    %v5060 = vsel %vm5057, %v5059, %v5055
    %v5061 = vmul.f32 %v4895, %v5060
    %v5062 = vrcp.pop %v4974
    %v5063 = vmul.f32 %v4974, %v5062
    %v5064 = vsub.f32 1.0, %v5063
    %v5065 = vmul.f32 %v5062, %v5064
    %v5066 = vadd.f32 %v5062, %v5065
    %vm5067 = vweird.f32 %v4974
    %vm5068 = vweird.f32 %v5062
    %vm5069 = vmor %vm5067, %vm5068
    %v5070 = vsel %vm5069, %v5062, %v5066
    %v5071 = vand.u32 2147483647, %v4974
    %vm5072 = vcmp.eq.f32.partialorder %v5071, 8.507059e+37
    %v5073 = vand.u32 %v4974, 2147483648
    %v5074 = vor.u32 1.1754944e-38, %v5073
    %v5075 = vsel %vm5072, %v5074, %v5070
    %v5076 = vmul.f32 %v4896, %v5075
    %v5077 = vrcp.pop %v4986
    %v5078 = vmul.f32 %v4986, %v5077
    %v5079 = vsub.f32 1.0, %v5078
    %v5080 = vmul.f32 %v5077, %v5079
    %v5081 = vadd.f32 %v5077, %v5080
    %vm5082 = vweird.f32 %v4986
    %vm5083 = vweird.f32 %v5077
    %vm5084 = vmor %vm5082, %vm5083
    %v5085 = vsel %vm5084, %v5077, %v5081
    %v5086 = vand.u32 2147483647, %v4986
    %vm5087 = vcmp.eq.f32.partialorder %v5086, 8.507059e+37
    %v5088 = vand.u32 %v4986, 2147483648
    %v5089 = vor.u32 1.1754944e-38, %v5088
    %v5090 = vsel %vm5087, %v5089, %v5085
    %v5091 = vmul.f32 %v4897, %v5090
    %v5092 = vrcp.pop %v4998
    %v5093 = vmul.f32 %v4998, %v5092
    %v5094 = vsub.f32 1.0, %v5093
    %v5095 = vmul.f32 %v5092, %v5094
    %v5096 = vadd.f32 %v5092, %v5095
    %vm5097 = vweird.f32 %v4998
    %vm5098 = vweird.f32 %v5092
    %vm5099 = vmor %vm5097, %vm5098
    %v5100 = vsel %vm5099, %v5092, %v5096
    %v5101 = vand.u32 2147483647, %v4998
    %vm5102 = vcmp.eq.f32.partialorder %v5101, 8.507059e+37
    %v5103 = vand.u32 %v4998, 2147483648
    %v5104 = vor.u32 1.1754944e-38, %v5103
    %v5105 = vsel %vm5102, %v5104, %v5100
    %v5106 = vmul.f32 %v4898, %v5105
    %v5107 = vrcp.pop %v5010
    %v5108 = vmul.f32 %v5010, %v5107
    %v5109 = vsub.f32 1.0, %v5108
    %v5110 = vmul.f32 %v5107, %v5109
    %v5111 = vadd.f32 %v5107, %v5110
    %vm5112 = vweird.f32 %v5010
    %vm5113 = vweird.f32 %v5107
    %vm5114 = vmor %vm5112, %vm5113
    %v5115 = vsel %vm5114, %v5107, %v5111
    %v5116 = vand.u32 2147483647, %v5010
    %vm5117 = vcmp.eq.f32.partialorder %v5116, 8.507059e+37
    %v5118 = vand.u32 %v5010, 2147483648
    %v5119 = vor.u32 1.1754944e-38, %v5118
    %v5120 = vsel %vm5117, %v5119, %v5115
    %v5121 = vmul.f32 %v4899, %v5120
    %v5122 = vrcp.pop %v5022
    %v5123 = vmul.f32 %v5022, %v5122
    %v5124 = vsub.f32 1.0, %v5123
    %v5125 = vmul.f32 %v5122, %v5124
    %v5126 = vadd.f32 %v5122, %v5125
    %vm5127 = vweird.f32 %v5022
    %vm5128 = vweird.f32 %v5122
    %vm5129 = vmor %vm5127, %vm5128
    %v5130 = vsel %vm5129, %v5122, %v5126
    %v5131 = vand.u32 2147483647, %v5022
    %vm5132 = vcmp.eq.f32.partialorder %v5131, 8.507059e+37
    %v5133 = vand.u32 %v5022, 2147483648
    %v5134 = vor.u32 1.1754944e-38, %v5133
    %v5135 = vsel %vm5132, %v5134, %v5130
    %v5136 = vmul.f32 %v4900, %v5135
    %v5137 = vrcp.pop %v5034
    %v5138 = vmul.f32 %v5034, %v5137
    %v5139 = vsub.f32 1.0, %v5138
    %v5140 = vmul.f32 %v5137, %v5139
    %v5141 = vadd.f32 %v5137, %v5140
    %vm5142 = vweird.f32 %v5034
    %vm5143 = vweird.f32 %v5137
    %vm5144 = vmor %vm5142, %vm5143
    %v5145 = vsel %vm5144, %v5137, %v5141
    %v5146 = vand.u32 2147483647, %v5034
    %vm5147 = vcmp.eq.f32.partialorder %v5146, 8.507059e+37
    %v5148 = vand.u32 %v5034, 2147483648
    %v5149 = vor.u32 1.1754944e-38, %v5148
    %v5150 = vsel %vm5147, %v5149, %v5145
    %v5151 = vmul.f32 %v4901, %v5150
    %v5152 = vrcp.pop %v5046
    %v5153 = vmul.f32 %v5046, %v5152
    %v5154 = vsub.f32 1.0, %v5153
    %v5155 = vmul.f32 %v5152, %v5154
    %v5156 = vadd.f32 %v5152, %v5155
    %vm5157 = vweird.f32 %v5046
    %vm5158 = vweird.f32 %v5152
    %vm5159 = vmor %vm5157, %vm5158
    %v5160 = vsel %vm5159, %v5152, %v5156
    %v5161 = vand.u32 2147483647, %v5046
    %vm5162 = vcmp.eq.f32.partialorder %v5161, 8.507059e+37
    %v5163 = vand.u32 %v5046, 2147483648
    %v5164 = vor.u32 1.1754944e-38, %v5163
    %v5165 = vsel %vm5162, %v5164, %v5160
    %v5166 = vmul.f32 %v4902, %v5165
    %v5167 = vperm.slane %v3054, 3
    %v5168 = vmul.f32 %v5061, %v5167
    %v5169 = vmul.f32 %v5076, %v5167
    %v5170 = vmul.f32 %v5091, %v5167
    %v5171 = vmul.f32 %v5106, %v5167
    %v5172 = vmul.f32 %v5121, %v5167
    %v5173 = vmul.f32 %v5136, %v5167
    %v5174 = vmul.f32 %v5151, %v5167
    %v5175 = vmul.f32 %v5166, %v5167
    %v5176 = vperm.slane %v3054, 4
    %v5177 = vadd.f32 %v5168, %v5176
    %v5178 = vadd.f32 %v5169, %v5176
    %v5179 = vadd.f32 %v5170, %v5176
    %v5180 = vadd.f32 %v5171, %v5176
    %v5181 = vadd.f32 %v5172, %v5176
    %v5182 = vadd.f32 %v5173, %v5176
    %v5183 = vadd.f32 %v5174, %v5176
    %v5184 = vadd.f32 %v5175, %v5176
    %v5185 = vsub.f32 %v5177, %v861
    %v5186 = vsub.f32 %v5178, %v862
    %v5187 = vsub.f32 %v5179, %v863
    %v5188 = vsub.f32 %v5180, %v864
    %v5189 = vmax.f32 %v5181, 1e-24
    %v5190 = vmax.f32 %v5182, 1e-24
    %v5191 = vmax.f32 %v5183, 1e-24
    %v5192 = vmax.f32 %v5184, 1e-24
    %v5193 = vrsqrt.pop %v5189
    %v5194 = vmul.f32 %v5193, %v5189
    %v5195 = vmul.f32 %v5194, %v5193
    %v5196 = vmul.f32 0.5, %v5195
    %v5197 = vsub.f32 1.5, %v5196
    %v5198 = vmul.f32 %v5193, %v5197
    %v5199 = vmul.f32 %v5189, %v5198
    %vm5200 = vcmp.eq.f32.partialorder %v5189, inf
    %v5201 = vsel %vm5200, %v5189, %v5199
    %vm5202 = vcmp.eq.f32.partialorder %v5189, 0.0
    %v5203 = vand.u32 %v5189, 2147483648
    %v5204 = vsel %vm5202, %v5203, %v5201
    %v5205 = vrsqrt.pop %v5190
    %v5206 = vmul.f32 %v5205, %v5190
    %v5207 = vmul.f32 %v5206, %v5205
    %v5208 = vmul.f32 0.5, %v5207
    %v5209 = vsub.f32 1.5, %v5208
    %v5210 = vmul.f32 %v5205, %v5209
    %v5211 = vmul.f32 %v5190, %v5210
    %vm5212 = vcmp.eq.f32.partialorder %v5190, inf
    %v5213 = vsel %vm5212, %v5190, %v5211
    %vm5214 = vcmp.eq.f32.partialorder %v5190, 0.0
    %v5215 = vand.u32 %v5190, 2147483648
    %v5216 = vsel %vm5214, %v5215, %v5213
    %v5217 = vrsqrt.pop %v5191
    %v5218 = vmul.f32 %v5217, %v5191
    %v5219 = vmul.f32 %v5218, %v5217
    %v5220 = vmul.f32 0.5, %v5219
    %v5221 = vsub.f32 1.5, %v5220
    %v5222 = vmul.f32 %v5217, %v5221
    %v5223 = vmul.f32 %v5191, %v5222
    %vm5224 = vcmp.eq.f32.partialorder %v5191, inf
    %v5225 = vsel %vm5224, %v5191, %v5223
    %vm5226 = vcmp.eq.f32.partialorder %v5191, 0.0
    %v5227 = vand.u32 %v5191, 2147483648
    %v5228 = vsel %vm5226, %v5227, %v5225
    %v5229 = vrsqrt.pop %v5192
    %v5230 = vmul.f32 %v5229, %v5192
    %v5231 = vmul.f32 %v5230, %v5229
    %v5232 = vmul.f32 0.5, %v5231
    %v5233 = vsub.f32 1.5, %v5232
    %v5234 = vmul.f32 %v5229, %v5233
    %v5235 = vmul.f32 %v5192, %v5234
    %vm5236 = vcmp.eq.f32.partialorder %v5192, inf
    %v5237 = vsel %vm5236, %v5192, %v5235
    %vm5238 = vcmp.eq.f32.partialorder %v5192, 0.0
    %v5239 = vand.u32 %v5192, 2147483648
    %v5240 = vsel %vm5238, %v5239, %v5237
    %v5241 = vmax.f32 %v869, 1e-24
    %v5242 = vmax.f32 %v870, 1e-24
    %v5243 = vmax.f32 %v871, 1e-24
    %v5244 = vmax.f32 %v872, 1e-24
    %v5245 = vrsqrt.pop %v5241
    %v5246 = vmul.f32 %v5245, %v5241
    %v5247 = vmul.f32 %v5246, %v5245
    %v5248 = vmul.f32 0.5, %v5247
    %v5249 = vsub.f32 1.5, %v5248
    %v5250 = vmul.f32 %v5245, %v5249
    %v5251 = vmul.f32 %v5241, %v5250
    %vm5252 = vcmp.eq.f32.partialorder %v5241, inf
    %v5253 = vsel %vm5252, %v5241, %v5251
    %vm5254 = vcmp.eq.f32.partialorder %v5241, 0.0
    %v5255 = vand.u32 %v5241, 2147483648
    %v5256 = vsel %vm5254, %v5255, %v5253
    %v5257 = vrsqrt.pop %v5242
    %v5258 = vmul.f32 %v5257, %v5242
    %v5259 = vmul.f32 %v5258, %v5257
    %v5260 = vmul.f32 0.5, %v5259
    %v5261 = vsub.f32 1.5, %v5260
    %v5262 = vmul.f32 %v5257, %v5261
    %v5263 = vmul.f32 %v5242, %v5262
    %vm5264 = vcmp.eq.f32.partialorder %v5242, inf
    %v5265 = vsel %vm5264, %v5242, %v5263
    %vm5266 = vcmp.eq.f32.partialorder %v5242, 0.0
    %v5267 = vand.u32 %v5242, 2147483648
    %v5268 = vsel %vm5266, %v5267, %v5265
    %v5269 = vrsqrt.pop %v5243
    %v5270 = vmul.f32 %v5269, %v5243
    %v5271 = vmul.f32 %v5270, %v5269
    %v5272 = vmul.f32 0.5, %v5271
    %v5273 = vsub.f32 1.5, %v5272
    %v5274 = vmul.f32 %v5269, %v5273
    %v5275 = vmul.f32 %v5243, %v5274
    %vm5276 = vcmp.eq.f32.partialorder %v5243, inf
    %v5277 = vsel %vm5276, %v5243, %v5275
    %vm5278 = vcmp.eq.f32.partialorder %v5243, 0.0
    %v5279 = vand.u32 %v5243, 2147483648
    %v5280 = vsel %vm5278, %v5279, %v5277
    %v5281 = vrsqrt.pop %v5244
    %v5282 = vmul.f32 %v5281, %v5244
    %v5283 = vmul.f32 %v5282, %v5281
    %v5284 = vmul.f32 0.5, %v5283
    %v5285 = vsub.f32 1.5, %v5284
    %v5286 = vmul.f32 %v5281, %v5285
    %v5287 = vmul.f32 %v5244, %v5286
    %vm5288 = vcmp.eq.f32.partialorder %v5244, inf
    %v5289 = vsel %vm5288, %v5244, %v5287
    %vm5290 = vcmp.eq.f32.partialorder %v5244, 0.0
    %v5291 = vand.u32 %v5244, 2147483648
    %v5292 = vsel %vm5290, %v5291, %v5289
    %v5293 = vsub.f32 %v5204, %v5256
    %v5294 = vsub.f32 %v5216, %v5268
    %v5295 = vsub.f32 %v5228, %v5280
    %v5296 = vsub.f32 %v5240, %v5292
    %v5297 = vmul.f32 %v5185, %v5185
    %v5298 = vmul.f32 %v5186, %v5186
    %v5299 = vmul.f32 %v5187, %v5187
    %v5300 = vmul.f32 %v5188, %v5188
    %v5301 = vmul.f32 %v5293, %v5293
    %v5302 = vmul.f32 %v5294, %v5294
    %v5303 = vmul.f32 %v5295, %v5295
    %v5304 = vmul.f32 %v5296, %v5296
    %v5305 = vadd.f32 %v5297, %v5301
    %v5306 = vadd.f32 %v5298, %v5302
    %v5307 = vadd.f32 %v5299, %v5303
    %v5308 = vadd.f32 %v5300, %v5304
    %v5310 = vsel %vm82, 1.0, 0
    %v5313 = vsel %vm82, %v5305, 0
    %v5316 = vsel %vm82, %v5306, 0
    %v5319 = vsel %vm82, %v5307, 0
    %v5322 = vsel %vm82, %v5308, 0
    %5324 = vmatpush.xpose.msra.mxu0 0.0
    %5325 = vmatpush.xpose.msra.mxu0 0.0
    %5326 = vmatpush.xpose.msra.mxu0 0.0
    %5327 = vmatpush.xpose.msra.mxu0 0.0
    %5328 = vmatpush.xpose.msra.mxu0 0.0
    %5329 = vmatpush.xpose.msra.mxu0 0.0
    %5330 = vmatpush.xpose.msra.mxu0 0.0
    %5331 = vmatpush.xpose.msra.mxu0 0.0
    %5332 = vmatpush.xpose.msra.mxu0 0.0
    %5333 = vmatpush.xpose.msra.mxu0 0.0
    %5334 = vmatpush.xpose.msra.mxu0 0.0
    %5335 = vmatpush.xpose.msra.mxu0 0.0
    %5336 = vmatpush.xpose.msra.mxu0 %v5322
    %5337 = vmatpush.xpose.msra.mxu0 %v5319
    %5338 = vmatpush.xpose.msra.mxu0 %v5316
    %5339 = vmatpush.xpose.msra.mxu0 %v5313
    %5340 = vmatmul.f32.gmra.mxu0 %v5310
    %v5341 = vpop.f32.mrf.mxu0
    %v5342 = vadd.f32 0.0, %v5341
    %5343 = vdwg.mxu0
    %v5344 = vld [vmem:[%s13] sm:$0x1]
    %5346 = vset.pattern.permute.xlu0 0
    %5347 = vperm.xlu0 %5346, %v5344
    %v5348 = vpop.permute.xlu0 %5347
    %v5350 = vperm.slane %v5348, 0
    %v5351 = vmul.f32 %v5342, %v5350
    %5352 = vset.pattern.permute.xlu0 1
    %5353 = vperm.xlu0 %5352, %v5344
    %v5354 = vpop.permute.xlu0 %5353
    %v5356 = vperm.slane %v5354, 0
    %v5357 = vadd.f32 %v5351, %v5356
    %v5358 = vsub.f32 0.0, %v5357
    %v5359 = vmul.f32 %v5358, 1.442695
    %v5360 = vpow.pop %v5359
    %v5361 = vadd.f32 %v5360, 1.0
    %v5362 = vrcp.pop %v5361
    %v5363 = vmul.f32 %v5361, %v5362
    %v5364 = vsub.f32 1.0, %v5363
    %v5365 = vmul.f32 %v5362, %v5364
    %v5366 = vadd.f32 %v5362, %v5365
    %vm5367 = vweird.f32 %v5361
    %vm5368 = vweird.f32 %v5362
    %vm5369 = vmor %vm5367, %vm5368
    %v5370 = vsel %vm5369, %v5362, %v5366
    %v5371 = vand.u32 2147483647, %v5361
    %vm5372 = vcmp.eq.f32.partialorder %v5371, 8.507059e+37
    %v5373 = vand.u32 %v5361, 2147483648
    %v5374 = vor.u32 1.1754944e-38, %v5373
    %v5375 = vsel %vm5372, %v5374, %v5370
    %v5376 = vmul.f32 1.0, %v5375
    %vm5377 = vcmask 253952
    %5378 = vst.msk [vmem:[#allocation5] sm:$0x1] %vm5377, %v5376
    // Predicated region
    $region62: #{tpu_custom_call.1} parent=1 // pred_check
      _
    $region63: #{tpu_custom_call.1} parent=1 // pred_check_branch
      %5380 = sbr.rel (0) target = $region65
    $region64: #{tpu_custom_call.1} parent=1 // pred_region
      %5382 = vsyncadd [#allocation4], 0
      %s5384 = sshll.u32 [#allocation5], 4
      %s5385 = int_to_ptr.vmem [resolvable:$true] %s5384
      %s5386 = sshll.u32 %s14, 4
      %s5387 = int_to_ptr.hbm [resolvable:$true] %s5386
      %5389 = dma.vmem_to_hbm [thread:$0]  %s5385, 16, %s5387, [#allocation4]
    $region65: #{tpu_custom_call.1} parent=1 // pred_fallthru
      _
    // Predicated region
    $region66: #{tpu_custom_call.1} parent=1 // pred_check
      _
    $region67: #{tpu_custom_call.1} parent=1 // pred_check_branch
      %5391 = sbr.rel (0) target = $region69
    $region68: #{tpu_custom_call.1} parent=1 // pred_region
      %5393 = dma.done [#allocation4], 16
    $region69: #{tpu_custom_call.1} parent=1 // pred_fallthru
      _
    %5394 = vsyncpa [#allocation3], 1
    %5395 = vsyncpa [#allocation4], 1

</llo_original>
